<compile_context>
chip_gen: v6e
topology: v6e:2x2x1
jax: 0.10.0
libtpu: 0.0.40
codegen_flags: <defaults>
</compile_context>

<pallas_src>
import functools

import jax
import jax.numpy as jnp
from jax.experimental import pallas as pl
from jax.experimental.pallas import tpu as pltpu


def _encoder_layer_kernel(x_ref, wqkv_ref, bqkv_ref, wo_ref, bo_ref,
                          g1_ref, be1_ref, w1_ref, b1_ref,
                          w2_ref, b2_ref, g2_ref, be2_ref,
                          o_ref, attn_scr, *, num_heads, eps):
    f32 = jnp.float32
    bf16 = jnp.bfloat16
    Bt, S, D = x_ref.shape
    hd = D // num_heads
    scale = 1.0 / (hd ** 0.5)

    x = x_ref[...]                                  # (Bt, S, D) f32
    x2 = x.reshape(Bt * S, D)                       # flatten: big MXU M dimension

    # ---- fused QKV projection (bf16 MXU, f32 accumulate) ----
    qkv = jnp.dot(x2.astype(bf16), wqkv_ref[...],
                  preferred_element_type=f32) + bqkv_ref[0]   # (Bt*S, 3D) f32
    q = (qkv[:, 0 * D:1 * D] * scale).reshape(Bt, S, D)
    k = qkv[:, 1 * D:2 * D].reshape(Bt, S, D)
    v = qkv[:, 2 * D:3 * D].reshape(Bt, S, D)

    # ---- per-head attention, batched over Bt; heads write into a scratch at
    #      static column offsets (no concatenate materialization) ----
    for h in range(num_heads):
        lo, hi = h * hd, (h + 1) * hd
        qh = q[:, :, lo:hi].astype(bf16)            # (Bt, S, hd)
        kh = k[:, :, lo:hi].astype(bf16)
        vh = v[:, :, lo:hi].astype(bf16)
        s = jnp.einsum("bqd,bkd->bqk", qh, kh,
                       preferred_element_type=f32)  # (Bt, S, S) f32
        s = s - jnp.max(s, axis=-1, keepdims=True)
        p = jnp.exp(s)
        p = p * pl.reciprocal(jnp.sum(p, axis=-1, keepdims=True), approx=True)
        oh = jnp.einsum("bqk,bkd->bqd", p.astype(bf16), vh,
                        preferred_element_type=f32)  # (Bt, S, hd)
        attn_scr[:, lo:hi] = oh.reshape(Bt * S, hd).astype(bf16)

    # ---- output projection + residual + LayerNorm1 (f32 vector math) ----
    attn = jnp.dot(attn_scr[...], wo_ref[...],
                   preferred_element_type=f32) + bo_ref[0]    # (Bt*S, D)
    y = x2 + attn
    mu = jnp.mean(y, axis=-1, keepdims=True)
    var = jnp.mean((y - mu) * (y - mu), axis=-1, keepdims=True)
    y = (y - mu) * jax.lax.rsqrt(var + eps) * g1_ref[0] + be1_ref[0]

    # ---- feed-forward (Linear -> ReLU -> Linear) + residual + LayerNorm2 ----
    h1 = jnp.dot(y.astype(bf16), w1_ref[...],
                 preferred_element_type=f32) + b1_ref[0]
    h1 = jnp.maximum(h1, 0.0)
    h2 = jnp.dot(h1.astype(bf16), w2_ref[...],
                 preferred_element_type=f32) + b2_ref[0]
    z = y + h2
    mu2 = jnp.mean(z, axis=-1, keepdims=True)
    var2 = jnp.mean((z - mu2) * (z - mu2), axis=-1, keepdims=True)
    z = (z - mu2) * jax.lax.rsqrt(var2 + eps) * g2_ref[0] + be2_ref[0]

    o_ref[...] = z.reshape(Bt, S, D).astype(o_ref.dtype)


def _pick_block_b(B, S):
    # Target >= 256 rows fed to the MXU per step (v6e/v7x MXU is 2x256^2),
    # while keeping the block an even divisor of B.
    bt = max(1, min(B, -(-256 // S)))
    while B % bt:
        bt -= 1
    return bt


def _vmem_limit_bytes(bt, S, D, F):
    # single copy of bf16 weights + double-buffered f32 in/out blocks + activations
    weights = 2 * (D * 3 * D + D * D + D * F + F * D)
    io_blocks = 4 * 4 * bt * S * D
    acts = 4 * bt * S * (3 * D + F + 4 * D) + 4 * bt * S * S + 2 * bt * S * D
    est = 2 * (weights + io_blocks + acts) + (4 << 20)
    return int(min(max(est, 32 << 20), 56 << 20))   # headroom for v7x (64 MiB phys)


def _build_call(B, S, D, F, dtype, *, block_b, num_heads, eps, single_buffer_weights):
    def wspec(shape):
        imap = lambda b: (0,) * len(shape)
        if single_buffer_weights:
            # Weights never change block index; one VMEM buffer is enough.
            return pl.BlockSpec(shape, imap, pipeline_mode=pl.Buffered(1))
        return pl.BlockSpec(shape, imap)

    kernel = functools.partial(_encoder_layer_kernel, num_heads=num_heads, eps=eps)
    return pl.pallas_call(
        kernel,
        out_shape=jax.ShapeDtypeStruct((B, S, D), dtype),
        grid_spec=pltpu.PrefetchScalarGridSpec(
            num_scalar_prefetch=0,
            grid=(B // block_b,),
            in_specs=[
                pl.BlockSpec((block_b, S, D), lambda b: (b, 0, 0)),   # x
                wspec((D, 3 * D)),                                    # wqkv_t (bf16)
                wspec((1, 3 * D)),                                    # bqkv
                wspec((D, D)),                                        # wo_t (bf16)
                wspec((1, D)),                                        # bo
                wspec((1, D)),                                        # ln1 gamma
                wspec((1, D)),                                        # ln1 beta
                wspec((D, F)),                                        # w1_t (bf16)
                wspec((1, F)),                                        # b1
                wspec((F, D)),                                        # w2_t (bf16)
                wspec((1, D)),                                        # b2
                wspec((1, D)),                                        # ln2 gamma
                wspec((1, D)),                                        # ln2 beta
            ],
            out_specs=pl.BlockSpec((block_b, S, D), lambda b: (b, 0, 0)),
            scratch_shapes=[pltpu.VMEM((block_b * S, D), jnp.bfloat16)],
        ),
        compiler_params=pltpu.CompilerParams(
            dimension_semantics=("parallel",),      # batch blocks are independent
            vmem_limit_bytes=_vmem_limit_bytes(block_b, S, D, F),
        ),
    )


def encoder_trsf_forward(x, params, *, num_heads, eps=1e-5, block_b=None):
    """x: (B, S, D) float32; params: dict of pre-transposed weights (bf16 matrices)."""
    B, S, D = x.shape
    F = params["w1_t"].shape[1]
    if block_b is None:
        block_b = _pick_block_b(B, S)
    assert B % block_b == 0, "batch must be divisible by block_b"

    args = (x, params["wqkv_t"], params["bqkv"], params["wo_t"], params["bo"],
            params["g1"], params["be1"], params["w1_t"], params["b1"],
            params["w2_t"], params["b2"], params["g2"], params["be2"])
    try:
        fn = _build_call(B, S, D, F, x.dtype, block_b=block_b, num_heads=num_heads,
                         eps=eps, single_buffer_weights=True)
        return fn(*args)
    except Exception:
        # pl.Buffered(1) not accepted by this jax build -> default double-buffering.
        fn = _build_call(B, S, D, F, x.dtype, block_b=block_b, num_heads=num_heads,
                         eps=eps, single_buffer_weights=False)
        return fn(*args)


def _reference_forward(x, p, num_heads, eps=1e-5):
    """Pure-JAX reference with matching precision (bf16 matmuls, f32 accumulate)."""
    B, S, D = x.shape
    hd = D // num_heads
    f32, bf16 = jnp.float32, jnp.bfloat16

    def mm(a, w):
        return jnp.dot(a.astype(bf16), w.astype(bf16), preferred_element_type=f32)

    qkv = mm(x.reshape(B * S, D), p["wqkv_t"]) + p["bqkv"][0]
    q, k, v = qkv[:, :D], qkv[:, D:2 * D], qkv[:, 2 * D:]
    q = (q * (1.0 / hd ** 0.5)).reshape(B, S, num_heads, hd).transpose(0, 2, 1, 3)
    k = k.reshape(B, S, num_heads, hd).transpose(0, 2, 1, 3)
    v = v.reshape(B, S, num_heads, hd).transpose(0, 2, 1, 3)
    s = jnp.einsum("bhqd,bhkd->bhqk", q.astype(bf16), k.astype(bf16),
                   preferred_element_type=f32)
    att = jax.nn.softmax(s, axis=-1)
    o = jnp.einsum("bhqk,bhkd->bhqd", att.astype(bf16), v.astype(bf16),
                   preferred_element_type=f32)
    o = o.transpose(0, 2, 1, 3).reshape(B * S, D).astype(bf16)
    o = mm(o, p["wo_t"]) + p["bo"][0]

    y = x.reshape(B * S, D) + o
    mu = y.mean(-1, keepdims=True)
    var = ((y - mu) ** 2).mean(-1, keepdims=True)
    y = (y - mu) / jnp.sqrt(var + eps) * p["g1"][0] + p["be1"][0]

    h = jnp.maximum(mm(y, p["w1_t"]) + p["b1"][0], 0.0)
    h = mm(h, p["w2_t"]) + p["b2"][0]
    z = y + h
    mu = z.mean(-1, keepdims=True)
    var = ((z - mu) ** 2).mean(-1, keepdims=True)
    z = (z - mu) / jnp.sqrt(var + eps) * p["g2"][0] + p["be2"][0]
    return z.reshape(B, S, D)


def init_params(key, d_model, num_heads, dim_feedforward):
    ks = jax.random.split(key, 8)
    s = 0.02
    f32, bf16 = jnp.float32, jnp.bfloat16
    # PyTorch stores in_proj_weight as (3D, D) and computes x @ W.T; we store
    # already-transposed weight matrices (as bf16 for the MXU) so the kernel
    # only does x @ W.  Biases / LayerNorm params stay f32.
    return {
        "wqkv_t": (jax.random.normal(ks[0], (d_model, 3 * d_model), f32) * s).astype(bf16),
        "bqkv":   (jax.random.normal(ks[1], (1, 3 * d_model), f32) * s),
        "wo_t":   (jax.random.normal(ks[2], (d_model, d_model), f32) * s).astype(bf16),
        "bo":     (jax.random.normal(ks[3], (1, d_model), f32) * s),
        "g1":     jnp.ones((1, d_model), f32),
        "be1":    jnp.zeros((1, d_model), f32),
        "w1_t":   (jax.random.normal(ks[4], (d_model, dim_feedforward), f32) * s).astype(bf16),
        "b1":     (jax.random.normal(ks[5], (1, dim_feedforward), f32) * s),
        "w2_t":   (jax.random.normal(ks[6], (dim_feedforward, d_model), f32) * s).astype(bf16),
        "b2":     (jax.random.normal(ks[7], (1, d_model), f32) * s),
        "g2":     jnp.ones((1, d_model), f32),
        "be2":    jnp.zeros((1, d_model), f32),
    }


if __name__ == "__main__":
    # Small shapes consistent with the module (hidden_dim / num_heads scaled down).
    B, S, D, H, F = 4, 8, 32, 4, 64
    key = jax.random.PRNGKey(0)
    kx, kp = jax.random.split(key)
    x = jax.random.normal(kx, (B, S, D), dtype=jnp.float32)
    params = init_params(kp, D, H, F)

    # block_b=2 -> grid of 2 steps with 2 sequences per step (exercises batching).
    out = encoder_trsf_forward(x, params, num_heads=H, block_b=2)
    out = jax.block_until_ready(out)

    ref = _reference_forward(x, params, num_heads=H)
    assert out.shape == (B, S, D)
    max_err = float(jnp.max(jnp.abs(out - ref)))
    assert jnp.allclose(out, ref, atol=1e-2, rtol=1e-2), f"mismatch vs reference: {max_err}"
    # TODO(synk): dropout (p=0.1) is identity here (eval-mode semantics).
    print("KERNEL_OK")
</pallas_src>

<mosaic_0001>
module attributes {stable_mosaic.version = 11 : i64} {
  func.func @_encoder_layer_kernel(%arg0: i32, %arg1: memref<2x8x32xf32, #tpu.memory_space<vmem>>, %arg2: memref<32x96xbf16, #tpu.memory_space<vmem>>, %arg3: memref<1x96xf32, #tpu.memory_space<vmem>>, %arg4: memref<32x32xbf16, #tpu.memory_space<vmem>>, %arg5: memref<1x32xf32, #tpu.memory_space<vmem>>, %arg6: memref<1x32xf32, #tpu.memory_space<vmem>>, %arg7: memref<1x32xf32, #tpu.memory_space<vmem>>, %arg8: memref<32x64xbf16, #tpu.memory_space<vmem>>, %arg9: memref<1x64xf32, #tpu.memory_space<vmem>>, %arg10: memref<64x32xbf16, #tpu.memory_space<vmem>>, %arg11: memref<1x32xf32, #tpu.memory_space<vmem>>, %arg12: memref<1x32xf32, #tpu.memory_space<vmem>>, %arg13: memref<1x32xf32, #tpu.memory_space<vmem>>, %arg14: memref<2x8x32xf32, #tpu.memory_space<vmem>>, %arg15: memref<16x32xbf16, #tpu.memory_space<vmem>>) attributes {dimension_semantics = [#tpu.dimension_semantics<parallel>], iteration_bounds = array<i64: 2>, scalar_prefetch = 0 : i64, scratch_operands = 1 : i64, tpu.core_type = #tpu.core_type<tc>, window_params = [{transform_indices = @transform_0, window_bounds = array<i64: 2, 8, 32>}, {pipeline_mode = #tpu.pipeline_mode<synchronous>, transform_indices = @transform_1, window_bounds = array<i64: 32, 96>}, {pipeline_mode = #tpu.pipeline_mode<synchronous>, transform_indices = @transform_2, window_bounds = array<i64: 1, 96>}, {pipeline_mode = #tpu.pipeline_mode<synchronous>, transform_indices = @transform_3, window_bounds = array<i64: 32, 32>}, {pipeline_mode = #tpu.pipeline_mode<synchronous>, transform_indices = @transform_4, window_bounds = array<i64: 1, 32>}, {pipeline_mode = #tpu.pipeline_mode<synchronous>, transform_indices = @transform_5, window_bounds = array<i64: 1, 32>}, {pipeline_mode = #tpu.pipeline_mode<synchronous>, transform_indices = @transform_6, window_bounds = array<i64: 1, 32>}, {pipeline_mode = #tpu.pipeline_mode<synchronous>, transform_indices = @transform_7, window_bounds = array<i64: 32, 64>}, {pipeline_mode = #tpu.pipeline_mode<synchronous>, transform_indices = @transform_8, window_bounds = array<i64: 1, 64>}, {pipeline_mode = #tpu.pipeline_mode<synchronous>, transform_indices = @transform_9, window_bounds = array<i64: 64, 32>}, {pipeline_mode = #tpu.pipeline_mode<synchronous>, transform_indices = @transform_10, window_bounds = array<i64: 1, 32>}, {pipeline_mode = #tpu.pipeline_mode<synchronous>, transform_indices = @transform_11, window_bounds = array<i64: 1, 32>}, {pipeline_mode = #tpu.pipeline_mode<synchronous>, transform_indices = @transform_12, window_bounds = array<i64: 1, 32>}, {transform_indices = @transform_13, window_bounds = array<i64: 2, 8, 32>}]} {
    %c0 = arith.constant 0 : index
    %c0_0 = arith.constant 0 : index
    %c0_1 = arith.constant 0 : index
    %0 = vector.load %arg1[%c0, %c0_0, %c0_1] : memref<2x8x32xf32, #tpu.memory_space<vmem>>, vector<2x8x32xf32>
    %1 = vector.shape_cast %0 : vector<2x8x32xf32> to vector<16x32xf32>
    %2 = arith.truncf %1 : vector<16x32xf32> to vector<16x32xbf16>
    %c0_2 = arith.constant 0 : index
    %c0_3 = arith.constant 0 : index
    %3 = vector.load %arg2[%c0_2, %c0_3] : memref<32x96xbf16, #tpu.memory_space<vmem>>, vector<32x96xbf16>
    %cst = arith.constant dense<0.000000e+00> : vector<16x96xf32>
    %4 = tpu.matmul %2, %3, %cst {dimension_numbers = #tpu.dot_dimension_numbers<[1], [0], [0], [1], [0, 0, 1, 1], [], []>} : vector<16x32xbf16>, vector<32x96xbf16>, vector<16x96xf32> -> vector<16x96xf32>
    %c0_4 = arith.constant 0 : index
    %c0_5 = arith.constant 0 : index
    %5 = vector.load %arg3[%c0_4, %c0_5] : memref<1x96xf32, #tpu.memory_space<vmem>>, vector<1x96xf32>
    %6 = vector.shape_cast %5 : vector<1x96xf32> to vector<96xf32>
    %7 = vector.shape_cast %6 : vector<96xf32> to vector<1x96xf32>
    %8 = vector.broadcast %7 : vector<1x96xf32> to vector<16x96xf32>
    %9 = arith.addf %4, %8 : vector<16x96xf32>
    %10 = vector.extract_strided_slice %9 {offsets = [0, 0], sizes = [16, 32], strides = [1, 1]} : vector<16x96xf32> to vector<16x32xf32>
    %cst_6 = arith.constant 0.353553385 : f32
    %11 = vector.broadcast %cst_6 : f32 to vector<16x32xf32>
    %12 = arith.mulf %10, %11 : vector<16x32xf32>
    %13 = vector.shape_cast %12 : vector<16x32xf32> to vector<2x8x32xf32>
    %14 = vector.extract_strided_slice %9 {offsets = [0, 32], sizes = [16, 32], strides = [1, 1]} : vector<16x96xf32> to vector<16x32xf32>
    %15 = vector.shape_cast %14 : vector<16x32xf32> to vector<2x8x32xf32>
    %16 = vector.extract_strided_slice %9 {offsets = [0, 64], sizes = [16, 32], strides = [1, 1]} : vector<16x96xf32> to vector<16x32xf32>
    %17 = vector.shape_cast %16 : vector<16x32xf32> to vector<2x8x32xf32>
    %18 = vector.extract_strided_slice %13 {offsets = [0, 0, 0], sizes = [2, 8, 8], strides = [1, 1, 1]} : vector<2x8x32xf32> to vector<2x8x8xf32>
    %19 = arith.truncf %18 : vector<2x8x8xf32> to vector<2x8x8xbf16>
    %20 = vector.extract_strided_slice %15 {offsets = [0, 0, 0], sizes = [2, 8, 8], strides = [1, 1, 1]} : vector<2x8x32xf32> to vector<2x8x8xf32>
    %21 = arith.truncf %20 : vector<2x8x8xf32> to vector<2x8x8xbf16>
    %22 = vector.extract_strided_slice %17 {offsets = [0, 0, 0], sizes = [2, 8, 8], strides = [1, 1, 1]} : vector<2x8x32xf32> to vector<2x8x8xf32>
    %23 = arith.truncf %22 : vector<2x8x8xf32> to vector<2x8x8xbf16>
    "tpu.trace_start"() <{level = 10 : i32, message = "bqd,bkd->bqk"}> : () -> ()
    %cst_7 = arith.constant dense<0.000000e+00> : vector<2x8x8xf32>
    %24 = tpu.matmul %19, %21, %cst_7 {dimension_numbers = #tpu.dot_dimension_numbers<[2], [2], [1], [1], [0, 0, 0, 1, 1, 1], [0], [0]>} : vector<2x8x8xbf16>, vector<2x8x8xbf16>, vector<2x8x8xf32> -> vector<2x8x8xf32>
    "tpu.trace_stop"() : () -> ()
    %cst_8 = arith.constant dense<0xFF800000> : vector<2x8xf32>
    %25 = vector.multi_reduction <maximumf>, %24, %cst_8 [2] : vector<2x8x8xf32> to vector<2x8xf32>
    %26 = vector.shape_cast %25 : vector<2x8xf32> to vector<2x8x1xf32>
    %27 = vector.broadcast %26 : vector<2x8x1xf32> to vector<2x8x8xf32>
    %28 = arith.subf %24, %27 : vector<2x8x8xf32>
    %29 = math.exp %28 : vector<2x8x8xf32>
    %cst_9 = arith.constant dense<0.000000e+00> : vector<2x8xf32>
    %30 = vector.multi_reduction <add>, %29, %cst_9 [2] : vector<2x8x8xf32> to vector<2x8xf32>
    %31 = vector.shape_cast %30 : vector<2x8xf32> to vector<2x8x1xf32>
    %32 = tpu.reciprocal %31 {approx = true} : vector<2x8x1xf32> -> vector<2x8x1xf32>
    %33 = vector.broadcast %32 : vector<2x8x1xf32> to vector<2x8x8xf32>
    %34 = arith.mulf %29, %33 : vector<2x8x8xf32>
    %35 = arith.truncf %34 : vector<2x8x8xf32> to vector<2x8x8xbf16>
    "tpu.trace_start"() <{level = 10 : i32, message = "bqk,bkd->bqd"}> : () -> ()
    %cst_10 = arith.constant dense<0.000000e+00> : vector<2x8x8xf32>
    %36 = tpu.matmul %35, %23, %cst_10 {dimension_numbers = #tpu.dot_dimension_numbers<[2], [1], [1], [2], [0, 0, 0, 1, 1, 2], [0], [0]>} : vector<2x8x8xbf16>, vector<2x8x8xbf16>, vector<2x8x8xf32> -> vector<2x8x8xf32>
    "tpu.trace_stop"() : () -> ()
    %37 = vector.shape_cast %36 : vector<2x8x8xf32> to vector<16x8xf32>
    %38 = arith.truncf %37 : vector<16x8xf32> to vector<16x8xbf16>
    %c0_11 = arith.constant 0 : index
    %c0_12 = arith.constant 0 : index
    %39 = vector.load %arg15[%c0_11, %c0_12] : memref<16x32xbf16, #tpu.memory_space<vmem>>, vector<16x8xbf16>
    tpu.vector_store %arg15[%c0_11, %c0_12], %38 {strides = array<i32>} : memref<16x32xbf16, #tpu.memory_space<vmem>>, vector<16x8xbf16>,
    %40 = vector.extract_strided_slice %13 {offsets = [0, 0, 8], sizes = [2, 8, 8], strides = [1, 1, 1]} : vector<2x8x32xf32> to vector<2x8x8xf32>
    %41 = arith.truncf %40 : vector<2x8x8xf32> to vector<2x8x8xbf16>
    %42 = vector.extract_strided_slice %15 {offsets = [0, 0, 8], sizes = [2, 8, 8], strides = [1, 1, 1]} : vector<2x8x32xf32> to vector<2x8x8xf32>
    %43 = arith.truncf %42 : vector<2x8x8xf32> to vector<2x8x8xbf16>
    %44 = vector.extract_strided_slice %17 {offsets = [0, 0, 8], sizes = [2, 8, 8], strides = [1, 1, 1]} : vector<2x8x32xf32> to vector<2x8x8xf32>
    %45 = arith.truncf %44 : vector<2x8x8xf32> to vector<2x8x8xbf16>
    "tpu.trace_start"() <{level = 10 : i32, message = "bqd,bkd->bqk"}> : () -> ()
    %cst_13 = arith.constant dense<0.000000e+00> : vector<2x8x8xf32>
    %46 = tpu.matmul %41, %43, %cst_13 {dimension_numbers = #tpu.dot_dimension_numbers<[2], [2], [1], [1], [0, 0, 0, 1, 1, 1], [0], [0]>} : vector<2x8x8xbf16>, vector<2x8x8xbf16>, vector<2x8x8xf32> -> vector<2x8x8xf32>
    "tpu.trace_stop"() : () -> ()
    %cst_14 = arith.constant dense<0xFF800000> : vector<2x8xf32>
    %47 = vector.multi_reduction <maximumf>, %46, %cst_14 [2] : vector<2x8x8xf32> to vector<2x8xf32>
    %48 = vector.shape_cast %47 : vector<2x8xf32> to vector<2x8x1xf32>
    %49 = vector.broadcast %48 : vector<2x8x1xf32> to vector<2x8x8xf32>
    %50 = arith.subf %46, %49 : vector<2x8x8xf32>
    %51 = math.exp %50 : vector<2x8x8xf32>
    %cst_15 = arith.constant dense<0.000000e+00> : vector<2x8xf32>
    %52 = vector.multi_reduction <add>, %51, %cst_15 [2] : vector<2x8x8xf32> to vector<2x8xf32>
    %53 = vector.shape_cast %52 : vector<2x8xf32> to vector<2x8x1xf32>
    %54 = tpu.reciprocal %53 {approx = true} : vector<2x8x1xf32> -> vector<2x8x1xf32>
    %55 = vector.broadcast %54 : vector<2x8x1xf32> to vector<2x8x8xf32>
    %56 = arith.mulf %51, %55 : vector<2x8x8xf32>
    %57 = arith.truncf %56 : vector<2x8x8xf32> to vector<2x8x8xbf16>
    "tpu.trace_start"() <{level = 10 : i32, message = "bqk,bkd->bqd"}> : () -> ()
    %cst_16 = arith.constant dense<0.000000e+00> : vector<2x8x8xf32>
    %58 = tpu.matmul %57, %45, %cst_16 {dimension_numbers = #tpu.dot_dimension_numbers<[2], [1], [1], [2], [0, 0, 0, 1, 1, 2], [0], [0]>} : vector<2x8x8xbf16>, vector<2x8x8xbf16>, vector<2x8x8xf32> -> vector<2x8x8xf32>
    "tpu.trace_stop"() : () -> ()
    %59 = vector.shape_cast %58 : vector<2x8x8xf32> to vector<16x8xf32>
    %60 = arith.truncf %59 : vector<16x8xf32> to vector<16x8xbf16>
    %c0_17 = arith.constant 0 : index
    %c8 = arith.constant 8 : index
    %61 = vector.load %arg15[%c0_17, %c8] : memref<16x32xbf16, #tpu.memory_space<vmem>>, vector<16x8xbf16>
    tpu.vector_store %arg15[%c0_17, %c8], %60 {strides = array<i32>} : memref<16x32xbf16, #tpu.memory_space<vmem>>, vector<16x8xbf16>,
    %62 = vector.extract_strided_slice %13 {offsets = [0, 0, 16], sizes = [2, 8, 8], strides = [1, 1, 1]} : vector<2x8x32xf32> to vector<2x8x8xf32>
    %63 = arith.truncf %62 : vector<2x8x8xf32> to vector<2x8x8xbf16>
    %64 = vector.extract_strided_slice %15 {offsets = [0, 0, 16], sizes = [2, 8, 8], strides = [1, 1, 1]} : vector<2x8x32xf32> to vector<2x8x8xf32>
    %65 = arith.truncf %64 : vector<2x8x8xf32> to vector<2x8x8xbf16>
    %66 = vector.extract_strided_slice %17 {offsets = [0, 0, 16], sizes = [2, 8, 8], strides = [1, 1, 1]} : vector<2x8x32xf32> to vector<2x8x8xf32>
    %67 = arith.truncf %66 : vector<2x8x8xf32> to vector<2x8x8xbf16>
    "tpu.trace_start"() <{level = 10 : i32, message = "bqd,bkd->bqk"}> : () -> ()
    %cst_18 = arith.constant dense<0.000000e+00> : vector<2x8x8xf32>
    %68 = tpu.matmul %63, %65, %cst_18 {dimension_numbers = #tpu.dot_dimension_numbers<[2], [2], [1], [1], [0, 0, 0, 1, 1, 1], [0], [0]>} : vector<2x8x8xbf16>, vector<2x8x8xbf16>, vector<2x8x8xf32> -> vector<2x8x8xf32>
    "tpu.trace_stop"() : () -> ()
    %cst_19 = arith.constant dense<0xFF800000> : vector<2x8xf32>
    %69 = vector.multi_reduction <maximumf>, %68, %cst_19 [2] : vector<2x8x8xf32> to vector<2x8xf32>
    %70 = vector.shape_cast %69 : vector<2x8xf32> to vector<2x8x1xf32>
    %71 = vector.broadcast %70 : vector<2x8x1xf32> to vector<2x8x8xf32>
    %72 = arith.subf %68, %71 : vector<2x8x8xf32>
    %73 = math.exp %72 : vector<2x8x8xf32>
    %cst_20 = arith.constant dense<0.000000e+00> : vector<2x8xf32>
    %74 = vector.multi_reduction <add>, %73, %cst_20 [2] : vector<2x8x8xf32> to vector<2x8xf32>
    %75 = vector.shape_cast %74 : vector<2x8xf32> to vector<2x8x1xf32>
    %76 = tpu.reciprocal %75 {approx = true} : vector<2x8x1xf32> -> vector<2x8x1xf32>
    %77 = vector.broadcast %76 : vector<2x8x1xf32> to vector<2x8x8xf32>
    %78 = arith.mulf %73, %77 : vector<2x8x8xf32>
    %79 = arith.truncf %78 : vector<2x8x8xf32> to vector<2x8x8xbf16>
    "tpu.trace_start"() <{level = 10 : i32, message = "bqk,bkd->bqd"}> : () -> ()
    %cst_21 = arith.constant dense<0.000000e+00> : vector<2x8x8xf32>
    %80 = tpu.matmul %79, %67, %cst_21 {dimension_numbers = #tpu.dot_dimension_numbers<[2], [1], [1], [2], [0, 0, 0, 1, 1, 2], [0], [0]>} : vector<2x8x8xbf16>, vector<2x8x8xbf16>, vector<2x8x8xf32> -> vector<2x8x8xf32>
    "tpu.trace_stop"() : () -> ()
    %81 = vector.shape_cast %80 : vector<2x8x8xf32> to vector<16x8xf32>
    %82 = arith.truncf %81 : vector<16x8xf32> to vector<16x8xbf16>
    %c0_22 = arith.constant 0 : index
    %c16 = arith.constant 16 : index
    %83 = vector.load %arg15[%c0_22, %c16] : memref<16x32xbf16, #tpu.memory_space<vmem>>, vector<16x8xbf16>
    tpu.vector_store %arg15[%c0_22, %c16], %82 {strides = array<i32>} : memref<16x32xbf16, #tpu.memory_space<vmem>>, vector<16x8xbf16>,
    %84 = vector.extract_strided_slice %13 {offsets = [0, 0, 24], sizes = [2, 8, 8], strides = [1, 1, 1]} : vector<2x8x32xf32> to vector<2x8x8xf32>
    %85 = arith.truncf %84 : vector<2x8x8xf32> to vector<2x8x8xbf16>
    %86 = vector.extract_strided_slice %15 {offsets = [0, 0, 24], sizes = [2, 8, 8], strides = [1, 1, 1]} : vector<2x8x32xf32> to vector<2x8x8xf32>
    %87 = arith.truncf %86 : vector<2x8x8xf32> to vector<2x8x8xbf16>
    %88 = vector.extract_strided_slice %17 {offsets = [0, 0, 24], sizes = [2, 8, 8], strides = [1, 1, 1]} : vector<2x8x32xf32> to vector<2x8x8xf32>
    %89 = arith.truncf %88 : vector<2x8x8xf32> to vector<2x8x8xbf16>
    "tpu.trace_start"() <{level = 10 : i32, message = "bqd,bkd->bqk"}> : () -> ()
    %cst_23 = arith.constant dense<0.000000e+00> : vector<2x8x8xf32>
    %90 = tpu.matmul %85, %87, %cst_23 {dimension_numbers = #tpu.dot_dimension_numbers<[2], [2], [1], [1], [0, 0, 0, 1, 1, 1], [0], [0]>} : vector<2x8x8xbf16>, vector<2x8x8xbf16>, vector<2x8x8xf32> -> vector<2x8x8xf32>
    "tpu.trace_stop"() : () -> ()
    %cst_24 = arith.constant dense<0xFF800000> : vector<2x8xf32>
    %91 = vector.multi_reduction <maximumf>, %90, %cst_24 [2] : vector<2x8x8xf32> to vector<2x8xf32>
    %92 = vector.shape_cast %91 : vector<2x8xf32> to vector<2x8x1xf32>
    %93 = vector.broadcast %92 : vector<2x8x1xf32> to vector<2x8x8xf32>
    %94 = arith.subf %90, %93 : vector<2x8x8xf32>
    %95 = math.exp %94 : vector<2x8x8xf32>
    %cst_25 = arith.constant dense<0.000000e+00> : vector<2x8xf32>
    %96 = vector.multi_reduction <add>, %95, %cst_25 [2] : vector<2x8x8xf32> to vector<2x8xf32>
    %97 = vector.shape_cast %96 : vector<2x8xf32> to vector<2x8x1xf32>
    %98 = tpu.reciprocal %97 {approx = true} : vector<2x8x1xf32> -> vector<2x8x1xf32>
    %99 = vector.broadcast %98 : vector<2x8x1xf32> to vector<2x8x8xf32>
    %100 = arith.mulf %95, %99 : vector<2x8x8xf32>
    %101 = arith.truncf %100 : vector<2x8x8xf32> to vector<2x8x8xbf16>
    "tpu.trace_start"() <{level = 10 : i32, message = "bqk,bkd->bqd"}> : () -> ()
    %cst_26 = arith.constant dense<0.000000e+00> : vector<2x8x8xf32>
    %102 = tpu.matmul %101, %89, %cst_26 {dimension_numbers = #tpu.dot_dimension_numbers<[2], [1], [1], [2], [0, 0, 0, 1, 1, 2], [0], [0]>} : vector<2x8x8xbf16>, vector<2x8x8xbf16>, vector<2x8x8xf32> -> vector<2x8x8xf32>
    "tpu.trace_stop"() : () -> ()
    %103 = vector.shape_cast %102 : vector<2x8x8xf32> to vector<16x8xf32>
    %104 = arith.truncf %103 : vector<16x8xf32> to vector<16x8xbf16>
    %c0_27 = arith.constant 0 : index
    %c24 = arith.constant 24 : index
    %105 = vector.load %arg15[%c0_27, %c24] : memref<16x32xbf16, #tpu.memory_space<vmem>>, vector<16x8xbf16>
    tpu.vector_store %arg15[%c0_27, %c24], %104 {strides = array<i32>} : memref<16x32xbf16, #tpu.memory_space<vmem>>, vector<16x8xbf16>,
    %c0_28 = arith.constant 0 : index
    %c0_29 = arith.constant 0 : index
    %106 = vector.load %arg15[%c0_28, %c0_29] : memref<16x32xbf16, #tpu.memory_space<vmem>>, vector<16x32xbf16>
    %c0_30 = arith.constant 0 : index
    %c0_31 = arith.constant 0 : index
    %107 = vector.load %arg4[%c0_30, %c0_31] : memref<32x32xbf16, #tpu.memory_space<vmem>>, vector<32x32xbf16>
    %cst_32 = arith.constant dense<0.000000e+00> : vector<16x32xf32>
    %108 = tpu.matmul %106, %107, %cst_32 {dimension_numbers = #tpu.dot_dimension_numbers<[1], [0], [0], [1], [0, 0, 1, 1], [], []>} : vector<16x32xbf16>, vector<32x32xbf16>, vector<16x32xf32> -> vector<16x32xf32>
    %c0_33 = arith.constant 0 : index
    %c0_34 = arith.constant 0 : index
    %109 = vector.load %arg5[%c0_33, %c0_34] : memref<1x32xf32, #tpu.memory_space<vmem>>, vector<1x32xf32>
    %110 = vector.shape_cast %109 : vector<1x32xf32> to vector<32xf32>
    %111 = vector.shape_cast %110 : vector<32xf32> to vector<1x32xf32>
    %112 = vector.broadcast %111 : vector<1x32xf32> to vector<16x32xf32>
    %113 = arith.addf %108, %112 : vector<16x32xf32>
    %114 = arith.addf %1, %113 : vector<16x32xf32>
    %cst_35 = arith.constant dense<0.000000e+00> : vector<16xf32>
    %115 = vector.multi_reduction <add>, %114, %cst_35 [1] : vector<16x32xf32> to vector<16xf32>
    %116 = vector.shape_cast %115 : vector<16xf32> to vector<16x1xf32>
    %cst_36 = arith.constant 3.200000e+01 : f32
    %117 = vector.broadcast %cst_36 : f32 to vector<16x1xf32>
    %118 = arith.divf %116, %117 : vector<16x1xf32>
    %119 = vector.broadcast %118 : vector<16x1xf32> to vector<16x32xf32>
    %120 = arith.subf %114, %119 : vector<16x32xf32>
    %121 = vector.broadcast %118 : vector<16x1xf32> to vector<16x32xf32>
    %122 = arith.subf %114, %121 : vector<16x32xf32>
    %123 = arith.mulf %120, %122 : vector<16x32xf32>
    %cst_37 = arith.constant dense<0.000000e+00> : vector<16xf32>
    %124 = vector.multi_reduction <add>, %123, %cst_37 [1] : vector<16x32xf32> to vector<16xf32>
    %125 = vector.shape_cast %124 : vector<16xf32> to vector<16x1xf32>
    %cst_38 = arith.constant 3.200000e+01 : f32
    %126 = vector.broadcast %cst_38 : f32 to vector<16x1xf32>
    %127 = arith.divf %125, %126 : vector<16x1xf32>
    %128 = vector.broadcast %118 : vector<16x1xf32> to vector<16x32xf32>
    %129 = arith.subf %114, %128 : vector<16x32xf32>
    %cst_39 = arith.constant 9.99999974E-6 : f32
    %130 = vector.broadcast %cst_39 : f32 to vector<16x1xf32>
    %131 = arith.addf %127, %130 : vector<16x1xf32>
    %132 = math.rsqrt %131 : vector<16x1xf32>
    %133 = vector.broadcast %132 : vector<16x1xf32> to vector<16x32xf32>
    %134 = arith.mulf %129, %133 : vector<16x32xf32>
    %c0_40 = arith.constant 0 : index
    %c0_41 = arith.constant 0 : index
    %135 = vector.load %arg6[%c0_40, %c0_41] : memref<1x32xf32, #tpu.memory_space<vmem>>, vector<1x32xf32>
    %136 = vector.shape_cast %135 : vector<1x32xf32> to vector<32xf32>
    %137 = vector.shape_cast %136 : vector<32xf32> to vector<1x32xf32>
    %138 = vector.broadcast %137 : vector<1x32xf32> to vector<16x32xf32>
    %139 = arith.mulf %134, %138 : vector<16x32xf32>
    %c0_42 = arith.constant 0 : index
    %c0_43 = arith.constant 0 : index
    %140 = vector.load %arg7[%c0_42, %c0_43] : memref<1x32xf32, #tpu.memory_space<vmem>>, vector<1x32xf32>
    %141 = vector.shape_cast %140 : vector<1x32xf32> to vector<32xf32>
    %142 = vector.shape_cast %141 : vector<32xf32> to vector<1x32xf32>
    %143 = vector.broadcast %142 : vector<1x32xf32> to vector<16x32xf32>
    %144 = arith.addf %139, %143 : vector<16x32xf32>
    %145 = arith.truncf %144 : vector<16x32xf32> to vector<16x32xbf16>
    %c0_44 = arith.constant 0 : index
    %c0_45 = arith.constant 0 : index
    %146 = vector.load %arg8[%c0_44, %c0_45] : memref<32x64xbf16, #tpu.memory_space<vmem>>, vector<32x64xbf16>
    %cst_46 = arith.constant dense<0.000000e+00> : vector<16x64xf32>
    %147 = tpu.matmul %145, %146, %cst_46 {dimension_numbers = #tpu.dot_dimension_numbers<[1], [0], [0], [1], [0, 0, 1, 1], [], []>} : vector<16x32xbf16>, vector<32x64xbf16>, vector<16x64xf32> -> vector<16x64xf32>
    %c0_47 = arith.constant 0 : index
    %c0_48 = arith.constant 0 : index
    %148 = vector.load %arg9[%c0_47, %c0_48] : memref<1x64xf32, #tpu.memory_space<vmem>>, vector<1x64xf32>
    %149 = vector.shape_cast %148 : vector<1x64xf32> to vector<64xf32>
    %150 = vector.shape_cast %149 : vector<64xf32> to vector<1x64xf32>
    %151 = vector.broadcast %150 : vector<1x64xf32> to vector<16x64xf32>
    %152 = arith.addf %147, %151 : vector<16x64xf32>
    %cst_49 = arith.constant 0.000000e+00 : f32
    %153 = vector.broadcast %cst_49 : f32 to vector<16x64xf32>
    %154 = arith.maximumf %152, %153 : vector<16x64xf32>
    %155 = arith.truncf %154 : vector<16x64xf32> to vector<16x64xbf16>
    %c0_50 = arith.constant 0 : index
    %c0_51 = arith.constant 0 : index
    %156 = vector.load %arg10[%c0_50, %c0_51] : memref<64x32xbf16, #tpu.memory_space<vmem>>, vector<64x32xbf16>
    %cst_52 = arith.constant dense<0.000000e+00> : vector<16x32xf32>
    %157 = tpu.matmul %155, %156, %cst_52 {dimension_numbers = #tpu.dot_dimension_numbers<[1], [0], [0], [1], [0, 0, 1, 1], [], []>} : vector<16x64xbf16>, vector<64x32xbf16>, vector<16x32xf32> -> vector<16x32xf32>
    %c0_53 = arith.constant 0 : index
    %c0_54 = arith.constant 0 : index
    %158 = vector.load %arg11[%c0_53, %c0_54] : memref<1x32xf32, #tpu.memory_space<vmem>>, vector<1x32xf32>
    %159 = vector.shape_cast %158 : vector<1x32xf32> to vector<32xf32>
    %160 = vector.shape_cast %159 : vector<32xf32> to vector<1x32xf32>
    %161 = vector.broadcast %160 : vector<1x32xf32> to vector<16x32xf32>
    %162 = arith.addf %157, %161 : vector<16x32xf32>
    %163 = arith.addf %144, %162 : vector<16x32xf32>
    %cst_55 = arith.constant dense<0.000000e+00> : vector<16xf32>
    %164 = vector.multi_reduction <add>, %163, %cst_55 [1] : vector<16x32xf32> to vector<16xf32>
    %165 = vector.shape_cast %164 : vector<16xf32> to vector<16x1xf32>
    %cst_56 = arith.constant 3.200000e+01 : f32
    %166 = vector.broadcast %cst_56 : f32 to vector<16x1xf32>
    %167 = arith.divf %165, %166 : vector<16x1xf32>
    %168 = vector.broadcast %167 : vector<16x1xf32> to vector<16x32xf32>
    %169 = arith.subf %163, %168 : vector<16x32xf32>
    %170 = vector.broadcast %167 : vector<16x1xf32> to vector<16x32xf32>
    %171 = arith.subf %163, %170 : vector<16x32xf32>
    %172 = arith.mulf %169, %171 : vector<16x32xf32>
    %cst_57 = arith.constant dense<0.000000e+00> : vector<16xf32>
    %173 = vector.multi_reduction <add>, %172, %cst_57 [1] : vector<16x32xf32> to vector<16xf32>
    %174 = vector.shape_cast %173 : vector<16xf32> to vector<16x1xf32>
    %cst_58 = arith.constant 3.200000e+01 : f32
    %175 = vector.broadcast %cst_58 : f32 to vector<16x1xf32>
    %176 = arith.divf %174, %175 : vector<16x1xf32>
    %177 = vector.broadcast %167 : vector<16x1xf32> to vector<16x32xf32>
    %178 = arith.subf %163, %177 : vector<16x32xf32>
    %cst_59 = arith.constant 9.99999974E-6 : f32
    %179 = vector.broadcast %cst_59 : f32 to vector<16x1xf32>
    %180 = arith.addf %176, %179 : vector<16x1xf32>
    %181 = math.rsqrt %180 : vector<16x1xf32>
    %182 = vector.broadcast %181 : vector<16x1xf32> to vector<16x32xf32>
    %183 = arith.mulf %178, %182 : vector<16x32xf32>
    %c0_60 = arith.constant 0 : index
    %c0_61 = arith.constant 0 : index
    %184 = vector.load %arg12[%c0_60, %c0_61] : memref<1x32xf32, #tpu.memory_space<vmem>>, vector<1x32xf32>
    %185 = vector.shape_cast %184 : vector<1x32xf32> to vector<32xf32>
    %186 = vector.shape_cast %185 : vector<32xf32> to vector<1x32xf32>
    %187 = vector.broadcast %186 : vector<1x32xf32> to vector<16x32xf32>
    %188 = arith.mulf %183, %187 : vector<16x32xf32>
    %c0_62 = arith.constant 0 : index
    %c0_63 = arith.constant 0 : index
    %189 = vector.load %arg13[%c0_62, %c0_63] : memref<1x32xf32, #tpu.memory_space<vmem>>, vector<1x32xf32>
    %190 = vector.shape_cast %189 : vector<1x32xf32> to vector<32xf32>
    %191 = vector.shape_cast %190 : vector<32xf32> to vector<1x32xf32>
    %192 = vector.broadcast %191 : vector<1x32xf32> to vector<16x32xf32>
    %193 = arith.addf %188, %192 : vector<16x32xf32>
    %194 = vector.shape_cast %193 : vector<16x32xf32> to vector<2x8x32xf32>
    %c0_64 = arith.constant 0 : index
    %c0_65 = arith.constant 0 : index
    %c0_66 = arith.constant 0 : index
    %195 = vector.load %arg14[%c0_64, %c0_65, %c0_66] : memref<2x8x32xf32, #tpu.memory_space<vmem>>, vector<2x8x32xf32>
    tpu.vector_store %arg14[%c0_64, %c0_65, %c0_66], %194 {strides = array<i32>} : memref<2x8x32xf32, #tpu.memory_space<vmem>>, vector<2x8x32xf32>,
    return
  }
  func.func @transform_0(%arg0: i32) -> (i32, i32, i32) {
    %c0_i32 = arith.constant 0 : i32
    %c0_i32_0 = arith.constant 0 : i32
    %c0_i32_1 = arith.constant 0 : i32
    return %arg0, %c0_i32, %c0_i32_0 : i32, i32, i32
  }
  func.func @transform_1(%arg0: i32) -> (i32, i32) {
    %c0_i32 = arith.constant 0 : i32
    %c0_i32_0 = arith.constant 0 : i32
    %c0_i32_1 = arith.constant 0 : i32
    return %c0_i32, %c0_i32_0 : i32, i32
  }
  func.func @transform_2(%arg0: i32) -> (i32, i32) {
    %c0_i32 = arith.constant 0 : i32
    %c0_i32_0 = arith.constant 0 : i32
    %c0_i32_1 = arith.constant 0 : i32
    return %c0_i32, %c0_i32_0 : i32, i32
  }
  func.func @transform_3(%arg0: i32) -> (i32, i32) {
    %c0_i32 = arith.constant 0 : i32
    %c0_i32_0 = arith.constant 0 : i32
    %c0_i32_1 = arith.constant 0 : i32
    return %c0_i32, %c0_i32_0 : i32, i32
  }
  func.func @transform_4(%arg0: i32) -> (i32, i32) {
    %c0_i32 = arith.constant 0 : i32
    %c0_i32_0 = arith.constant 0 : i32
    %c0_i32_1 = arith.constant 0 : i32
    return %c0_i32, %c0_i32_0 : i32, i32
  }
  func.func @transform_5(%arg0: i32) -> (i32, i32) {
    %c0_i32 = arith.constant 0 : i32
    %c0_i32_0 = arith.constant 0 : i32
    %c0_i32_1 = arith.constant 0 : i32
    return %c0_i32, %c0_i32_0 : i32, i32
  }
  func.func @transform_6(%arg0: i32) -> (i32, i32) {
    %c0_i32 = arith.constant 0 : i32
    %c0_i32_0 = arith.constant 0 : i32
    %c0_i32_1 = arith.constant 0 : i32
    return %c0_i32, %c0_i32_0 : i32, i32
  }
  func.func @transform_7(%arg0: i32) -> (i32, i32) {
    %c0_i32 = arith.constant 0 : i32
    %c0_i32_0 = arith.constant 0 : i32
    %c0_i32_1 = arith.constant 0 : i32
    return %c0_i32, %c0_i32_0 : i32, i32
  }
  func.func @transform_8(%arg0: i32) -> (i32, i32) {
    %c0_i32 = arith.constant 0 : i32
    %c0_i32_0 = arith.constant 0 : i32
    %c0_i32_1 = arith.constant 0 : i32
    return %c0_i32, %c0_i32_0 : i32, i32
  }
  func.func @transform_9(%arg0: i32) -> (i32, i32) {
    %c0_i32 = arith.constant 0 : i32
    %c0_i32_0 = arith.constant 0 : i32
    %c0_i32_1 = arith.constant 0 : i32
    return %c0_i32, %c0_i32_0 : i32, i32
  }
  func.func @transform_10(%arg0: i32) -> (i32, i32) {
    %c0_i32 = arith.constant 0 : i32
    %c0_i32_0 = arith.constant 0 : i32
    %c0_i32_1 = arith.constant 0 : i32
    return %c0_i32, %c0_i32_0 : i32, i32
  }
  func.func @transform_11(%arg0: i32) -> (i32, i32) {
    %c0_i32 = arith.constant 0 : i32
    %c0_i32_0 = arith.constant 0 : i32
    %c0_i32_1 = arith.constant 0 : i32
    return %c0_i32, %c0_i32_0 : i32, i32
  }
  func.func @transform_12(%arg0: i32) -> (i32, i32) {
    %c0_i32 = arith.constant 0 : i32
    %c0_i32_0 = arith.constant 0 : i32
    %c0_i32_1 = arith.constant 0 : i32
    return %c0_i32, %c0_i32_0 : i32, i32
  }
  func.func @transform_13(%arg0: i32) -> (i32, i32, i32) {
    %c0_i32 = arith.constant 0 : i32
    %c0_i32_0 = arith.constant 0 : i32
    %c0_i32_1 = arith.constant 0 : i32
    return %arg0, %c0_i32, %c0_i32_0 : i32, i32, i32
  }
}

module attributes {stable_mosaic.version = 11 : i64} {
  func.func @_encoder_layer_kernel(%arg0: i32, %arg1: memref<2x8x32xf32, #tpu.memory_space<vmem>>, %arg2: memref<32x96xbf16, #tpu.memory_space<vmem>>, %arg3: memref<1x96xf32, #tpu.memory_space<vmem>>, %arg4: memref<32x32xbf16, #tpu.memory_space<vmem>>, %arg5: memref<1x32xf32, #tpu.memory_space<vmem>>, %arg6: memref<1x32xf32, #tpu.memory_space<vmem>>, %arg7: memref<1x32xf32, #tpu.memory_space<vmem>>, %arg8: memref<32x64xbf16, #tpu.memory_space<vmem>>, %arg9: memref<1x64xf32, #tpu.memory_space<vmem>>, %arg10: memref<64x32xbf16, #tpu.memory_space<vmem>>, %arg11: memref<1x32xf32, #tpu.memory_space<vmem>>, %arg12: memref<1x32xf32, #tpu.memory_space<vmem>>, %arg13: memref<1x32xf32, #tpu.memory_space<vmem>>, %arg14: memref<2x8x32xf32, #tpu.memory_space<vmem>>, %arg15: memref<16x32xbf16, #tpu.memory_space<vmem>>) attributes {dimension_semantics = [#tpu.dimension_semantics<parallel>], iteration_bounds = array<i64: 2>, scalar_prefetch = 0 : i64, scratch_operands = 1 : i64, tpu.core_type = #tpu.core_type<tc>, window_params = [{transform_indices = @transform_0, window_bounds = array<i64: 2, 8, 32>}, {pipeline_mode = #tpu.pipeline_mode<synchronous>, transform_indices = @transform_1, window_bounds = array<i64: 32, 96>}, {pipeline_mode = #tpu.pipeline_mode<synchronous>, transform_indices = @transform_2, window_bounds = array<i64: 1, 96>}, {pipeline_mode = #tpu.pipeline_mode<synchronous>, transform_indices = @transform_3, window_bounds = array<i64: 32, 32>}, {pipeline_mode = #tpu.pipeline_mode<synchronous>, transform_indices = @transform_4, window_bounds = array<i64: 1, 32>}, {pipeline_mode = #tpu.pipeline_mode<synchronous>, transform_indices = @transform_5, window_bounds = array<i64: 1, 32>}, {pipeline_mode = #tpu.pipeline_mode<synchronous>, transform_indices = @transform_6, window_bounds = array<i64: 1, 32>}, {pipeline_mode = #tpu.pipeline_mode<synchronous>, transform_indices = @transform_7, window_bounds = array<i64: 32, 64>}, {pipeline_mode = #tpu.pipeline_mode<synchronous>, transform_indices = @transform_8, window_bounds = array<i64: 1, 64>}, {pipeline_mode = #tpu.pipeline_mode<synchronous>, transform_indices = @transform_9, window_bounds = array<i64: 64, 32>}, {pipeline_mode = #tpu.pipeline_mode<synchronous>, transform_indices = @transform_10, window_bounds = array<i64: 1, 32>}, {pipeline_mode = #tpu.pipeline_mode<synchronous>, transform_indices = @transform_11, window_bounds = array<i64: 1, 32>}, {pipeline_mode = #tpu.pipeline_mode<synchronous>, transform_indices = @transform_12, window_bounds = array<i64: 1, 32>}, {transform_indices = @transform_13, window_bounds = array<i64: 2, 8, 32>}]} {
    %c0 = arith.constant 0 : index
    %c0_0 = arith.constant 0 : index
    %c0_1 = arith.constant 0 : index
    %0 = vector.load %arg1[%c0, %c0_0, %c0_1] : memref<2x8x32xf32, #tpu.memory_space<vmem>>, vector<2x8x32xf32>
    %1 = vector.shape_cast %0 : vector<2x8x32xf32> to vector<16x32xf32>
    %2 = arith.truncf %1 : vector<16x32xf32> to vector<16x32xbf16>
    %c0_2 = arith.constant 0 : index
    %c0_3 = arith.constant 0 : index
    %3 = vector.load %arg2[%c0_2, %c0_3] : memref<32x96xbf16, #tpu.memory_space<vmem>>, vector<32x96xbf16>
    %cst = arith.constant dense<0.000000e+00> : vector<16x96xf32>
    %4 = tpu.matmul %2, %3, %cst {dimension_numbers = #tpu.dot_dimension_numbers<[1], [0], [0], [1], [0, 0, 1, 1], [], []>} : vector<16x32xbf16>, vector<32x96xbf16>, vector<16x96xf32> -> vector<16x96xf32>
    %c0_4 = arith.constant 0 : index
    %c0_5 = arith.constant 0 : index
    %5 = vector.load %arg3[%c0_4, %c0_5] : memref<1x96xf32, #tpu.memory_space<vmem>>, vector<1x96xf32>
    %6 = vector.shape_cast %5 : vector<1x96xf32> to vector<96xf32>
    %7 = vector.shape_cast %6 : vector<96xf32> to vector<1x96xf32>
    %8 = vector.broadcast %7 : vector<1x96xf32> to vector<16x96xf32>
    %9 = arith.addf %4, %8 : vector<16x96xf32>
    %10 = vector.extract_strided_slice %9 {offsets = [0, 0], sizes = [16, 32], strides = [1, 1]} : vector<16x96xf32> to vector<16x32xf32>
    %cst_6 = arith.constant 0.353553385 : f32
    %11 = vector.broadcast %cst_6 : f32 to vector<16x32xf32>
    %12 = arith.mulf %10, %11 : vector<16x32xf32>
    %13 = vector.shape_cast %12 : vector<16x32xf32> to vector<2x8x32xf32>
    %14 = vector.extract_strided_slice %9 {offsets = [0, 32], sizes = [16, 32], strides = [1, 1]} : vector<16x96xf32> to vector<16x32xf32>
    %15 = vector.shape_cast %14 : vector<16x32xf32> to vector<2x8x32xf32>
    %16 = vector.extract_strided_slice %9 {offsets = [0, 64], sizes = [16, 32], strides = [1, 1]} : vector<16x96xf32> to vector<16x32xf32>
    %17 = vector.shape_cast %16 : vector<16x32xf32> to vector<2x8x32xf32>
    %18 = vector.extract_strided_slice %13 {offsets = [0, 0, 0], sizes = [2, 8, 8], strides = [1, 1, 1]} : vector<2x8x32xf32> to vector<2x8x8xf32>
    %19 = arith.truncf %18 : vector<2x8x8xf32> to vector<2x8x8xbf16>
    %20 = vector.extract_strided_slice %15 {offsets = [0, 0, 0], sizes = [2, 8, 8], strides = [1, 1, 1]} : vector<2x8x32xf32> to vector<2x8x8xf32>
    %21 = arith.truncf %20 : vector<2x8x8xf32> to vector<2x8x8xbf16>
    %22 = vector.extract_strided_slice %17 {offsets = [0, 0, 0], sizes = [2, 8, 8], strides = [1, 1, 1]} : vector<2x8x32xf32> to vector<2x8x8xf32>
    %23 = arith.truncf %22 : vector<2x8x8xf32> to vector<2x8x8xbf16>
    "tpu.trace_start"() <{level = 10 : i32, message = "bqd,bkd->bqk"}> : () -> ()
    %cst_7 = arith.constant dense<0.000000e+00> : vector<2x8x8xf32>
    %24 = tpu.matmul %19, %21, %cst_7 {dimension_numbers = #tpu.dot_dimension_numbers<[2], [2], [1], [1], [0, 0, 0, 1, 1, 1], [0], [0]>} : vector<2x8x8xbf16>, vector<2x8x8xbf16>, vector<2x8x8xf32> -> vector<2x8x8xf32>
    "tpu.trace_stop"() : () -> ()
    %cst_8 = arith.constant dense<0xFF800000> : vector<2x8xf32>
    %25 = vector.multi_reduction <maximumf>, %24, %cst_8 [2] : vector<2x8x8xf32> to vector<2x8xf32>
    %26 = vector.shape_cast %25 : vector<2x8xf32> to vector<2x8x1xf32>
    %27 = vector.broadcast %26 : vector<2x8x1xf32> to vector<2x8x8xf32>
    %28 = arith.subf %24, %27 : vector<2x8x8xf32>
    %29 = math.exp %28 : vector<2x8x8xf32>
    %cst_9 = arith.constant dense<0.000000e+00> : vector<2x8xf32>
    %30 = vector.multi_reduction <add>, %29, %cst_9 [2] : vector<2x8x8xf32> to vector<2x8xf32>
    %31 = vector.shape_cast %30 : vector<2x8xf32> to vector<2x8x1xf32>
    %32 = tpu.reciprocal %31 {approx = true} : vector<2x8x1xf32> -> vector<2x8x1xf32>
    %33 = vector.broadcast %32 : vector<2x8x1xf32> to vector<2x8x8xf32>
    %34 = arith.mulf %29, %33 : vector<2x8x8xf32>
    %35 = arith.truncf %34 : vector<2x8x8xf32> to vector<2x8x8xbf16>
    "tpu.trace_start"() <{level = 10 : i32, message = "bqk,bkd->bqd"}> : () -> ()
    %cst_10 = arith.constant dense<0.000000e+00> : vector<2x8x8xf32>
    %36 = tpu.matmul %35, %23, %cst_10 {dimension_numbers = #tpu.dot_dimension_numbers<[2], [1], [1], [2], [0, 0, 0, 1, 1, 2], [0], [0]>} : vector<2x8x8xbf16>, vector<2x8x8xbf16>, vector<2x8x8xf32> -> vector<2x8x8xf32>
    "tpu.trace_stop"() : () -> ()
    %37 = vector.shape_cast %36 : vector<2x8x8xf32> to vector<16x8xf32>
    %38 = arith.truncf %37 : vector<16x8xf32> to vector<16x8xbf16>
    %c0_11 = arith.constant 0 : index
    %c0_12 = arith.constant 0 : index
    %39 = vector.load %arg15[%c0_11, %c0_12] : memref<16x32xbf16, #tpu.memory_space<vmem>>, vector<16x8xbf16>
    tpu.vector_store %arg15[%c0_11, %c0_12], %38 {strides = array<i32>} : memref<16x32xbf16, #tpu.memory_space<vmem>>, vector<16x8xbf16>,
    %40 = vector.extract_strided_slice %13 {offsets = [0, 0, 8], sizes = [2, 8, 8], strides = [1, 1, 1]} : vector<2x8x32xf32> to vector<2x8x8xf32>
    %41 = arith.truncf %40 : vector<2x8x8xf32> to vector<2x8x8xbf16>
    %42 = vector.extract_strided_slice %15 {offsets = [0, 0, 8], sizes = [2, 8, 8], strides = [1, 1, 1]} : vector<2x8x32xf32> to vector<2x8x8xf32>
    %43 = arith.truncf %42 : vector<2x8x8xf32> to vector<2x8x8xbf16>
    %44 = vector.extract_strided_slice %17 {offsets = [0, 0, 8], sizes = [2, 8, 8], strides = [1, 1, 1]} : vector<2x8x32xf32> to vector<2x8x8xf32>
    %45 = arith.truncf %44 : vector<2x8x8xf32> to vector<2x8x8xbf16>
    "tpu.trace_start"() <{level = 10 : i32, message = "bqd,bkd->bqk"}> : () -> ()
    %cst_13 = arith.constant dense<0.000000e+00> : vector<2x8x8xf32>
    %46 = tpu.matmul %41, %43, %cst_13 {dimension_numbers = #tpu.dot_dimension_numbers<[2], [2], [1], [1], [0, 0, 0, 1, 1, 1], [0], [0]>} : vector<2x8x8xbf16>, vector<2x8x8xbf16>, vector<2x8x8xf32> -> vector<2x8x8xf32>
    "tpu.trace_stop"() : () -> ()
    %cst_14 = arith.constant dense<0xFF800000> : vector<2x8xf32>
    %47 = vector.multi_reduction <maximumf>, %46, %cst_14 [2] : vector<2x8x8xf32> to vector<2x8xf32>
    %48 = vector.shape_cast %47 : vector<2x8xf32> to vector<2x8x1xf32>
    %49 = vector.broadcast %48 : vector<2x8x1xf32> to vector<2x8x8xf32>
    %50 = arith.subf %46, %49 : vector<2x8x8xf32>
    %51 = math.exp %50 : vector<2x8x8xf32>
    %cst_15 = arith.constant dense<0.000000e+00> : vector<2x8xf32>
    %52 = vector.multi_reduction <add>, %51, %cst_15 [2] : vector<2x8x8xf32> to vector<2x8xf32>
    %53 = vector.shape_cast %52 : vector<2x8xf32> to vector<2x8x1xf32>
    %54 = tpu.reciprocal %53 {approx = true} : vector<2x8x1xf32> -> vector<2x8x1xf32>
    %55 = vector.broadcast %54 : vector<2x8x1xf32> to vector<2x8x8xf32>
    %56 = arith.mulf %51, %55 : vector<2x8x8xf32>
    %57 = arith.truncf %56 : vector<2x8x8xf32> to vector<2x8x8xbf16>
    "tpu.trace_start"() <{level = 10 : i32, message = "bqk,bkd->bqd"}> : () -> ()
    %cst_16 = arith.constant dense<0.000000e+00> : vector<2x8x8xf32>
    %58 = tpu.matmul %57, %45, %cst_16 {dimension_numbers = #tpu.dot_dimension_numbers<[2], [1], [1], [2], [0, 0, 0, 1, 1, 2], [0], [0]>} : vector<2x8x8xbf16>, vector<2x8x8xbf16>, vector<2x8x8xf32> -> vector<2x8x8xf32>
    "tpu.trace_stop"() : () -> ()
    %59 = vector.shape_cast %58 : vector<2x8x8xf32> to vector<16x8xf32>
    %60 = arith.truncf %59 : vector<16x8xf32> to vector<16x8xbf16>
    %c0_17 = arith.constant 0 : index
    %c8 = arith.constant 8 : index
    %61 = vector.load %arg15[%c0_17, %c8] : memref<16x32xbf16, #tpu.memory_space<vmem>>, vector<16x8xbf16>
    tpu.vector_store %arg15[%c0_17, %c8], %60 {strides = array<i32>} : memref<16x32xbf16, #tpu.memory_space<vmem>>, vector<16x8xbf16>,
    %62 = vector.extract_strided_slice %13 {offsets = [0, 0, 16], sizes = [2, 8, 8], strides = [1, 1, 1]} : vector<2x8x32xf32> to vector<2x8x8xf32>
    %63 = arith.truncf %62 : vector<2x8x8xf32> to vector<2x8x8xbf16>
    %64 = vector.extract_strided_slice %15 {offsets = [0, 0, 16], sizes = [2, 8, 8], strides = [1, 1, 1]} : vector<2x8x32xf32> to vector<2x8x8xf32>
    %65 = arith.truncf %64 : vector<2x8x8xf32> to vector<2x8x8xbf16>
    %66 = vector.extract_strided_slice %17 {offsets = [0, 0, 16], sizes = [2, 8, 8], strides = [1, 1, 1]} : vector<2x8x32xf32> to vector<2x8x8xf32>
    %67 = arith.truncf %66 : vector<2x8x8xf32> to vector<2x8x8xbf16>
    "tpu.trace_start"() <{level = 10 : i32, message = "bqd,bkd->bqk"}> : () -> ()
    %cst_18 = arith.constant dense<0.000000e+00> : vector<2x8x8xf32>
    %68 = tpu.matmul %63, %65, %cst_18 {dimension_numbers = #tpu.dot_dimension_numbers<[2], [2], [1], [1], [0, 0, 0, 1, 1, 1], [0], [0]>} : vector<2x8x8xbf16>, vector<2x8x8xbf16>, vector<2x8x8xf32> -> vector<2x8x8xf32>
    "tpu.trace_stop"() : () -> ()
    %cst_19 = arith.constant dense<0xFF800000> : vector<2x8xf32>
    %69 = vector.multi_reduction <maximumf>, %68, %cst_19 [2] : vector<2x8x8xf32> to vector<2x8xf32>
    %70 = vector.shape_cast %69 : vector<2x8xf32> to vector<2x8x1xf32>
    %71 = vector.broadcast %70 : vector<2x8x1xf32> to vector<2x8x8xf32>
    %72 = arith.subf %68, %71 : vector<2x8x8xf32>
    %73 = math.exp %72 : vector<2x8x8xf32>
    %cst_20 = arith.constant dense<0.000000e+00> : vector<2x8xf32>
    %74 = vector.multi_reduction <add>, %73, %cst_20 [2] : vector<2x8x8xf32> to vector<2x8xf32>
    %75 = vector.shape_cast %74 : vector<2x8xf32> to vector<2x8x1xf32>
    %76 = tpu.reciprocal %75 {approx = true} : vector<2x8x1xf32> -> vector<2x8x1xf32>
    %77 = vector.broadcast %76 : vector<2x8x1xf32> to vector<2x8x8xf32>
    %78 = arith.mulf %73, %77 : vector<2x8x8xf32>
    %79 = arith.truncf %78 : vector<2x8x8xf32> to vector<2x8x8xbf16>
    "tpu.trace_start"() <{level = 10 : i32, message = "bqk,bkd->bqd"}> : () -> ()
    %cst_21 = arith.constant dense<0.000000e+00> : vector<2x8x8xf32>
    %80 = tpu.matmul %79, %67, %cst_21 {dimension_numbers = #tpu.dot_dimension_numbers<[2], [1], [1], [2], [0, 0, 0, 1, 1, 2], [0], [0]>} : vector<2x8x8xbf16>, vector<2x8x8xbf16>, vector<2x8x8xf32> -> vector<2x8x8xf32>
    "tpu.trace_stop"() : () -> ()
    %81 = vector.shape_cast %80 : vector<2x8x8xf32> to vector<16x8xf32>
    %82 = arith.truncf %81 : vector<16x8xf32> to vector<16x8xbf16>
    %c0_22 = arith.constant 0 : index
    %c16 = arith.constant 16 : index
    %83 = vector.load %arg15[%c0_22, %c16] : memref<16x32xbf16, #tpu.memory_space<vmem>>, vector<16x8xbf16>
    tpu.vector_store %arg15[%c0_22, %c16], %82 {strides = array<i32>} : memref<16x32xbf16, #tpu.memory_space<vmem>>, vector<16x8xbf16>,
    %84 = vector.extract_strided_slice %13 {offsets = [0, 0, 24], sizes = [2, 8, 8], strides = [1, 1, 1]} : vector<2x8x32xf32> to vector<2x8x8xf32>
    %85 = arith.truncf %84 : vector<2x8x8xf32> to vector<2x8x8xbf16>
    %86 = vector.extract_strided_slice %15 {offsets = [0, 0, 24], sizes = [2, 8, 8], strides = [1, 1, 1]} : vector<2x8x32xf32> to vector<2x8x8xf32>
    %87 = arith.truncf %86 : vector<2x8x8xf32> to vector<2x8x8xbf16>
    %88 = vector.extract_strided_slice %17 {offsets = [0, 0, 24], sizes = [2, 8, 8], strides = [1, 1, 1]} : vector<2x8x32xf32> to vector<2x8x8xf32>
    %89 = arith.truncf %88 : vector<2x8x8xf32> to vector<2x8x8xbf16>
    "tpu.trace_start"() <{level = 10 : i32, message = "bqd,bkd->bqk"}> : () -> ()
    %cst_23 = arith.constant dense<0.000000e+00> : vector<2x8x8xf32>
    %90 = tpu.matmul %85, %87, %cst_23 {dimension_numbers = #tpu.dot_dimension_numbers<[2], [2], [1], [1], [0, 0, 0, 1, 1, 1], [0], [0]>} : vector<2x8x8xbf16>, vector<2x8x8xbf16>, vector<2x8x8xf32> -> vector<2x8x8xf32>
    "tpu.trace_stop"() : () -> ()
    %cst_24 = arith.constant dense<0xFF800000> : vector<2x8xf32>
    %91 = vector.multi_reduction <maximumf>, %90, %cst_24 [2] : vector<2x8x8xf32> to vector<2x8xf32>
    %92 = vector.shape_cast %91 : vector<2x8xf32> to vector<2x8x1xf32>
    %93 = vector.broadcast %92 : vector<2x8x1xf32> to vector<2x8x8xf32>
    %94 = arith.subf %90, %93 : vector<2x8x8xf32>
    %95 = math.exp %94 : vector<2x8x8xf32>
    %cst_25 = arith.constant dense<0.000000e+00> : vector<2x8xf32>
    %96 = vector.multi_reduction <add>, %95, %cst_25 [2] : vector<2x8x8xf32> to vector<2x8xf32>
    %97 = vector.shape_cast %96 : vector<2x8xf32> to vector<2x8x1xf32>
    %98 = tpu.reciprocal %97 {approx = true} : vector<2x8x1xf32> -> vector<2x8x1xf32>
    %99 = vector.broadcast %98 : vector<2x8x1xf32> to vector<2x8x8xf32>
    %100 = arith.mulf %95, %99 : vector<2x8x8xf32>
    %101 = arith.truncf %100 : vector<2x8x8xf32> to vector<2x8x8xbf16>
    "tpu.trace_start"() <{level = 10 : i32, message = "bqk,bkd->bqd"}> : () -> ()
    %cst_26 = arith.constant dense<0.000000e+00> : vector<2x8x8xf32>
    %102 = tpu.matmul %101, %89, %cst_26 {dimension_numbers = #tpu.dot_dimension_numbers<[2], [1], [1], [2], [0, 0, 0, 1, 1, 2], [0], [0]>} : vector<2x8x8xbf16>, vector<2x8x8xbf16>, vector<2x8x8xf32> -> vector<2x8x8xf32>
    "tpu.trace_stop"() : () -> ()
    %103 = vector.shape_cast %102 : vector<2x8x8xf32> to vector<16x8xf32>
    %104 = arith.truncf %103 : vector<16x8xf32> to vector<16x8xbf16>
    %c0_27 = arith.constant 0 : index
    %c24 = arith.constant 24 : index
    %105 = vector.load %arg15[%c0_27, %c24] : memref<16x32xbf16, #tpu.memory_space<vmem>>, vector<16x8xbf16>
    tpu.vector_store %arg15[%c0_27, %c24], %104 {strides = array<i32>} : memref<16x32xbf16, #tpu.memory_space<vmem>>, vector<16x8xbf16>,
    %c0_28 = arith.constant 0 : index
    %c0_29 = arith.constant 0 : index
    %106 = vector.load %arg15[%c0_28, %c0_29] : memref<16x32xbf16, #tpu.memory_space<vmem>>, vector<16x32xbf16>
    %c0_30 = arith.constant 0 : index
    %c0_31 = arith.constant 0 : index
    %107 = vector.load %arg4[%c0_30, %c0_31] : memref<32x32xbf16, #tpu.memory_space<vmem>>, vector<32x32xbf16>
    %cst_32 = arith.constant dense<0.000000e+00> : vector<16x32xf32>
    %108 = tpu.matmul %106, %107, %cst_32 {dimension_numbers = #tpu.dot_dimension_numbers<[1], [0], [0], [1], [0, 0, 1, 1], [], []>} : vector<16x32xbf16>, vector<32x32xbf16>, vector<16x32xf32> -> vector<16x32xf32>
    %c0_33 = arith.constant 0 : index
    %c0_34 = arith.constant 0 : index
    %109 = vector.load %arg5[%c0_33, %c0_34] : memref<1x32xf32, #tpu.memory_space<vmem>>, vector<1x32xf32>
    %110 = vector.shape_cast %109 : vector<1x32xf32> to vector<32xf32>
    %111 = vector.shape_cast %110 : vector<32xf32> to vector<1x32xf32>
    %112 = vector.broadcast %111 : vector<1x32xf32> to vector<16x32xf32>
    %113 = arith.addf %108, %112 : vector<16x32xf32>
    %114 = arith.addf %1, %113 : vector<16x32xf32>
    %cst_35 = arith.constant dense<0.000000e+00> : vector<16xf32>
    %115 = vector.multi_reduction <add>, %114, %cst_35 [1] : vector<16x32xf32> to vector<16xf32>
    %116 = vector.shape_cast %115 : vector<16xf32> to vector<16x1xf32>
    %cst_36 = arith.constant 3.200000e+01 : f32
    %117 = vector.broadcast %cst_36 : f32 to vector<16x1xf32>
    %118 = arith.divf %116, %117 : vector<16x1xf32>
    %119 = vector.broadcast %118 : vector<16x1xf32> to vector<16x32xf32>
    %120 = arith.subf %114, %119 : vector<16x32xf32>
    %121 = vector.broadcast %118 : vector<16x1xf32> to vector<16x32xf32>
    %122 = arith.subf %114, %121 : vector<16x32xf32>
    %123 = arith.mulf %120, %122 : vector<16x32xf32>
    %cst_37 = arith.constant dense<0.000000e+00> : vector<16xf32>
    %124 = vector.multi_reduction <add>, %123, %cst_37 [1] : vector<16x32xf32> to vector<16xf32>
    %125 = vector.shape_cast %124 : vector<16xf32> to vector<16x1xf32>
    %cst_38 = arith.constant 3.200000e+01 : f32
    %126 = vector.broadcast %cst_38 : f32 to vector<16x1xf32>
    %127 = arith.divf %125, %126 : vector<16x1xf32>
    %128 = vector.broadcast %118 : vector<16x1xf32> to vector<16x32xf32>
    %129 = arith.subf %114, %128 : vector<16x32xf32>
    %cst_39 = arith.constant 9.99999974E-6 : f32
    %130 = vector.broadcast %cst_39 : f32 to vector<16x1xf32>
    %131 = arith.addf %127, %130 : vector<16x1xf32>
    %132 = math.rsqrt %131 : vector<16x1xf32>
    %133 = vector.broadcast %132 : vector<16x1xf32> to vector<16x32xf32>
    %134 = arith.mulf %129, %133 : vector<16x32xf32>
    %c0_40 = arith.constant 0 : index
    %c0_41 = arith.constant 0 : index
    %135 = vector.load %arg6[%c0_40, %c0_41] : memref<1x32xf32, #tpu.memory_space<vmem>>, vector<1x32xf32>
    %136 = vector.shape_cast %135 : vector<1x32xf32> to vector<32xf32>
    %137 = vector.shape_cast %136 : vector<32xf32> to vector<1x32xf32>
    %138 = vector.broadcast %137 : vector<1x32xf32> to vector<16x32xf32>
    %139 = arith.mulf %134, %138 : vector<16x32xf32>
    %c0_42 = arith.constant 0 : index
    %c0_43 = arith.constant 0 : index
    %140 = vector.load %arg7[%c0_42, %c0_43] : memref<1x32xf32, #tpu.memory_space<vmem>>, vector<1x32xf32>
    %141 = vector.shape_cast %140 : vector<1x32xf32> to vector<32xf32>
    %142 = vector.shape_cast %141 : vector<32xf32> to vector<1x32xf32>
    %143 = vector.broadcast %142 : vector<1x32xf32> to vector<16x32xf32>
    %144 = arith.addf %139, %143 : vector<16x32xf32>
    %145 = arith.truncf %144 : vector<16x32xf32> to vector<16x32xbf16>
    %c0_44 = arith.constant 0 : index
    %c0_45 = arith.constant 0 : index
    %146 = vector.load %arg8[%c0_44, %c0_45] : memref<32x64xbf16, #tpu.memory_space<vmem>>, vector<32x64xbf16>
    %cst_46 = arith.constant dense<0.000000e+00> : vector<16x64xf32>
    %147 = tpu.matmul %145, %146, %cst_46 {dimension_numbers = #tpu.dot_dimension_numbers<[1], [0], [0], [1], [0, 0, 1, 1], [], []>} : vector<16x32xbf16>, vector<32x64xbf16>, vector<16x64xf32> -> vector<16x64xf32>
    %c0_47 = arith.constant 0 : index
    %c0_48 = arith.constant 0 : index
    %148 = vector.load %arg9[%c0_47, %c0_48] : memref<1x64xf32, #tpu.memory_space<vmem>>, vector<1x64xf32>
    %149 = vector.shape_cast %148 : vector<1x64xf32> to vector<64xf32>
    %150 = vector.shape_cast %149 : vector<64xf32> to vector<1x64xf32>
    %151 = vector.broadcast %150 : vector<1x64xf32> to vector<16x64xf32>
    %152 = arith.addf %147, %151 : vector<16x64xf32>
    %cst_49 = arith.constant 0.000000e+00 : f32
    %153 = vector.broadcast %cst_49 : f32 to vector<16x64xf32>
    %154 = arith.maximumf %152, %153 : vector<16x64xf32>
    %155 = arith.truncf %154 : vector<16x64xf32> to vector<16x64xbf16>
    %c0_50 = arith.constant 0 : index
    %c0_51 = arith.constant 0 : index
    %156 = vector.load %arg10[%c0_50, %c0_51] : memref<64x32xbf16, #tpu.memory_space<vmem>>, vector<64x32xbf16>
    %cst_52 = arith.constant dense<0.000000e+00> : vector<16x32xf32>
    %157 = tpu.matmul %155, %156, %cst_52 {dimension_numbers = #tpu.dot_dimension_numbers<[1], [0], [0], [1], [0, 0, 1, 1], [], []>} : vector<16x64xbf16>, vector<64x32xbf16>, vector<16x32xf32> -> vector<16x32xf32>
    %c0_53 = arith.constant 0 : index
    %c0_54 = arith.constant 0 : index
    %158 = vector.load %arg11[%c0_53, %c0_54] : memref<1x32xf32, #tpu.memory_space<vmem>>, vector<1x32xf32>
    %159 = vector.shape_cast %158 : vector<1x32xf32> to vector<32xf32>
    %160 = vector.shape_cast %159 : vector<32xf32> to vector<1x32xf32>
    %161 = vector.broadcast %160 : vector<1x32xf32> to vector<16x32xf32>
    %162 = arith.addf %157, %161 : vector<16x32xf32>
    %163 = arith.addf %144, %162 : vector<16x32xf32>
    %cst_55 = arith.constant dense<0.000000e+00> : vector<16xf32>
    %164 = vector.multi_reduction <add>, %163, %cst_55 [1] : vector<16x32xf32> to vector<16xf32>
    %165 = vector.shape_cast %164 : vector<16xf32> to vector<16x1xf32>
    %cst_56 = arith.constant 3.200000e+01 : f32
    %166 = vector.broadcast %cst_56 : f32 to vector<16x1xf32>
    %167 = arith.divf %165, %166 : vector<16x1xf32>
    %168 = vector.broadcast %167 : vector<16x1xf32> to vector<16x32xf32>
    %169 = arith.subf %163, %168 : vector<16x32xf32>
    %170 = vector.broadcast %167 : vector<16x1xf32> to vector<16x32xf32>
    %171 = arith.subf %163, %170 : vector<16x32xf32>
    %172 = arith.mulf %169, %171 : vector<16x32xf32>
    %cst_57 = arith.constant dense<0.000000e+00> : vector<16xf32>
    %173 = vector.multi_reduction <add>, %172, %cst_57 [1] : vector<16x32xf32> to vector<16xf32>
    %174 = vector.shape_cast %173 : vector<16xf32> to vector<16x1xf32>
    %cst_58 = arith.constant 3.200000e+01 : f32
    %175 = vector.broadcast %cst_58 : f32 to vector<16x1xf32>
    %176 = arith.divf %174, %175 : vector<16x1xf32>
    %177 = vector.broadcast %167 : vector<16x1xf32> to vector<16x32xf32>
    %178 = arith.subf %163, %177 : vector<16x32xf32>
    %cst_59 = arith.constant 9.99999974E-6 : f32
    %179 = vector.broadcast %cst_59 : f32 to vector<16x1xf32>
    %180 = arith.addf %176, %179 : vector<16x1xf32>
    %181 = math.rsqrt %180 : vector<16x1xf32>
    %182 = vector.broadcast %181 : vector<16x1xf32> to vector<16x32xf32>
    %183 = arith.mulf %178, %182 : vector<16x32xf32>
    %c0_60 = arith.constant 0 : index
    %c0_61 = arith.constant 0 : index
    %184 = vector.load %arg12[%c0_60, %c0_61] : memref<1x32xf32, #tpu.memory_space<vmem>>, vector<1x32xf32>
    %185 = vector.shape_cast %184 : vector<1x32xf32> to vector<32xf32>
    %186 = vector.shape_cast %185 : vector<32xf32> to vector<1x32xf32>
    %187 = vector.broadcast %186 : vector<1x32xf32> to vector<16x32xf32>
    %188 = arith.mulf %183, %187 : vector<16x32xf32>
    %c0_62 = arith.constant 0 : index
    %c0_63 = arith.constant 0 : index
    %189 = vector.load %arg13[%c0_62, %c0_63] : memref<1x32xf32, #tpu.memory_space<vmem>>, vector<1x32xf32>
    %190 = vector.shape_cast %189 : vector<1x32xf32> to vector<32xf32>
    %191 = vector.shape_cast %190 : vector<32xf32> to vector<1x32xf32>
    %192 = vector.broadcast %191 : vector<1x32xf32> to vector<16x32xf32>
    %193 = arith.addf %188, %192 : vector<16x32xf32>
    %194 = vector.shape_cast %193 : vector<16x32xf32> to vector<2x8x32xf32>
    %c0_64 = arith.constant 0 : index
    %c0_65 = arith.constant 0 : index
    %c0_66 = arith.constant 0 : index
    %195 = vector.load %arg14[%c0_64, %c0_65, %c0_66] : memref<2x8x32xf32, #tpu.memory_space<vmem>>, vector<2x8x32xf32>
    tpu.vector_store %arg14[%c0_64, %c0_65, %c0_66], %194 {strides = array<i32>} : memref<2x8x32xf32, #tpu.memory_space<vmem>>, vector<2x8x32xf32>,
    return
  }
  func.func @transform_0(%arg0: i32) -> (i32, i32, i32) {
    %c0_i32 = arith.constant 0 : i32
    %c0_i32_0 = arith.constant 0 : i32
    %c0_i32_1 = arith.constant 0 : i32
    return %arg0, %c0_i32, %c0_i32_0 : i32, i32, i32
  }
  func.func @transform_1(%arg0: i32) -> (i32, i32) {
    %c0_i32 = arith.constant 0 : i32
    %c0_i32_0 = arith.constant 0 : i32
    %c0_i32_1 = arith.constant 0 : i32
    return %c0_i32, %c0_i32_0 : i32, i32
  }
  func.func @transform_2(%arg0: i32) -> (i32, i32) {
    %c0_i32 = arith.constant 0 : i32
    %c0_i32_0 = arith.constant 0 : i32
    %c0_i32_1 = arith.constant 0 : i32
    return %c0_i32, %c0_i32_0 : i32, i32
  }
  func.func @transform_3(%arg0: i32) -> (i32, i32) {
    %c0_i32 = arith.constant 0 : i32
    %c0_i32_0 = arith.constant 0 : i32
    %c0_i32_1 = arith.constant 0 : i32
    return %c0_i32, %c0_i32_0 : i32, i32
  }
  func.func @transform_4(%arg0: i32) -> (i32, i32) {
    %c0_i32 = arith.constant 0 : i32
    %c0_i32_0 = arith.constant 0 : i32
    %c0_i32_1 = arith.constant 0 : i32
    return %c0_i32, %c0_i32_0 : i32, i32
  }
  func.func @transform_5(%arg0: i32) -> (i32, i32) {
    %c0_i32 = arith.constant 0 : i32
    %c0_i32_0 = arith.constant 0 : i32
    %c0_i32_1 = arith.constant 0 : i32
    return %c0_i32, %c0_i32_0 : i32, i32
  }
  func.func @transform_6(%arg0: i32) -> (i32, i32) {
    %c0_i32 = arith.constant 0 : i32
    %c0_i32_0 = arith.constant 0 : i32
    %c0_i32_1 = arith.constant 0 : i32
    return %c0_i32, %c0_i32_0 : i32, i32
  }
  func.func @transform_7(%arg0: i32) -> (i32, i32) {
    %c0_i32 = arith.constant 0 : i32
    %c0_i32_0 = arith.constant 0 : i32
    %c0_i32_1 = arith.constant 0 : i32
    return %c0_i32, %c0_i32_0 : i32, i32
  }
  func.func @transform_8(%arg0: i32) -> (i32, i32) {
    %c0_i32 = arith.constant 0 : i32
    %c0_i32_0 = arith.constant 0 : i32
    %c0_i32_1 = arith.constant 0 : i32
    return %c0_i32, %c0_i32_0 : i32, i32
  }
  func.func @transform_9(%arg0: i32) -> (i32, i32) {
    %c0_i32 = arith.constant 0 : i32
    %c0_i32_0 = arith.constant 0 : i32
    %c0_i32_1 = arith.constant 0 : i32
    return %c0_i32, %c0_i32_0 : i32, i32
  }
  func.func @transform_10(%arg0: i32) -> (i32, i32) {
    %c0_i32 = arith.constant 0 : i32
    %c0_i32_0 = arith.constant 0 : i32
    %c0_i32_1 = arith.constant 0 : i32
    return %c0_i32, %c0_i32_0 : i32, i32
  }
  func.func @transform_11(%arg0: i32) -> (i32, i32) {
    %c0_i32 = arith.constant 0 : i32
    %c0_i32_0 = arith.constant 0 : i32
    %c0_i32_1 = arith.constant 0 : i32
    return %c0_i32, %c0_i32_0 : i32, i32
  }
  func.func @transform_12(%arg0: i32) -> (i32, i32) {
    %c0_i32 = arith.constant 0 : i32
    %c0_i32_0 = arith.constant 0 : i32
    %c0_i32_1 = arith.constant 0 : i32
    return %c0_i32, %c0_i32_0 : i32, i32
  }
  func.func @transform_13(%arg0: i32) -> (i32, i32, i32) {
    %c0_i32 = arith.constant 0 : i32
    %c0_i32_0 = arith.constant 0 : i32
    %c0_i32_1 = arith.constant 0 : i32
    return %arg0, %c0_i32, %c0_i32_0 : i32, i32, i32
  }
}

</mosaic_0001>

<llo_original>
// kernel: tpu_custom_call.1
$region0: #{tpu_custom_call.1}
  #allocation0 [shape = 'u32[]', space=smem, size = 0x4, offset = 0x4, fixed_abs, tag = 'smem constant byte address 0x4 - core index']
  #allocation1 [shape = 'u32[144,128]{1,0:T(1,128)}', space=vmem, size = 0x12000, scoped, tag = 'internal scratch']
  #allocation2 [shape = 'bf16[16,32]{1,0:T(8,128)(2,1)}', space=vmem, size = 0x1000, scoped, tag = 'scratch operand']
  %s0 = inlined_call_operand.vmem [shape: f32[4,8,32], index: 0, kind: input, shape index: {}]
  %s1 = inlined_call_operand.vmem [shape: bf16[32,96], index: 1, kind: input, shape index: {}]
  %s2 = inlined_call_operand.hbm [shape: f32[1,96], index: 2, kind: input, shape index: {}]
  %s3 = inlined_call_operand.hbm [shape: bf16[32,32], index: 3, kind: input, shape index: {}]
  %s4 = inlined_call_operand.hbm [shape: f32[1,32], index: 4, kind: input, shape index: {}]
  %s5 = inlined_call_operand.hbm [shape: f32[1,32], index: 5, kind: input, shape index: {}]
  %s6 = inlined_call_operand.hbm [shape: f32[1,32], index: 6, kind: input, shape index: {}]
  %s7 = inlined_call_operand.hbm [shape: bf16[32,64], index: 7, kind: input, shape index: {}]
  %s8 = inlined_call_operand.hbm [shape: f32[1,64], index: 8, kind: input, shape index: {}]
  %s9 = inlined_call_operand.vmem [shape: bf16[64,32], index: 9, kind: input, shape index: {}]
  %s10 = inlined_call_operand.vmem [shape: f32[1,32], index: 10, kind: input, shape index: {}]
  %s11 = inlined_call_operand.vmem [shape: f32[1,32], index: 11, kind: input, shape index: {}]
  %s12 = inlined_call_operand.vmem [shape: f32[1,32], index: 12, kind: input, shape index: {}]
  %s13 = inlined_call_operand.hbm [shape: f32[4,8,32], index: 13, kind: output, shape index: {}]
  %s14 = sld [smem:[#allocation0]]
  $region113: #{tpu_custom_call.1} parent=0
    _
  %s16 = ssub.s32 1, %s14
  %s17 = scalar_select 0, %s16, %s14
  $region1: #{tpu_custom_call.1} parent=0
    #allocation3 [shape = 'u8[512]{0}', space=vmem, size = 0x400, scoped, tag = 'input window, operand 2, single buffered']
    #allocation4 [shape = 's32[2]{0}', space=sflag, size = 0x8, scoped, tag = 'scoped memory for tpu_custom_call.1']
    #allocation5 [shape = 's32[2]{0}', space=sflag, size = 0x8, scoped, tag = 'scoped memory for tpu_custom_call.1']
    #allocation6 [shape = 'u8[8192]{0}', space=vmem, size = 0x2000, scoped, tag = 'input window, operand 3, single buffered']
    #allocation7 [shape = 's32[1]{0}', space=sflag, size = 0x4, scoped, tag = 'scoped memory for tpu_custom_call.1']
    #allocation8 [shape = 'u8[512]{0}', space=vmem, size = 0x400, scoped, tag = 'input window, operand 4, single buffered']
    #allocation9 [shape = 'u8[512]{0}', space=vmem, size = 0x400, scoped, tag = 'input window, operand 5, single buffered']
    #allocation10 [shape = 's32[1]{0}', space=sflag, size = 0x4, scoped, tag = 'scoped memory for tpu_custom_call.1']
    #allocation11 [shape = 'u8[512]{0}', space=vmem, size = 0x400, scoped, tag = 'input window, operand 6, single buffered']
    #allocation12 [shape = 'u8[8192]{0}', space=vmem, size = 0x2000, scoped, tag = 'input window, operand 7, single buffered']
    #allocation13 [shape = 's32[1]{0}', space=sflag, size = 0x4, scoped, tag = 'scoped memory for tpu_custom_call.1']
    #allocation14 [shape = 'u8[512]{0}', space=vmem, size = 0x400, scoped, tag = 'input window, operand 8, single buffered']
    #allocation15 [shape = 'u8[16384]{0}', space=vmem, size = 0x4000, scoped, tag = 'output window, operand 0']
    %18 = vsyncpa [#allocation4], 0
    %19 = vsyncpa [#allocation7], 0
    %20 = vsyncpa [#allocation10], 0
    %21 = vsyncpa [#allocation13], 0
    %22 = vsyncpa [#allocation5], 0
    %s23 = scalar_lea.sflag [#allocation5], 1
    %24 = vsyncpa %s23, 0
    loop: start=0, step=1, limit=4
    $region2: #{tpu_custom_call.1} parent=1 // loop_pre_header
      _
    $region3: #{tpu_custom_call.1} parent=1 // loop_header
      %s26 = sphi 0, %s30
      %p27 = scmp.ge.s32.totalorder %s26, 4
      %s36 = sphi 0, %s38
      %s39 = sphi 0, %s36
      %s40 = sphi 0, %s39
      %s56 = sphi 0, %s40
      %s60 = sphi 0, %s60
      %s62 = sphi 0, %s60
      %s63 = sphi 0, %s62
      %s77 = sphi 0, %s63
      %s81 = sphi 0, %s81
      %s83 = sphi 0, %s81
      %s84 = sphi 0, %s83
      %s98 = sphi 0, %s84
      %s102 = sphi 0, %s102
      %s104 = sphi 0, %s102
      %s105 = sphi 0, %s104
      %s119 = sphi 0, %s105
      %s123 = sphi 0, %s123
      %s125 = sphi 0, %s123
      %s126 = sphi 0, %s125
      %s140 = sphi 0, %s126
      %s144 = sphi 0, %s144
      %s146 = sphi 0, %s144
      %s147 = sphi 0, %s146
      %s161 = sphi 0, %s147
      %s165 = sphi 0, %s165
      %s167 = sphi 0, %s165
      %s168 = sphi 0, %s167
      %s182 = sphi 0, %s168
      %s186 = sphi 0, %s186
      %s188 = sphi 0, %s186
      %s189 = sphi 0, %s188
      %s203 = sphi 0, %s189
      %s207 = sphi 0, %s207
      %s209 = sphi 0, %s207
      %s210 = sphi 0, %s209
      %s224 = sphi 0, %s210
      %s228 = sphi 0, %s228
      %s230 = sphi 0, %s228
      %s231 = sphi 0, %s230
      %s245 = sphi 0, %s231
      %s249 = sphi 0, %s249
      %s251 = sphi 0, %s249
      %s252 = sphi 0, %s251
      %s266 = sphi 0, %s252
      %s270 = sphi 0, %s270
      %s272 = sphi 0, %s270
      %s273 = sphi 0, %s272
      %s287 = sphi 0, %s273
      %s291 = sphi 0, %s291
      %s293 = sphi 0, %s291
      %s294 = sphi 0, %s293
      %s308 = sphi 0, %s294
      %s314 = sphi 0, %s316
      %s317 = sphi 0, %s314
      %s318 = sphi 0, %s317
      %s334 = sphi 0, %s318
    $region4: #{tpu_custom_call.1} parent=1 // loop_header_branch
      %29 = sbr.rel (%p27) target = $region8
    $region5: #{tpu_custom_call.1} parent=1 // loop_body
      %s31 = ssub.s32 %s26, 1
      %s32 = ssub.s32 %s26, 2
      %s33 = sadd.s32 %s26, 1
      %s34 = ssub.s32 %s26, %s33
      %p35 = scmp.eq.s32.totalorder %s34, 0
      %s37 = sadd.s32 %s36, 1
      %s38 = scalar_select %p35, %s36, %s37
      %p41 = pneg %p35
      %p42 = scmp.eq.s32.totalorder %s26, 1
      %p43 = por %p41, %p42
      %p44 = scmp.ne.s32.totalorder %s36, %s39
      %p45 = scmp.eq.s32.totalorder %s26, 0
      %p46 = por %p44, %p45
      %p47 = scmp.ne.s32.totalorder %s36, %s39
      %p48 = scmp.eq.s32.totalorder %s31, 1
      %p49 = por %p47, %p48
      %p50 = scmp.ne.s32.totalorder %s39, %s40
      %p51 = scmp.eq.s32.totalorder %s31, 0
      %p52 = por %p50, %p51
      %p53 = scmp.ne.s32.totalorder %s39, %s40
      %p54 = scmp.eq.s32.totalorder %s32, 1
      %p55 = por %p53, %p54
      %p57 = scmp.ne.s32.totalorder %s40, %s56
      %p58 = scmp.eq.s32.totalorder %s32, 0
      %p59 = por %p57, %p58
      %s61 = sadd.s32 %s60, 1
      %p64 = scmp.eq.s32.totalorder %s26, 1
      %p65 = scmp.ne.s32.totalorder %s60, %s62
      %p66 = scmp.eq.s32.totalorder %s26, 0
      %p67 = por %p65, %p66
      %p68 = scmp.ne.s32.totalorder %s60, %s62
      %p69 = scmp.eq.s32.totalorder %s31, 1
      %p70 = por %p68, %p69
      %p71 = scmp.ne.s32.totalorder %s62, %s63
      %p72 = scmp.eq.s32.totalorder %s31, 0
      %p73 = por %p71, %p72
      %p74 = scmp.ne.s32.totalorder %s62, %s63
      %p75 = scmp.eq.s32.totalorder %s32, 1
      %p76 = por %p74, %p75
      %p78 = scmp.ne.s32.totalorder %s63, %s77
      %p79 = scmp.eq.s32.totalorder %s32, 0
      %p80 = por %p78, %p79
      %s82 = sadd.s32 %s81, 1
      %p85 = scmp.eq.s32.totalorder %s26, 1
      %p86 = scmp.ne.s32.totalorder %s81, %s83
      %p87 = scmp.eq.s32.totalorder %s26, 0
      %p88 = por %p86, %p87
      %p89 = scmp.ne.s32.totalorder %s81, %s83
      %p90 = scmp.eq.s32.totalorder %s31, 1
      %p91 = por %p89, %p90
      %p92 = scmp.ne.s32.totalorder %s83, %s84
      %p93 = scmp.eq.s32.totalorder %s31, 0
      %p94 = por %p92, %p93
      %p95 = scmp.ne.s32.totalorder %s83, %s84
      %p96 = scmp.eq.s32.totalorder %s32, 1
      %p97 = por %p95, %p96
      %p99 = scmp.ne.s32.totalorder %s84, %s98
      %p100 = scmp.eq.s32.totalorder %s32, 0
      %p101 = por %p99, %p100
      %s103 = sadd.s32 %s102, 1
      %p106 = scmp.eq.s32.totalorder %s26, 1
      %p107 = scmp.ne.s32.totalorder %s102, %s104
      %p108 = scmp.eq.s32.totalorder %s26, 0
      %p109 = por %p107, %p108
      %p110 = scmp.ne.s32.totalorder %s102, %s104
      %p111 = scmp.eq.s32.totalorder %s31, 1
      %p112 = por %p110, %p111
      %p113 = scmp.ne.s32.totalorder %s104, %s105
      %p114 = scmp.eq.s32.totalorder %s31, 0
      %p115 = por %p113, %p114
      %p116 = scmp.ne.s32.totalorder %s104, %s105
      %p117 = scmp.eq.s32.totalorder %s32, 1
      %p118 = por %p116, %p117
      %p120 = scmp.ne.s32.totalorder %s105, %s119
      %p121 = scmp.eq.s32.totalorder %s32, 0
      %p122 = por %p120, %p121
      %s124 = sadd.s32 %s123, 1
      %p127 = scmp.eq.s32.totalorder %s26, 1
      %p128 = scmp.ne.s32.totalorder %s123, %s125
      %p129 = scmp.eq.s32.totalorder %s26, 0
      %p130 = por %p128, %p129
      %p131 = scmp.ne.s32.totalorder %s123, %s125
      %p132 = scmp.eq.s32.totalorder %s31, 1
      %p133 = por %p131, %p132
      %p134 = scmp.ne.s32.totalorder %s125, %s126
      %p135 = scmp.eq.s32.totalorder %s31, 0
      %p136 = por %p134, %p135
      %p137 = scmp.ne.s32.totalorder %s125, %s126
      %p138 = scmp.eq.s32.totalorder %s32, 1
      %p139 = por %p137, %p138
      %p141 = scmp.ne.s32.totalorder %s126, %s140
      %p142 = scmp.eq.s32.totalorder %s32, 0
      %p143 = por %p141, %p142
      %s145 = sadd.s32 %s144, 1
      %p148 = scmp.eq.s32.totalorder %s26, 1
      %p149 = scmp.ne.s32.totalorder %s144, %s146
      %p150 = scmp.eq.s32.totalorder %s26, 0
      %p151 = por %p149, %p150
      %p152 = scmp.ne.s32.totalorder %s144, %s146
      %p153 = scmp.eq.s32.totalorder %s31, 1
      %p154 = por %p152, %p153
      %p155 = scmp.ne.s32.totalorder %s146, %s147
      %p156 = scmp.eq.s32.totalorder %s31, 0
      %p157 = por %p155, %p156
      %p158 = scmp.ne.s32.totalorder %s146, %s147
      %p159 = scmp.eq.s32.totalorder %s32, 1
      %p160 = por %p158, %p159
      %p162 = scmp.ne.s32.totalorder %s147, %s161
      %p163 = scmp.eq.s32.totalorder %s32, 0
      %p164 = por %p162, %p163
      %s166 = sadd.s32 %s165, 1
      %p169 = scmp.eq.s32.totalorder %s26, 1
      %p170 = scmp.ne.s32.totalorder %s165, %s167
      %p171 = scmp.eq.s32.totalorder %s26, 0
      %p172 = por %p170, %p171
      %p173 = scmp.ne.s32.totalorder %s165, %s167
      %p174 = scmp.eq.s32.totalorder %s31, 1
      %p175 = por %p173, %p174
      %p176 = scmp.ne.s32.totalorder %s167, %s168
      %p177 = scmp.eq.s32.totalorder %s31, 0
      %p178 = por %p176, %p177
      %p179 = scmp.ne.s32.totalorder %s167, %s168
      %p180 = scmp.eq.s32.totalorder %s32, 1
      %p181 = por %p179, %p180
      %p183 = scmp.ne.s32.totalorder %s168, %s182
      %p184 = scmp.eq.s32.totalorder %s32, 0
      %p185 = por %p183, %p184
      %s187 = sadd.s32 %s186, 1
      %p190 = scmp.eq.s32.totalorder %s26, 1
      %p191 = scmp.ne.s32.totalorder %s186, %s188
      %p192 = scmp.eq.s32.totalorder %s26, 0
      %p193 = por %p191, %p192
      %p194 = scmp.ne.s32.totalorder %s186, %s188
      %p195 = scmp.eq.s32.totalorder %s31, 1
      %p196 = por %p194, %p195
      %p197 = scmp.ne.s32.totalorder %s188, %s189
      %p198 = scmp.eq.s32.totalorder %s31, 0
      %p199 = por %p197, %p198
      %p200 = scmp.ne.s32.totalorder %s188, %s189
      %p201 = scmp.eq.s32.totalorder %s32, 1
      %p202 = por %p200, %p201
      %p204 = scmp.ne.s32.totalorder %s189, %s203
      %p205 = scmp.eq.s32.totalorder %s32, 0
      %p206 = por %p204, %p205
      %s208 = sadd.s32 %s207, 1
      %p211 = scmp.eq.s32.totalorder %s26, 1
      %p212 = scmp.ne.s32.totalorder %s207, %s209
      %p213 = scmp.eq.s32.totalorder %s26, 0
      %p214 = por %p212, %p213
      %p215 = scmp.ne.s32.totalorder %s207, %s209
      %p216 = scmp.eq.s32.totalorder %s31, 1
      %p217 = por %p215, %p216
      %p218 = scmp.ne.s32.totalorder %s209, %s210
      %p219 = scmp.eq.s32.totalorder %s31, 0
      %p220 = por %p218, %p219
      %p221 = scmp.ne.s32.totalorder %s209, %s210
      %p222 = scmp.eq.s32.totalorder %s32, 1
      %p223 = por %p221, %p222
      %p225 = scmp.ne.s32.totalorder %s210, %s224
      %p226 = scmp.eq.s32.totalorder %s32, 0
      %p227 = por %p225, %p226
      %s229 = sadd.s32 %s228, 1
      %p232 = scmp.eq.s32.totalorder %s26, 1
      %p233 = scmp.ne.s32.totalorder %s228, %s230
      %p234 = scmp.eq.s32.totalorder %s26, 0
      %p235 = por %p233, %p234
      %p236 = scmp.ne.s32.totalorder %s228, %s230
      %p237 = scmp.eq.s32.totalorder %s31, 1
      %p238 = por %p236, %p237
      %p239 = scmp.ne.s32.totalorder %s230, %s231
      %p240 = scmp.eq.s32.totalorder %s31, 0
      %p241 = por %p239, %p240
      %p242 = scmp.ne.s32.totalorder %s230, %s231
      %p243 = scmp.eq.s32.totalorder %s32, 1
      %p244 = por %p242, %p243
      %p246 = scmp.ne.s32.totalorder %s231, %s245
      %p247 = scmp.eq.s32.totalorder %s32, 0
      %p248 = por %p246, %p247
      %s250 = sadd.s32 %s249, 1
      %p253 = scmp.eq.s32.totalorder %s26, 1
      %p254 = scmp.ne.s32.totalorder %s249, %s251
      %p255 = scmp.eq.s32.totalorder %s26, 0
      %p256 = por %p254, %p255
      %p257 = scmp.ne.s32.totalorder %s249, %s251
      %p258 = scmp.eq.s32.totalorder %s31, 1
      %p259 = por %p257, %p258
      %p260 = scmp.ne.s32.totalorder %s251, %s252
      %p261 = scmp.eq.s32.totalorder %s31, 0
      %p262 = por %p260, %p261
      %p263 = scmp.ne.s32.totalorder %s251, %s252
      %p264 = scmp.eq.s32.totalorder %s32, 1
      %p265 = por %p263, %p264
      %p267 = scmp.ne.s32.totalorder %s252, %s266
      %p268 = scmp.eq.s32.totalorder %s32, 0
      %p269 = por %p267, %p268
      %s271 = sadd.s32 %s270, 1
      %p274 = scmp.eq.s32.totalorder %s26, 1
      %p275 = scmp.ne.s32.totalorder %s270, %s272
      %p276 = scmp.eq.s32.totalorder %s26, 0
      %p277 = por %p275, %p276
      %p278 = scmp.ne.s32.totalorder %s270, %s272
      %p279 = scmp.eq.s32.totalorder %s31, 1
      %p280 = por %p278, %p279
      %p281 = scmp.ne.s32.totalorder %s272, %s273
      %p282 = scmp.eq.s32.totalorder %s31, 0
      %p283 = por %p281, %p282
      %p284 = scmp.ne.s32.totalorder %s272, %s273
      %p285 = scmp.eq.s32.totalorder %s32, 1
      %p286 = por %p284, %p285
      %p288 = scmp.ne.s32.totalorder %s273, %s287
      %p289 = scmp.eq.s32.totalorder %s32, 0
      %p290 = por %p288, %p289
      %s292 = sadd.s32 %s291, 1
      %p295 = scmp.eq.s32.totalorder %s26, 1
      %p296 = scmp.ne.s32.totalorder %s291, %s293
      %p297 = scmp.eq.s32.totalorder %s26, 0
      %p298 = por %p296, %p297
      %p299 = scmp.ne.s32.totalorder %s291, %s293
      %p300 = scmp.eq.s32.totalorder %s31, 1
      %p301 = por %p299, %p300
      %p302 = scmp.ne.s32.totalorder %s293, %s294
      %p303 = scmp.eq.s32.totalorder %s31, 0
      %p304 = por %p302, %p303
      %p305 = scmp.ne.s32.totalorder %s293, %s294
      %p306 = scmp.eq.s32.totalorder %s32, 1
      %p307 = por %p305, %p306
      %p309 = scmp.ne.s32.totalorder %s294, %s308
      %p310 = scmp.eq.s32.totalorder %s32, 0
      %p311 = por %p309, %p310
      %s312 = ssub.s32 %s26, %s33
      %p313 = scmp.eq.s32.totalorder %s312, 0
      %s315 = sadd.s32 %s314, 1
      %s316 = scalar_select %p313, %s314, %s315
      %p319 = pneg %p313
      %p320 = scmp.eq.s32.totalorder %s26, 1
      %p321 = por %p319, %p320
      %p322 = scmp.ne.s32.totalorder %s314, %s317
      %p323 = scmp.eq.s32.totalorder %s26, 0
      %p324 = por %p322, %p323
      %p325 = scmp.ne.s32.totalorder %s314, %s317
      %p326 = scmp.eq.s32.totalorder %s31, 1
      %p327 = por %p325, %p326
      %p328 = scmp.ne.s32.totalorder %s317, %s318
      %p329 = scmp.eq.s32.totalorder %s31, 0
      %p330 = por %p328, %p329
      %p331 = scmp.ne.s32.totalorder %s317, %s318
      %p332 = scmp.eq.s32.totalorder %s32, 1
      %p333 = por %p331, %p332
      %p335 = scmp.ne.s32.totalorder %s318, %s334
      %p336 = scmp.eq.s32.totalorder %s32, 0
      %p337 = por %p335, %p336
      %p338 = scmp.le.s32.totalorder 1, %s26
      %p339 = scmp.lt.s32.totalorder %s26, 3
      %p340 = pnand %p338, %p339
      %p341 = pneg %p340
      // Predicated region
      $region9: #{tpu_custom_call.1} parent=5 // pred_check
        _
      $region10: #{tpu_custom_call.1} parent=5 // pred_check_branch
        %343 = sbr.rel (%p340) target = $region12
      $region11: #{tpu_custom_call.1} parent=5 // pred_region
        %s344 = ssub.s32 %s26, 1
        // Predicated region
        $region13: #{tpu_custom_call.1} parent=11 // pred_check
          %p345 = pneg %p73
        $region14: #{tpu_custom_call.1} parent=11 // pred_check_branch
          %347 = sbr.rel (%p345) target = $region16
        $region15: #{tpu_custom_call.1} parent=11 // pred_region
          _
        $region16: #{tpu_custom_call.1} parent=11 // pred_fallthru
          _
        // Predicated region
        $region17: #{tpu_custom_call.1} parent=11 // pred_check
          %p348 = pneg %p94
        $region18: #{tpu_custom_call.1} parent=11 // pred_check_branch
          %350 = sbr.rel (%p348) target = $region20
        $region19: #{tpu_custom_call.1} parent=11 // pred_region
          %s352 = ssub.s32 16, 16
          %353 = vsyncadd [#allocation4], %s352
          %s355 = sshll.u32 [#allocation3], 4
          %s356 = int_to_ptr.vmem [resolvable:$true] %s355
          %358 = dma.hbm_to_vmem [thread:$0]  %s2, 16, %s356, [#allocation4]
        $region20: #{tpu_custom_call.1} parent=11 // pred_fallthru
          _
        // Predicated region
        $region21: #{tpu_custom_call.1} parent=11 // pred_check
          %p359 = pneg %p115
        $region22: #{tpu_custom_call.1} parent=11 // pred_check_branch
          %361 = sbr.rel (%p359) target = $region24
        $region23: #{tpu_custom_call.1} parent=11 // pred_region
          %s363 = ssub.s32 256, 256
          %364 = vsyncadd [#allocation7], %s363
          %s365 = sshll.u32 [#allocation6], 4
          %s366 = int_to_ptr.vmem [resolvable:$true] %s365
          %371 = dma.hbm_to_vmem [thread:$0]  %s3, 256, %s366, [#allocation7], 64, 64, 4
        $region24: #{tpu_custom_call.1} parent=11 // pred_fallthru
          _
        // Predicated region
        $region25: #{tpu_custom_call.1} parent=11 // pred_check
          %p372 = pneg %p136
        $region26: #{tpu_custom_call.1} parent=11 // pred_check_branch
          %374 = sbr.rel (%p372) target = $region28
        $region27: #{tpu_custom_call.1} parent=11 // pred_region
          %s376 = ssub.s32 16, 16
          %377 = vsyncadd [#allocation7], %s376
          %s379 = sshll.u32 [#allocation8], 4
          %s380 = int_to_ptr.vmem [resolvable:$true] %s379
          %382 = dma.hbm_to_vmem [thread:$0]  %s4, 16, %s380, [#allocation7]
        $region28: #{tpu_custom_call.1} parent=11 // pred_fallthru
          _
        // Predicated region
        $region29: #{tpu_custom_call.1} parent=11 // pred_check
          %p383 = pneg %p157
        $region30: #{tpu_custom_call.1} parent=11 // pred_check_branch
          %385 = sbr.rel (%p383) target = $region32
        $region31: #{tpu_custom_call.1} parent=11 // pred_region
          %s387 = ssub.s32 16, 16
          %388 = vsyncadd [#allocation10], %s387
          %s390 = sshll.u32 [#allocation9], 4
          %s391 = int_to_ptr.vmem [resolvable:$true] %s390
          %393 = dma.hbm_to_vmem [thread:$0]  %s5, 16, %s391, [#allocation10]
        $region32: #{tpu_custom_call.1} parent=11 // pred_fallthru
          _
        // Predicated region
        $region33: #{tpu_custom_call.1} parent=11 // pred_check
          %p394 = pneg %p178
        $region34: #{tpu_custom_call.1} parent=11 // pred_check_branch
          %396 = sbr.rel (%p394) target = $region36
        $region35: #{tpu_custom_call.1} parent=11 // pred_region
          %s398 = ssub.s32 16, 16
          %399 = vsyncadd [#allocation10], %s398
          %s401 = sshll.u32 [#allocation11], 4
          %s402 = int_to_ptr.vmem [resolvable:$true] %s401
          %404 = dma.hbm_to_vmem [thread:$0]  %s6, 16, %s402, [#allocation10]
        $region36: #{tpu_custom_call.1} parent=11 // pred_fallthru
          _
        // Predicated region
        $region37: #{tpu_custom_call.1} parent=11 // pred_check
          %p405 = pneg %p199
        $region38: #{tpu_custom_call.1} parent=11 // pred_check_branch
          %407 = sbr.rel (%p405) target = $region40
        $region39: #{tpu_custom_call.1} parent=11 // pred_region
          %s409 = ssub.s32 256, 256
          %410 = vsyncadd [#allocation13], %s409
          %s411 = sshll.u32 [#allocation12], 4
          %s412 = int_to_ptr.vmem [resolvable:$true] %s411
          %417 = dma.hbm_to_vmem [thread:$0]  %s7, 256, %s412, [#allocation13], 64, 64, 4
        $region40: #{tpu_custom_call.1} parent=11 // pred_fallthru
          _
        // Predicated region
        $region41: #{tpu_custom_call.1} parent=11 // pred_check
          %p418 = pneg %p220
        $region42: #{tpu_custom_call.1} parent=11 // pred_check_branch
          %420 = sbr.rel (%p418) target = $region44
        $region43: #{tpu_custom_call.1} parent=11 // pred_region
          %s422 = ssub.s32 16, 16
          %423 = vsyncadd [#allocation13], %s422
          %s425 = sshll.u32 [#allocation14], 4
          %s426 = int_to_ptr.vmem [resolvable:$true] %s425
          %428 = dma.hbm_to_vmem [thread:$0]  %s8, 16, %s426, [#allocation13]
        $region44: #{tpu_custom_call.1} parent=11 // pred_fallthru
          _
        // Predicated region
        $region45: #{tpu_custom_call.1} parent=11 // pred_check
          %p429 = pneg %p241
        $region46: #{tpu_custom_call.1} parent=11 // pred_check_branch
          %431 = sbr.rel (%p429) target = $region48
        $region47: #{tpu_custom_call.1} parent=11 // pred_region
          _
        $region48: #{tpu_custom_call.1} parent=11 // pred_fallthru
          _
        // Predicated region
        $region49: #{tpu_custom_call.1} parent=11 // pred_check
          %p432 = pneg %p262
        $region50: #{tpu_custom_call.1} parent=11 // pred_check_branch
          %434 = sbr.rel (%p432) target = $region52
        $region51: #{tpu_custom_call.1} parent=11 // pred_region
          _
        $region52: #{tpu_custom_call.1} parent=11 // pred_fallthru
          _
        // Predicated region
        $region53: #{tpu_custom_call.1} parent=11 // pred_check
          %p435 = pneg %p283
        $region54: #{tpu_custom_call.1} parent=11 // pred_check_branch
          %437 = sbr.rel (%p435) target = $region56
        $region55: #{tpu_custom_call.1} parent=11 // pred_region
          _
        $region56: #{tpu_custom_call.1} parent=11 // pred_fallthru
          _
        // Predicated region
        $region57: #{tpu_custom_call.1} parent=11 // pred_check
          %p438 = pneg %p304
        $region58: #{tpu_custom_call.1} parent=11 // pred_check_branch
          %440 = sbr.rel (%p438) target = $region60
        $region59: #{tpu_custom_call.1} parent=11 // pred_region
          _
        $region60: #{tpu_custom_call.1} parent=11 // pred_fallthru
          _
      $region12: #{tpu_custom_call.1} parent=5 // pred_fallthru
        _
      %p441 = scmp.lt.s32.totalorder %s26, 2
      // Predicated region
      $region61: #{tpu_custom_call.1} parent=5 // pred_check
        %p442 = pneg %p441
      $region62: #{tpu_custom_call.1} parent=5 // pred_check_branch
        %444 = sbr.rel (%p442) target = $region64
      $region63: #{tpu_custom_call.1} parent=5 // pred_region
        // Predicated region
        $region65: #{tpu_custom_call.1} parent=63 // pred_check
          %p445 = pneg %p46
        $region66: #{tpu_custom_call.1} parent=63 // pred_check_branch
          %447 = sbr.rel (%p445) target = $region68
        $region67: #{tpu_custom_call.1} parent=63 // pred_region
          %s448 = smul.u32 2, %s26
          %p449 = scmp.lt.s32.totalorder %s448, 3
          %s450 = scalar_select %p449, %s448, 3
          %s451 = smul.addr %s450, 8
          %s452 = scalar_lea.vmem %s0, %s451
          %s453 = smul.u32 2, %s26
        $region68: #{tpu_custom_call.1} parent=63 // pred_fallthru
          _
      $region64: #{tpu_custom_call.1} parent=5 // pred_fallthru
        _
      %p454 = scmp.le.s32.totalorder 1, %s26
      %p455 = scmp.lt.s32.totalorder %s26, 3
      %p456 = pnand %p454, %p455
      %p457 = pneg %p456
      // Predicated region
      $region69: #{tpu_custom_call.1} parent=5 // pred_check
        _
      $region70: #{tpu_custom_call.1} parent=5 // pred_check_branch
        %459 = sbr.rel (%p456) target = $region72
      $region71: #{tpu_custom_call.1} parent=5 // pred_region
        %s460 = ssub.s32 %s26, 1
        // Predicated region
        $region73: #{tpu_custom_call.1} parent=71 // pred_check
          %p461 = pneg %p94
        $region74: #{tpu_custom_call.1} parent=71 // pred_check_branch
          %463 = sbr.rel (%p461) target = $region76
        $region75: #{tpu_custom_call.1} parent=71 // pred_region
          %464 = dma.done [#allocation4], 16
        $region76: #{tpu_custom_call.1} parent=71 // pred_fallthru
          _
        // Predicated region
        $region77: #{tpu_custom_call.1} parent=71 // pred_check
          %p465 = pneg %p115
        $region78: #{tpu_custom_call.1} parent=71 // pred_check_branch
          %467 = sbr.rel (%p465) target = $region80
        $region79: #{tpu_custom_call.1} parent=71 // pred_region
          %468 = dma.done [#allocation7], 256
        $region80: #{tpu_custom_call.1} parent=71 // pred_fallthru
          _
        // Predicated region
        $region81: #{tpu_custom_call.1} parent=71 // pred_check
          %p469 = pneg %p136
        $region82: #{tpu_custom_call.1} parent=71 // pred_check_branch
          %471 = sbr.rel (%p469) target = $region84
        $region83: #{tpu_custom_call.1} parent=71 // pred_region
          %472 = dma.done [#allocation7], 16
        $region84: #{tpu_custom_call.1} parent=71 // pred_fallthru
          _
        // Predicated region
        $region85: #{tpu_custom_call.1} parent=71 // pred_check
          %p473 = pneg %p157
        $region86: #{tpu_custom_call.1} parent=71 // pred_check_branch
          %475 = sbr.rel (%p473) target = $region88
        $region87: #{tpu_custom_call.1} parent=71 // pred_region
          %476 = dma.done [#allocation10], 16
        $region88: #{tpu_custom_call.1} parent=71 // pred_fallthru
          _
        // Predicated region
        $region89: #{tpu_custom_call.1} parent=71 // pred_check
          %p477 = pneg %p178
        $region90: #{tpu_custom_call.1} parent=71 // pred_check_branch
          %479 = sbr.rel (%p477) target = $region92
        $region91: #{tpu_custom_call.1} parent=71 // pred_region
          %480 = dma.done [#allocation10], 16
        $region92: #{tpu_custom_call.1} parent=71 // pred_fallthru
          _
        // Predicated region
        $region93: #{tpu_custom_call.1} parent=71 // pred_check
          %p481 = pneg %p199
        $region94: #{tpu_custom_call.1} parent=71 // pred_check_branch
          %483 = sbr.rel (%p481) target = $region96
        $region95: #{tpu_custom_call.1} parent=71 // pred_region
          %484 = dma.done [#allocation13], 256
        $region96: #{tpu_custom_call.1} parent=71 // pred_fallthru
          _
        // Predicated region
        $region97: #{tpu_custom_call.1} parent=71 // pred_check
          %p485 = pneg %p220
        $region98: #{tpu_custom_call.1} parent=71 // pred_check_branch
          %487 = sbr.rel (%p485) target = $region100
        $region99: #{tpu_custom_call.1} parent=71 // pred_region
          %488 = dma.done [#allocation13], 16
        $region100: #{tpu_custom_call.1} parent=71 // pred_fallthru
          _
        %s489 = smul.u32 2, %s31
        %p490 = scmp.lt.s32.totalorder %s489, 3
        %s491 = scalar_select %p490, %s489, 3
        %s492 = smul.addr %s491, 8
        %s493 = scalar_lea.vmem %s0, %s492
        %p494 = pneg %p52
        %p495 = pneg %p49
        %p496 = pneg %p73
        %p497 = pneg %p70
        %p498 = pneg %p94
        %p499 = pneg %p91
        %p500 = pneg %p115
        %p501 = pneg %p112
        %p502 = pneg %p136
        %p503 = pneg %p133
        %p504 = pneg %p157
        %p505 = pneg %p154
        %p506 = pneg %p178
        %p507 = pneg %p175
        %p508 = pneg %p199
        %p509 = pneg %p196
        %p510 = pneg %p220
        %p511 = pneg %p217
        %p512 = pneg %p241
        %p513 = pneg %p238
        %p514 = pneg %p262
        %p515 = pneg %p259
        %p516 = pneg %p283
        %p517 = pneg %p280
        %p518 = pneg %p304
        %p519 = pneg %p301
        %p520 = pneg %p330
        %p521 = pneg %p327
        %s522 = sand.u32 %s317, 1
        %s523 = scalar_lea.sflag [#allocation5], %s522
        %s524 = sand.u32 %s317, 1
        %s525 = smul.addr %s524, 16
        %s526 = scalar_lea.vmem [#allocation15], %s525
        %s527 = smul.u32 2, %s31
        %p528 = scmp.lt.s32.totalorder %s527, 3
        %s529 = scalar_select %p528, %s527, 3
        %s530 = smul.addr %s529, 8
        %s531 = scalar_lea.vmem %s0, %s530
        %s532 = smul.u32 2, %s31
        %s533 = smul.u32 2, %s31
        %v535 = vld [vmem:[%s531] sm:$0xff]
        %v536 = vld [vmem:[%s531 + $0x8] sm:$0xff]
        %v537 = vpack.c.bf16 %v536, %v535
        %v538 = vld [vmem:[%s1] sm:$0xf]
        %v539 = vld [vmem:[%s1 + $0x4] sm:$0xf]
        %v540 = vld [vmem:[%s1 + $0x8] sm:$0xf]
        %v541 = vld [vmem:[%s1 + $0xc] sm:$0xf]
        %v542 = vld [vmem:[#allocation3] sm:$0x1]
        %v544 = vlaneseq
        %v545 = vshrl.u32 %v544, 7
        %v546 = vsub.s32 0, %v545
        %v547 = vrot.slane %v542, %v546
        %v553 = vunpack.c.l.b16 %v538
        %v554 = vunpack.c.l.b16 %v539
        %v555 = vunpack.c.l.b16 %v540
        %v556 = vunpack.c.l.b16 %v541
        %v557 = vpack.c.b16 %v554, %v553
        %v558 = vpack.c.b16 %v556, %v555
        %vm561 = vcmask 261120
        %v563 = vsel %vm561, %v537, 0
        %565 = vmatprep.subr.bf16.mxu0 0
        %566 = vmatpush1.bf16.msra.mxu0 0
        %567 = vmatprep.subr.bf16.mxu0 0
        %568 = vmatpush1.bf16.msra.mxu0 0
        %569 = vmatprep.subr.bf16.mxu0 0
        %570 = vmatpush1.bf16.msra.mxu0 0
        %571 = vmatprep.subr.bf16.mxu0 0
        %572 = vmatpush1.bf16.msra.mxu0 0
        %573 = vmatprep.subr.bf16.mxu0 0
        %574 = vmatpush1.bf16.msra.mxu0 0
        %575 = vmatprep.subr.bf16.mxu0 0
        %576 = vmatpush1.bf16.msra.mxu0 0
        %577 = vmatprep.subr.bf16.mxu0 0
        %578 = vmatpush1.bf16.msra.mxu0 %v558
        %579 = vmatprep.subr.bf16.mxu0 0
        %580 = vmatpush1.bf16.msra.mxu0 %v557
        %581 = vmatprep.subr.bf16.mxu0 0
        %582 = vmatpush2.bf16.msra.mxu0 0
        %583 = vmatprep.subr.bf16.mxu0 0
        %584 = vmatpush2.bf16.msra.mxu0 0
        %585 = vmatprep.subr.bf16.mxu0 0
        %586 = vmatpush2.bf16.msra.mxu0 0
        %587 = vmatprep.subr.bf16.mxu0 0
        %588 = vmatpush2.bf16.msra.mxu0 0
        %589 = vmatprep.subr.bf16.mxu0 0
        %590 = vmatpush2.bf16.msra.mxu0 0
        %591 = vmatprep.subr.bf16.mxu0 0
        %592 = vmatpush2.bf16.msra.mxu0 0
        %593 = vmatprep.subr.bf16.mxu0 0
        %594 = vmatpush2.bf16.msra.mxu0 0
        %595 = vmatprep.subr.bf16.mxu0 0
        %596 = vmatpush2.bf16.msra.mxu0 0
        %597 = vmatprep.mubr.bf16.mxu0 0
        %598 = vmatmul.mubr.bf16.gmra.mxu0 %v563
        %v599 = vpop.f32.mrf.mxu0
        %v600 = vadd.f32 %v547, %v599
        %v601 = vpop.f32.mrf.mxu0
        %v602 = vpop.f32.mrf.mxu0
        %v603 = vadd.f32 %v547, %v602
        %v604 = vpop.f32.mrf.mxu0
        %605 = vdwg.mxu0
        %v606 = vmul.f32 %v600, 0.35355338
        %v607 = vmul.f32 %v603, 0.35355338
        %v608 = vpack.c.bf16 %v606, %v606
        %v609 = vpack.c.bf16 %v607, %v607
        %v610 = vpack.c.bf16 %v600, %v600
        %v611 = vpack.c.bf16 %v603, %v603
        %613 = vrot.lane.b32.xlu0 %v610, 96
        %v614 = vpop.permute.xlu0 %613
        %vm615 = vcmask 64512
        %v617 = vsel %vm615, %v608, 0
        %v620 = vsel %vm615, %v614, 0
        %622 = vmatprep.subr.bf16.mxu0 0
        %623 = vmatpush1.bf16.xpose.msra.mxu0 0
        %624 = vmatprep.subr.bf16.mxu0 0
        %625 = vmatpush1.bf16.xpose.msra.mxu0 0
        %626 = vmatprep.subr.bf16.mxu0 0
        %627 = vmatpush1.bf16.xpose.msra.mxu0 0
        %628 = vmatprep.subr.bf16.mxu0 0
        %629 = vmatpush1.bf16.xpose.msra.mxu0 0
        %630 = vmatprep.subr.bf16.mxu0 0
        %631 = vmatpush1.bf16.xpose.msra.mxu0 0
        %632 = vmatprep.subr.bf16.mxu0 0
        %633 = vmatpush1.bf16.xpose.msra.mxu0 0
        %634 = vmatprep.subr.bf16.mxu0 0
        %635 = vmatpush1.bf16.xpose.msra.mxu0 0
        %636 = vmatprep.subr.bf16.mxu0 0
        %637 = vmatpush1.bf16.xpose.msra.mxu0 %v620
        %638 = vmatprep.subr.bf16.mxu0 0
        %639 = vmatpush2.bf16.xpose.msra.mxu0 0
        %640 = vmatprep.subr.bf16.mxu0 0
        %641 = vmatpush2.bf16.xpose.msra.mxu0 0
        %642 = vmatprep.subr.bf16.mxu0 0
        %643 = vmatpush2.bf16.xpose.msra.mxu0 0
        %644 = vmatprep.subr.bf16.mxu0 0
        %645 = vmatpush2.bf16.xpose.msra.mxu0 0
        %646 = vmatprep.subr.bf16.mxu0 0
        %647 = vmatpush2.bf16.xpose.msra.mxu0 0
        %648 = vmatprep.subr.bf16.mxu0 0
        %649 = vmatpush2.bf16.xpose.msra.mxu0 0
        %650 = vmatprep.subr.bf16.mxu0 0
        %651 = vmatpush2.bf16.xpose.msra.mxu0 0
        %652 = vmatprep.subr.bf16.mxu0 0
        %653 = vmatpush2.bf16.xpose.msra.mxu0 0
        %654 = vmatprep.mubr.bf16.mxu0 0
        %655 = vmatmul.mubr.bf16.gmra.mxu0 %v617
        %v656 = vpop.f32.mrf.mxu0
        %v657 = vadd.f32 0.0, %v656
        %v658 = vpop.f32.mrf.mxu0
        %v659 = vpop.f32.mrf.mxu0
        %v660 = vpop.f32.mrf.mxu0
        %661 = vdwg.mxu0
        %663 = vrot.lane.b32.xlu0 %v611, 96
        %v664 = vpop.permute.xlu0 %663
        %v666 = vsel %vm615, %v609, 0
        %v669 = vsel %vm615, %v664, 0
        %671 = vmatprep.subr.bf16.mxu0 0
        %672 = vmatpush1.bf16.xpose.msra.mxu0 0
        %673 = vmatprep.subr.bf16.mxu0 0
        %674 = vmatpush1.bf16.xpose.msra.mxu0 0
        %675 = vmatprep.subr.bf16.mxu0 0
        %676 = vmatpush1.bf16.xpose.msra.mxu0 0
        %677 = vmatprep.subr.bf16.mxu0 0
        %678 = vmatpush1.bf16.xpose.msra.mxu0 0
        %679 = vmatprep.subr.bf16.mxu0 0
        %680 = vmatpush1.bf16.xpose.msra.mxu0 0
        %681 = vmatprep.subr.bf16.mxu0 0
        %682 = vmatpush1.bf16.xpose.msra.mxu0 0
        %683 = vmatprep.subr.bf16.mxu0 0
        %684 = vmatpush1.bf16.xpose.msra.mxu0 0
        %685 = vmatprep.subr.bf16.mxu0 0
        %686 = vmatpush1.bf16.xpose.msra.mxu0 %v669
        %687 = vmatprep.subr.bf16.mxu0 0
        %688 = vmatpush2.bf16.xpose.msra.mxu0 0
        %689 = vmatprep.subr.bf16.mxu0 0
        %690 = vmatpush2.bf16.xpose.msra.mxu0 0
        %691 = vmatprep.subr.bf16.mxu0 0
        %692 = vmatpush2.bf16.xpose.msra.mxu0 0
        %693 = vmatprep.subr.bf16.mxu0 0
        %694 = vmatpush2.bf16.xpose.msra.mxu0 0
        %695 = vmatprep.subr.bf16.mxu0 0
        %696 = vmatpush2.bf16.xpose.msra.mxu0 0
        %697 = vmatprep.subr.bf16.mxu0 0
        %698 = vmatpush2.bf16.xpose.msra.mxu0 0
        %699 = vmatprep.subr.bf16.mxu0 0
        %700 = vmatpush2.bf16.xpose.msra.mxu0 0
        %701 = vmatprep.subr.bf16.mxu0 0
        %702 = vmatpush2.bf16.xpose.msra.mxu0 0
        %703 = vmatprep.mubr.bf16.mxu0 0
        %704 = vmatmul.mubr.bf16.gmra.mxu0 %v666
        %v705 = vpop.f32.mrf.mxu0
        %v706 = vadd.f32 0.0, %v705
        %v707 = vpop.f32.mrf.mxu0
        %v708 = vpop.f32.mrf.mxu0
        %v709 = vpop.f32.mrf.mxu0
        %710 = vdwg.mxu0
        %v711 = vsel %vm615, %v657, -inf
        %712 = vmax.xlane.f32.xlu0 %v711
        %v713 = vpop.xlane.xlu0 %712
        %v714 = vsel %vm615, %v706, -inf
        %715 = vmax.xlane.f32.xlu0 %v714
        %v716 = vpop.xlane.xlu0 %715
        %v717 = vsub.f32 %v657, %v713
        %v718 = vsub.f32 %v706, %v716
        %v719 = vmul.f32 %v717, 1.442695
        %v720 = vpow.pop %v719
        %v721 = vmul.f32 %v718, 1.442695
        %v722 = vpow.pop %v721
        %v723 = vsel %vm615, %v720, 0.0
        %724 = vadd.xlane.f32.xlu0 %v723
        %v725 = vpop.xlane.xlu0 %724
        %v726 = vsel %vm615, %v722, 0.0
        %727 = vadd.xlane.f32.xlu0 %v726
        %v728 = vpop.xlane.xlu0 %727
        %v729 = vrcp.pop %v725
        %v730 = vrcp.pop %v728
        %v731 = vmul.f32 %v720, %v729
        %v732 = vmul.f32 %v722, %v730
        %v733 = vpack.c.bf16 %v731, %v731
        %v734 = vpack.c.bf16 %v732, %v732
        %735 = vrot.lane.b32.xlu0 %v610, 64
        %v736 = vpop.permute.xlu0 %735
        %v738 = vsel %vm615, %v733, 0
        %vm740 = vcmask 1043456
        %v742 = vsel %vm740, %v736, 0
        %744 = vmatprep.subr.bf16.mxu0 0
        %745 = vmatpush1.bf16.msra.mxu0 0
        %746 = vmatprep.subr.bf16.mxu0 0
        %747 = vmatpush1.bf16.msra.mxu0 0
        %748 = vmatprep.subr.bf16.mxu0 0
        %749 = vmatpush1.bf16.msra.mxu0 0
        %750 = vmatprep.subr.bf16.mxu0 0
        %751 = vmatpush1.bf16.msra.mxu0 0
        %752 = vmatprep.subr.bf16.mxu0 0
        %753 = vmatpush1.bf16.msra.mxu0 0
        %754 = vmatprep.subr.bf16.mxu0 0
        %755 = vmatpush1.bf16.msra.mxu0 0
        %756 = vmatprep.subr.bf16.mxu0 0
        %757 = vmatpush1.bf16.msra.mxu0 0
        %758 = vmatprep.subr.bf16.mxu0 0
        %759 = vmatpush1.bf16.msra.mxu0 %v742
        %760 = vmatprep.subr.bf16.mxu0 0
        %761 = vmatpush2.bf16.msra.mxu0 0
        %762 = vmatprep.subr.bf16.mxu0 0
        %763 = vmatpush2.bf16.msra.mxu0 0
        %764 = vmatprep.subr.bf16.mxu0 0
        %765 = vmatpush2.bf16.msra.mxu0 0
        %766 = vmatprep.subr.bf16.mxu0 0
        %767 = vmatpush2.bf16.msra.mxu0 0
        %768 = vmatprep.subr.bf16.mxu0 0
        %769 = vmatpush2.bf16.msra.mxu0 0
        %770 = vmatprep.subr.bf16.mxu0 0
        %771 = vmatpush2.bf16.msra.mxu0 0
        %772 = vmatprep.subr.bf16.mxu0 0
        %773 = vmatpush2.bf16.msra.mxu0 0
        %774 = vmatprep.subr.bf16.mxu0 0
        %775 = vmatpush2.bf16.msra.mxu0 0
        %776 = vmatprep.mubr.bf16.mxu0 0
        %777 = vmatmul.mubr.bf16.gmra.mxu0 %v738
        %v778 = vpop.f32.mrf.mxu0
        %v779 = vadd.f32 0.0, %v778
        %v780 = vpop.f32.mrf.mxu0
        %v781 = vpop.f32.mrf.mxu0
        %v782 = vpop.f32.mrf.mxu0
        %783 = vdwg.mxu0
        %784 = vrot.lane.b32.xlu0 %v611, 64
        %v785 = vpop.permute.xlu0 %784
        %v787 = vsel %vm615, %v734, 0
        %v790 = vsel %vm740, %v785, 0
        %792 = vmatprep.subr.bf16.mxu0 0
        %793 = vmatpush1.bf16.msra.mxu0 0
        %794 = vmatprep.subr.bf16.mxu0 0
        %795 = vmatpush1.bf16.msra.mxu0 0
        %796 = vmatprep.subr.bf16.mxu0 0
        %797 = vmatpush1.bf16.msra.mxu0 0
        %798 = vmatprep.subr.bf16.mxu0 0
        %799 = vmatpush1.bf16.msra.mxu0 0
        %800 = vmatprep.subr.bf16.mxu0 0
        %801 = vmatpush1.bf16.msra.mxu0 0
        %802 = vmatprep.subr.bf16.mxu0 0
        %803 = vmatpush1.bf16.msra.mxu0 0
        %804 = vmatprep.subr.bf16.mxu0 0
        %805 = vmatpush1.bf16.msra.mxu0 0
        %806 = vmatprep.subr.bf16.mxu0 0
        %807 = vmatpush1.bf16.msra.mxu0 %v790
        %808 = vmatprep.subr.bf16.mxu0 0
        %809 = vmatpush2.bf16.msra.mxu0 0
        %810 = vmatprep.subr.bf16.mxu0 0
        %811 = vmatpush2.bf16.msra.mxu0 0
        %812 = vmatprep.subr.bf16.mxu0 0
        %813 = vmatpush2.bf16.msra.mxu0 0
        %814 = vmatprep.subr.bf16.mxu0 0
        %815 = vmatpush2.bf16.msra.mxu0 0
        %816 = vmatprep.subr.bf16.mxu0 0
        %817 = vmatpush2.bf16.msra.mxu0 0
        %818 = vmatprep.subr.bf16.mxu0 0
        %819 = vmatpush2.bf16.msra.mxu0 0
        %820 = vmatprep.subr.bf16.mxu0 0
        %821 = vmatpush2.bf16.msra.mxu0 0
        %822 = vmatprep.subr.bf16.mxu0 0
        %823 = vmatpush2.bf16.msra.mxu0 0
        %824 = vmatprep.mubr.bf16.mxu0 0
        %825 = vmatmul.mubr.bf16.gmra.mxu0 %v787
        %v826 = vpop.f32.mrf.mxu0
        %v827 = vadd.f32 0.0, %v826
        %v828 = vpop.f32.mrf.mxu0
        %v829 = vpop.f32.mrf.mxu0
        %v830 = vpop.f32.mrf.mxu0
        %831 = vdwg.mxu0
        %v832 = vpack.c.bf16 %v827, %v779
        %v834 = vunpack.c.l.b16 %v832
        %v835 = vunpack.c.h.b16 %v832
        %v836 = vpack.c.b16 %v834, %v834
        %v837 = vpack.c.b16 %v835, %v835
        %vm840 = vcmask 60416
        %841 = vst.msk [vmem:[#allocation2] sm:$0xf] %vm840, %v836
        %842 = vst.msk [vmem:[#allocation2 + $0x4] sm:$0xf] %vm840, %v837
        %844 = vrot.lane.b32.xlu0 %v608, 120
        %v845 = vpop.permute.xlu0 %844
        %846 = vrot.lane.b32.xlu0 %v610, 88
        %v847 = vpop.permute.xlu0 %846
        %v849 = vsel %vm615, %v845, 0
        %v852 = vsel %vm615, %v847, 0
        %854 = vmatprep.subr.bf16.mxu0 0
        %855 = vmatpush1.bf16.xpose.msra.mxu0 0
        %856 = vmatprep.subr.bf16.mxu0 0
        %857 = vmatpush1.bf16.xpose.msra.mxu0 0
        %858 = vmatprep.subr.bf16.mxu0 0
        %859 = vmatpush1.bf16.xpose.msra.mxu0 0
        %860 = vmatprep.subr.bf16.mxu0 0
        %861 = vmatpush1.bf16.xpose.msra.mxu0 0
        %862 = vmatprep.subr.bf16.mxu0 0
        %863 = vmatpush1.bf16.xpose.msra.mxu0 0
        %864 = vmatprep.subr.bf16.mxu0 0
        %865 = vmatpush1.bf16.xpose.msra.mxu0 0
        %866 = vmatprep.subr.bf16.mxu0 0
        %867 = vmatpush1.bf16.xpose.msra.mxu0 0
        %868 = vmatprep.subr.bf16.mxu0 0
        %869 = vmatpush1.bf16.xpose.msra.mxu0 %v852
        %870 = vmatprep.subr.bf16.mxu0 0
        %871 = vmatpush2.bf16.xpose.msra.mxu0 0
        %872 = vmatprep.subr.bf16.mxu0 0
        %873 = vmatpush2.bf16.xpose.msra.mxu0 0
        %874 = vmatprep.subr.bf16.mxu0 0
        %875 = vmatpush2.bf16.xpose.msra.mxu0 0
        %876 = vmatprep.subr.bf16.mxu0 0
        %877 = vmatpush2.bf16.xpose.msra.mxu0 0
        %878 = vmatprep.subr.bf16.mxu0 0
        %879 = vmatpush2.bf16.xpose.msra.mxu0 0
        %880 = vmatprep.subr.bf16.mxu0 0
        %881 = vmatpush2.bf16.xpose.msra.mxu0 0
        %882 = vmatprep.subr.bf16.mxu0 0
        %883 = vmatpush2.bf16.xpose.msra.mxu0 0
        %884 = vmatprep.subr.bf16.mxu0 0
        %885 = vmatpush2.bf16.xpose.msra.mxu0 0
        %886 = vmatprep.mubr.bf16.mxu0 0
        %887 = vmatmul.mubr.bf16.gmra.mxu0 %v849
        %v888 = vpop.f32.mrf.mxu0
        %v889 = vadd.f32 0.0, %v888
        %v890 = vpop.f32.mrf.mxu0
        %v891 = vpop.f32.mrf.mxu0
        %v892 = vpop.f32.mrf.mxu0
        %893 = vdwg.mxu0
        %895 = vrot.lane.b32.xlu0 %v609, 120
        %v896 = vpop.permute.xlu0 %895
        %897 = vrot.lane.b32.xlu0 %v611, 88
        %v898 = vpop.permute.xlu0 %897
        %v900 = vsel %vm615, %v896, 0
        %v903 = vsel %vm615, %v898, 0
        %905 = vmatprep.subr.bf16.mxu0 0
        %906 = vmatpush1.bf16.xpose.msra.mxu0 0
        %907 = vmatprep.subr.bf16.mxu0 0
        %908 = vmatpush1.bf16.xpose.msra.mxu0 0
        %909 = vmatprep.subr.bf16.mxu0 0
        %910 = vmatpush1.bf16.xpose.msra.mxu0 0
        %911 = vmatprep.subr.bf16.mxu0 0
        %912 = vmatpush1.bf16.xpose.msra.mxu0 0
        %913 = vmatprep.subr.bf16.mxu0 0
        %914 = vmatpush1.bf16.xpose.msra.mxu0 0
        %915 = vmatprep.subr.bf16.mxu0 0
        %916 = vmatpush1.bf16.xpose.msra.mxu0 0
        %917 = vmatprep.subr.bf16.mxu0 0
        %918 = vmatpush1.bf16.xpose.msra.mxu0 0
        %919 = vmatprep.subr.bf16.mxu0 0
        %920 = vmatpush1.bf16.xpose.msra.mxu0 %v903
        %921 = vmatprep.subr.bf16.mxu0 0
        %922 = vmatpush2.bf16.xpose.msra.mxu0 0
        %923 = vmatprep.subr.bf16.mxu0 0
        %924 = vmatpush2.bf16.xpose.msra.mxu0 0
        %925 = vmatprep.subr.bf16.mxu0 0
        %926 = vmatpush2.bf16.xpose.msra.mxu0 0
        %927 = vmatprep.subr.bf16.mxu0 0
        %928 = vmatpush2.bf16.xpose.msra.mxu0 0
        %929 = vmatprep.subr.bf16.mxu0 0
        %930 = vmatpush2.bf16.xpose.msra.mxu0 0
        %931 = vmatprep.subr.bf16.mxu0 0
        %932 = vmatpush2.bf16.xpose.msra.mxu0 0
        %933 = vmatprep.subr.bf16.mxu0 0
        %934 = vmatpush2.bf16.xpose.msra.mxu0 0
        %935 = vmatprep.subr.bf16.mxu0 0
        %936 = vmatpush2.bf16.xpose.msra.mxu0 0
        %937 = vmatprep.mubr.bf16.mxu0 0
        %938 = vmatmul.mubr.bf16.gmra.mxu0 %v900
        %v939 = vpop.f32.mrf.mxu0
        %v940 = vadd.f32 0.0, %v939
        %v941 = vpop.f32.mrf.mxu0
        %v942 = vpop.f32.mrf.mxu0
        %v943 = vpop.f32.mrf.mxu0
        %944 = vdwg.mxu0
        %v945 = vsel %vm615, %v889, -inf
        %946 = vmax.xlane.f32.xlu0 %v945
        %v947 = vpop.xlane.xlu0 %946
        %v948 = vsel %vm615, %v940, -inf
        %949 = vmax.xlane.f32.xlu0 %v948
        %v950 = vpop.xlane.xlu0 %949
        %v951 = vsub.f32 %v889, %v947
        %v952 = vsub.f32 %v940, %v950
        %v953 = vmul.f32 %v951, 1.442695
        %v954 = vpow.pop %v953
        %v955 = vmul.f32 %v952, 1.442695
        %v956 = vpow.pop %v955
        %v957 = vsel %vm615, %v954, 0.0
        %958 = vadd.xlane.f32.xlu0 %v957
        %v959 = vpop.xlane.xlu0 %958
        %v960 = vsel %vm615, %v956, 0.0
        %961 = vadd.xlane.f32.xlu0 %v960
        %v962 = vpop.xlane.xlu0 %961
        %v963 = vrcp.pop %v959
        %v964 = vrcp.pop %v962
        %v965 = vmul.f32 %v954, %v963
        %v966 = vmul.f32 %v956, %v964
        %v967 = vpack.c.bf16 %v965, %v965
        %v968 = vpack.c.bf16 %v966, %v966
        %969 = vrot.lane.b32.xlu0 %v610, 56
        %v970 = vpop.permute.xlu0 %969
        %v972 = vsel %vm615, %v967, 0
        %v975 = vsel %vm740, %v970, 0
        %977 = vmatprep.subr.bf16.mxu0 0
        %978 = vmatpush1.bf16.msra.mxu0 0
        %979 = vmatprep.subr.bf16.mxu0 0
        %980 = vmatpush1.bf16.msra.mxu0 0
        %981 = vmatprep.subr.bf16.mxu0 0
        %982 = vmatpush1.bf16.msra.mxu0 0
        %983 = vmatprep.subr.bf16.mxu0 0
        %984 = vmatpush1.bf16.msra.mxu0 0
        %985 = vmatprep.subr.bf16.mxu0 0
        %986 = vmatpush1.bf16.msra.mxu0 0
        %987 = vmatprep.subr.bf16.mxu0 0
        %988 = vmatpush1.bf16.msra.mxu0 0
        %989 = vmatprep.subr.bf16.mxu0 0
        %990 = vmatpush1.bf16.msra.mxu0 0
        %991 = vmatprep.subr.bf16.mxu0 0
        %992 = vmatpush1.bf16.msra.mxu0 %v975
        %993 = vmatprep.subr.bf16.mxu0 0
        %994 = vmatpush2.bf16.msra.mxu0 0
        %995 = vmatprep.subr.bf16.mxu0 0
        %996 = vmatpush2.bf16.msra.mxu0 0
        %997 = vmatprep.subr.bf16.mxu0 0
        %998 = vmatpush2.bf16.msra.mxu0 0
        %999 = vmatprep.subr.bf16.mxu0 0
        %1000 = vmatpush2.bf16.msra.mxu0 0
        %1001 = vmatprep.subr.bf16.mxu0 0
        %1002 = vmatpush2.bf16.msra.mxu0 0
        %1003 = vmatprep.subr.bf16.mxu0 0
        %1004 = vmatpush2.bf16.msra.mxu0 0
        %1005 = vmatprep.subr.bf16.mxu0 0
        %1006 = vmatpush2.bf16.msra.mxu0 0
        %1007 = vmatprep.subr.bf16.mxu0 0
        %1008 = vmatpush2.bf16.msra.mxu0 0
        %1009 = vmatprep.mubr.bf16.mxu0 0
        %1010 = vmatmul.mubr.bf16.gmra.mxu0 %v972
        %v1011 = vpop.f32.mrf.mxu0
        %v1012 = vadd.f32 0.0, %v1011
        %v1013 = vpop.f32.mrf.mxu0
        %v1014 = vpop.f32.mrf.mxu0
        %v1015 = vpop.f32.mrf.mxu0
        %1016 = vdwg.mxu0
        %1017 = vrot.lane.b32.xlu0 %v611, 56
        %v1018 = vpop.permute.xlu0 %1017
        %v1020 = vsel %vm615, %v968, 0
        %v1023 = vsel %vm740, %v1018, 0
        %1025 = vmatprep.subr.bf16.mxu0 0
        %1026 = vmatpush1.bf16.msra.mxu0 0
        %1027 = vmatprep.subr.bf16.mxu0 0
        %1028 = vmatpush1.bf16.msra.mxu0 0
        %1029 = vmatprep.subr.bf16.mxu0 0
        %1030 = vmatpush1.bf16.msra.mxu0 0
        %1031 = vmatprep.subr.bf16.mxu0 0
        %1032 = vmatpush1.bf16.msra.mxu0 0
        %1033 = vmatprep.subr.bf16.mxu0 0
        %1034 = vmatpush1.bf16.msra.mxu0 0
        %1035 = vmatprep.subr.bf16.mxu0 0
        %1036 = vmatpush1.bf16.msra.mxu0 0
        %1037 = vmatprep.subr.bf16.mxu0 0
        %1038 = vmatpush1.bf16.msra.mxu0 0
        %1039 = vmatprep.subr.bf16.mxu0 0
        %1040 = vmatpush1.bf16.msra.mxu0 %v1023
        %1041 = vmatprep.subr.bf16.mxu0 0
        %1042 = vmatpush2.bf16.msra.mxu0 0
        %1043 = vmatprep.subr.bf16.mxu0 0
        %1044 = vmatpush2.bf16.msra.mxu0 0
        %1045 = vmatprep.subr.bf16.mxu0 0
        %1046 = vmatpush2.bf16.msra.mxu0 0
        %1047 = vmatprep.subr.bf16.mxu0 0
        %1048 = vmatpush2.bf16.msra.mxu0 0
        %1049 = vmatprep.subr.bf16.mxu0 0
        %1050 = vmatpush2.bf16.msra.mxu0 0
        %1051 = vmatprep.subr.bf16.mxu0 0
        %1052 = vmatpush2.bf16.msra.mxu0 0
        %1053 = vmatprep.subr.bf16.mxu0 0
        %1054 = vmatpush2.bf16.msra.mxu0 0
        %1055 = vmatprep.subr.bf16.mxu0 0
        %1056 = vmatpush2.bf16.msra.mxu0 0
        %1057 = vmatprep.mubr.bf16.mxu0 0
        %1058 = vmatmul.mubr.bf16.gmra.mxu0 %v1020
        %v1059 = vpop.f32.mrf.mxu0
        %v1060 = vadd.f32 0.0, %v1059
        %v1061 = vpop.f32.mrf.mxu0
        %v1062 = vpop.f32.mrf.mxu0
        %v1063 = vpop.f32.mrf.mxu0
        %1064 = vdwg.mxu0
        %v1065 = vpack.c.bf16 %v1060, %v1012
        %v1067 = vunpack.c.l.b16 %v1065
        %v1068 = vunpack.c.h.b16 %v1065
        %v1069 = vpack.c.b16 %v1067, %v1067
        %v1070 = vpack.c.b16 %v1068, %v1068
        %1071 = vrot.lane.b32.xlu0 %v1069, 8
        %v1072 = vpop.permute.xlu0 %1071
        %1073 = vrot.lane.b32.xlu0 %v1070, 8
        %v1074 = vpop.permute.xlu0 %1073
        %vm1077 = vcmask 126016
        %1078 = vst.msk [vmem:[#allocation2] sm:$0xf] %vm1077, %v1072
        %1079 = vst.msk [vmem:[#allocation2 + $0x4] sm:$0xf] %vm1077, %v1074
        %1080 = vrot.lane.b32.xlu0 %v608, 112
        %v1081 = vpop.permute.xlu0 %1080
        %1082 = vrot.lane.b32.xlu0 %v610, 80
        %v1083 = vpop.permute.xlu0 %1082
        %v1085 = vsel %vm615, %v1081, 0
        %v1088 = vsel %vm615, %v1083, 0
        %1090 = vmatprep.subr.bf16.mxu0 0
        %1091 = vmatpush1.bf16.xpose.msra.mxu0 0
        %1092 = vmatprep.subr.bf16.mxu0 0
        %1093 = vmatpush1.bf16.xpose.msra.mxu0 0
        %1094 = vmatprep.subr.bf16.mxu0 0
        %1095 = vmatpush1.bf16.xpose.msra.mxu0 0
        %1096 = vmatprep.subr.bf16.mxu0 0
        %1097 = vmatpush1.bf16.xpose.msra.mxu0 0
        %1098 = vmatprep.subr.bf16.mxu0 0
        %1099 = vmatpush1.bf16.xpose.msra.mxu0 0
        %1100 = vmatprep.subr.bf16.mxu0 0
        %1101 = vmatpush1.bf16.xpose.msra.mxu0 0
        %1102 = vmatprep.subr.bf16.mxu0 0
        %1103 = vmatpush1.bf16.xpose.msra.mxu0 0
        %1104 = vmatprep.subr.bf16.mxu0 0
        %1105 = vmatpush1.bf16.xpose.msra.mxu0 %v1088
        %1106 = vmatprep.subr.bf16.mxu0 0
        %1107 = vmatpush2.bf16.xpose.msra.mxu0 0
        %1108 = vmatprep.subr.bf16.mxu0 0
        %1109 = vmatpush2.bf16.xpose.msra.mxu0 0
        %1110 = vmatprep.subr.bf16.mxu0 0
        %1111 = vmatpush2.bf16.xpose.msra.mxu0 0
        %1112 = vmatprep.subr.bf16.mxu0 0
        %1113 = vmatpush2.bf16.xpose.msra.mxu0 0
        %1114 = vmatprep.subr.bf16.mxu0 0
        %1115 = vmatpush2.bf16.xpose.msra.mxu0 0
        %1116 = vmatprep.subr.bf16.mxu0 0
        %1117 = vmatpush2.bf16.xpose.msra.mxu0 0
        %1118 = vmatprep.subr.bf16.mxu0 0
        %1119 = vmatpush2.bf16.xpose.msra.mxu0 0
        %1120 = vmatprep.subr.bf16.mxu0 0
        %1121 = vmatpush2.bf16.xpose.msra.mxu0 0
        %1122 = vmatprep.mubr.bf16.mxu0 0
        %1123 = vmatmul.mubr.bf16.gmra.mxu0 %v1085
        %v1124 = vpop.f32.mrf.mxu0
        %v1125 = vadd.f32 0.0, %v1124
        %v1126 = vpop.f32.mrf.mxu0
        %v1127 = vpop.f32.mrf.mxu0
        %v1128 = vpop.f32.mrf.mxu0
        %1129 = vdwg.mxu0
        %1130 = vrot.lane.b32.xlu0 %v609, 112
        %v1131 = vpop.permute.xlu0 %1130
        %1132 = vrot.lane.b32.xlu0 %v611, 80
        %v1133 = vpop.permute.xlu0 %1132
        %v1135 = vsel %vm615, %v1131, 0
        %v1138 = vsel %vm615, %v1133, 0
        %1140 = vmatprep.subr.bf16.mxu0 0
        %1141 = vmatpush1.bf16.xpose.msra.mxu0 0
        %1142 = vmatprep.subr.bf16.mxu0 0
        %1143 = vmatpush1.bf16.xpose.msra.mxu0 0
        %1144 = vmatprep.subr.bf16.mxu0 0
        %1145 = vmatpush1.bf16.xpose.msra.mxu0 0
        %1146 = vmatprep.subr.bf16.mxu0 0
        %1147 = vmatpush1.bf16.xpose.msra.mxu0 0
        %1148 = vmatprep.subr.bf16.mxu0 0
        %1149 = vmatpush1.bf16.xpose.msra.mxu0 0
        %1150 = vmatprep.subr.bf16.mxu0 0
        %1151 = vmatpush1.bf16.xpose.msra.mxu0 0
        %1152 = vmatprep.subr.bf16.mxu0 0
        %1153 = vmatpush1.bf16.xpose.msra.mxu0 0
        %1154 = vmatprep.subr.bf16.mxu0 0
        %1155 = vmatpush1.bf16.xpose.msra.mxu0 %v1138
        %1156 = vmatprep.subr.bf16.mxu0 0
        %1157 = vmatpush2.bf16.xpose.msra.mxu0 0
        %1158 = vmatprep.subr.bf16.mxu0 0
        %1159 = vmatpush2.bf16.xpose.msra.mxu0 0
        %1160 = vmatprep.subr.bf16.mxu0 0
        %1161 = vmatpush2.bf16.xpose.msra.mxu0 0
        %1162 = vmatprep.subr.bf16.mxu0 0
        %1163 = vmatpush2.bf16.xpose.msra.mxu0 0
        %1164 = vmatprep.subr.bf16.mxu0 0
        %1165 = vmatpush2.bf16.xpose.msra.mxu0 0
        %1166 = vmatprep.subr.bf16.mxu0 0
        %1167 = vmatpush2.bf16.xpose.msra.mxu0 0
        %1168 = vmatprep.subr.bf16.mxu0 0
        %1169 = vmatpush2.bf16.xpose.msra.mxu0 0
        %1170 = vmatprep.subr.bf16.mxu0 0
        %1171 = vmatpush2.bf16.xpose.msra.mxu0 0
        %1172 = vmatprep.mubr.bf16.mxu0 0
        %1173 = vmatmul.mubr.bf16.gmra.mxu0 %v1135
        %v1174 = vpop.f32.mrf.mxu0
        %v1175 = vadd.f32 0.0, %v1174
        %v1176 = vpop.f32.mrf.mxu0
        %v1177 = vpop.f32.mrf.mxu0
        %v1178 = vpop.f32.mrf.mxu0
        %1179 = vdwg.mxu0
        %v1180 = vsel %vm615, %v1125, -inf
        %1181 = vmax.xlane.f32.xlu0 %v1180
        %v1182 = vpop.xlane.xlu0 %1181
        %v1183 = vsel %vm615, %v1175, -inf
        %1184 = vmax.xlane.f32.xlu0 %v1183
        %v1185 = vpop.xlane.xlu0 %1184
        %v1186 = vsub.f32 %v1125, %v1182
        %v1187 = vsub.f32 %v1175, %v1185
        %v1188 = vmul.f32 %v1186, 1.442695
        %v1189 = vpow.pop %v1188
        %v1190 = vmul.f32 %v1187, 1.442695
        %v1191 = vpow.pop %v1190
        %v1192 = vsel %vm615, %v1189, 0.0
        %1193 = vadd.xlane.f32.xlu0 %v1192
        %v1194 = vpop.xlane.xlu0 %1193
        %v1195 = vsel %vm615, %v1191, 0.0
        %1196 = vadd.xlane.f32.xlu0 %v1195
        %v1197 = vpop.xlane.xlu0 %1196
        %v1198 = vrcp.pop %v1194
        %v1199 = vrcp.pop %v1197
        %v1200 = vmul.f32 %v1189, %v1198
        %v1201 = vmul.f32 %v1191, %v1199
        %v1202 = vpack.c.bf16 %v1200, %v1200
        %v1203 = vpack.c.bf16 %v1201, %v1201
        %1204 = vrot.lane.b32.xlu0 %v610, 48
        %v1205 = vpop.permute.xlu0 %1204
        %v1207 = vsel %vm615, %v1202, 0
        %v1210 = vsel %vm740, %v1205, 0
        %1212 = vmatprep.subr.bf16.mxu0 0
        %1213 = vmatpush1.bf16.msra.mxu0 0
        %1214 = vmatprep.subr.bf16.mxu0 0
        %1215 = vmatpush1.bf16.msra.mxu0 0
        %1216 = vmatprep.subr.bf16.mxu0 0
        %1217 = vmatpush1.bf16.msra.mxu0 0
        %1218 = vmatprep.subr.bf16.mxu0 0
        %1219 = vmatpush1.bf16.msra.mxu0 0
        %1220 = vmatprep.subr.bf16.mxu0 0
        %1221 = vmatpush1.bf16.msra.mxu0 0
        %1222 = vmatprep.subr.bf16.mxu0 0
        %1223 = vmatpush1.bf16.msra.mxu0 0
        %1224 = vmatprep.subr.bf16.mxu0 0
        %1225 = vmatpush1.bf16.msra.mxu0 0
        %1226 = vmatprep.subr.bf16.mxu0 0
        %1227 = vmatpush1.bf16.msra.mxu0 %v1210
        %1228 = vmatprep.subr.bf16.mxu0 0
        %1229 = vmatpush2.bf16.msra.mxu0 0
        %1230 = vmatprep.subr.bf16.mxu0 0
        %1231 = vmatpush2.bf16.msra.mxu0 0
        %1232 = vmatprep.subr.bf16.mxu0 0
        %1233 = vmatpush2.bf16.msra.mxu0 0
        %1234 = vmatprep.subr.bf16.mxu0 0
        %1235 = vmatpush2.bf16.msra.mxu0 0
        %1236 = vmatprep.subr.bf16.mxu0 0
        %1237 = vmatpush2.bf16.msra.mxu0 0
        %1238 = vmatprep.subr.bf16.mxu0 0
        %1239 = vmatpush2.bf16.msra.mxu0 0
        %1240 = vmatprep.subr.bf16.mxu0 0
        %1241 = vmatpush2.bf16.msra.mxu0 0
        %1242 = vmatprep.subr.bf16.mxu0 0
        %1243 = vmatpush2.bf16.msra.mxu0 0
        %1244 = vmatprep.mubr.bf16.mxu0 0
        %1245 = vmatmul.mubr.bf16.gmra.mxu0 %v1207
        %v1246 = vpop.f32.mrf.mxu0
        %v1247 = vadd.f32 0.0, %v1246
        %v1248 = vpop.f32.mrf.mxu0
        %v1249 = vpop.f32.mrf.mxu0
        %v1250 = vpop.f32.mrf.mxu0
        %1251 = vdwg.mxu0
        %1252 = vrot.lane.b32.xlu0 %v611, 48
        %v1253 = vpop.permute.xlu0 %1252
        %v1255 = vsel %vm615, %v1203, 0
        %v1258 = vsel %vm740, %v1253, 0
        %1260 = vmatprep.subr.bf16.mxu0 0
        %1261 = vmatpush1.bf16.msra.mxu0 0
        %1262 = vmatprep.subr.bf16.mxu0 0
        %1263 = vmatpush1.bf16.msra.mxu0 0
        %1264 = vmatprep.subr.bf16.mxu0 0
        %1265 = vmatpush1.bf16.msra.mxu0 0
        %1266 = vmatprep.subr.bf16.mxu0 0
        %1267 = vmatpush1.bf16.msra.mxu0 0
        %1268 = vmatprep.subr.bf16.mxu0 0
        %1269 = vmatpush1.bf16.msra.mxu0 0
        %1270 = vmatprep.subr.bf16.mxu0 0
        %1271 = vmatpush1.bf16.msra.mxu0 0
        %1272 = vmatprep.subr.bf16.mxu0 0
        %1273 = vmatpush1.bf16.msra.mxu0 0
        %1274 = vmatprep.subr.bf16.mxu0 0
        %1275 = vmatpush1.bf16.msra.mxu0 %v1258
        %1276 = vmatprep.subr.bf16.mxu0 0
        %1277 = vmatpush2.bf16.msra.mxu0 0
        %1278 = vmatprep.subr.bf16.mxu0 0
        %1279 = vmatpush2.bf16.msra.mxu0 0
        %1280 = vmatprep.subr.bf16.mxu0 0
        %1281 = vmatpush2.bf16.msra.mxu0 0
        %1282 = vmatprep.subr.bf16.mxu0 0
        %1283 = vmatpush2.bf16.msra.mxu0 0
        %1284 = vmatprep.subr.bf16.mxu0 0
        %1285 = vmatpush2.bf16.msra.mxu0 0
        %1286 = vmatprep.subr.bf16.mxu0 0
        %1287 = vmatpush2.bf16.msra.mxu0 0
        %1288 = vmatprep.subr.bf16.mxu0 0
        %1289 = vmatpush2.bf16.msra.mxu0 0
        %1290 = vmatprep.subr.bf16.mxu0 0
        %1291 = vmatpush2.bf16.msra.mxu0 0
        %1292 = vmatprep.mubr.bf16.mxu0 0
        %1293 = vmatmul.mubr.bf16.gmra.mxu0 %v1255
        %v1294 = vpop.f32.mrf.mxu0
        %v1295 = vadd.f32 0.0, %v1294
        %v1296 = vpop.f32.mrf.mxu0
        %v1297 = vpop.f32.mrf.mxu0
        %v1298 = vpop.f32.mrf.mxu0
        %1299 = vdwg.mxu0
        %v1300 = vpack.c.bf16 %v1295, %v1247
        %v1302 = vunpack.c.l.b16 %v1300
        %v1303 = vunpack.c.h.b16 %v1300
        %v1304 = vpack.c.b16 %v1302, %v1302
        %v1305 = vpack.c.b16 %v1303, %v1303
        %1306 = vrot.lane.b32.xlu0 %v1304, 16
        %v1307 = vpop.permute.xlu0 %1306
        %1308 = vrot.lane.b32.xlu0 %v1305, 16
        %v1309 = vpop.permute.xlu0 %1308
        %vm1312 = vcmask 191616
        %1313 = vst.msk [vmem:[#allocation2] sm:$0xf] %vm1312, %v1307
        %1314 = vst.msk [vmem:[#allocation2 + $0x4] sm:$0xf] %vm1312, %v1309
        %1315 = vrot.lane.b32.xlu0 %v608, 104
        %v1316 = vpop.permute.xlu0 %1315
        %1317 = vrot.lane.b32.xlu0 %v610, 72
        %v1318 = vpop.permute.xlu0 %1317
        %v1320 = vsel %vm615, %v1316, 0
        %v1323 = vsel %vm615, %v1318, 0
        %1325 = vmatprep.subr.bf16.mxu0 0
        %1326 = vmatpush1.bf16.xpose.msra.mxu0 0
        %1327 = vmatprep.subr.bf16.mxu0 0
        %1328 = vmatpush1.bf16.xpose.msra.mxu0 0
        %1329 = vmatprep.subr.bf16.mxu0 0
        %1330 = vmatpush1.bf16.xpose.msra.mxu0 0
        %1331 = vmatprep.subr.bf16.mxu0 0
        %1332 = vmatpush1.bf16.xpose.msra.mxu0 0
        %1333 = vmatprep.subr.bf16.mxu0 0
        %1334 = vmatpush1.bf16.xpose.msra.mxu0 0
        %1335 = vmatprep.subr.bf16.mxu0 0
        %1336 = vmatpush1.bf16.xpose.msra.mxu0 0
        %1337 = vmatprep.subr.bf16.mxu0 0
        %1338 = vmatpush1.bf16.xpose.msra.mxu0 0
        %1339 = vmatprep.subr.bf16.mxu0 0
        %1340 = vmatpush1.bf16.xpose.msra.mxu0 %v1323
        %1341 = vmatprep.subr.bf16.mxu0 0
        %1342 = vmatpush2.bf16.xpose.msra.mxu0 0
        %1343 = vmatprep.subr.bf16.mxu0 0
        %1344 = vmatpush2.bf16.xpose.msra.mxu0 0
        %1345 = vmatprep.subr.bf16.mxu0 0
        %1346 = vmatpush2.bf16.xpose.msra.mxu0 0
        %1347 = vmatprep.subr.bf16.mxu0 0
        %1348 = vmatpush2.bf16.xpose.msra.mxu0 0
        %1349 = vmatprep.subr.bf16.mxu0 0
        %1350 = vmatpush2.bf16.xpose.msra.mxu0 0
        %1351 = vmatprep.subr.bf16.mxu0 0
        %1352 = vmatpush2.bf16.xpose.msra.mxu0 0
        %1353 = vmatprep.subr.bf16.mxu0 0
        %1354 = vmatpush2.bf16.xpose.msra.mxu0 0
        %1355 = vmatprep.subr.bf16.mxu0 0
        %1356 = vmatpush2.bf16.xpose.msra.mxu0 0
        %1357 = vmatprep.mubr.bf16.mxu0 0
        %1358 = vmatmul.mubr.bf16.gmra.mxu0 %v1320
        %v1359 = vpop.f32.mrf.mxu0
        %v1360 = vadd.f32 0.0, %v1359
        %v1361 = vpop.f32.mrf.mxu0
        %v1362 = vpop.f32.mrf.mxu0
        %v1363 = vpop.f32.mrf.mxu0
        %1364 = vdwg.mxu0
        %1365 = vrot.lane.b32.xlu0 %v609, 104
        %v1366 = vpop.permute.xlu0 %1365
        %1367 = vrot.lane.b32.xlu0 %v611, 72
        %v1368 = vpop.permute.xlu0 %1367
        %v1370 = vsel %vm615, %v1366, 0
        %v1373 = vsel %vm615, %v1368, 0
        %1375 = vmatprep.subr.bf16.mxu0 0
        %1376 = vmatpush1.bf16.xpose.msra.mxu0 0
        %1377 = vmatprep.subr.bf16.mxu0 0
        %1378 = vmatpush1.bf16.xpose.msra.mxu0 0
        %1379 = vmatprep.subr.bf16.mxu0 0
        %1380 = vmatpush1.bf16.xpose.msra.mxu0 0
        %1381 = vmatprep.subr.bf16.mxu0 0
        %1382 = vmatpush1.bf16.xpose.msra.mxu0 0
        %1383 = vmatprep.subr.bf16.mxu0 0
        %1384 = vmatpush1.bf16.xpose.msra.mxu0 0
        %1385 = vmatprep.subr.bf16.mxu0 0
        %1386 = vmatpush1.bf16.xpose.msra.mxu0 0
        %1387 = vmatprep.subr.bf16.mxu0 0
        %1388 = vmatpush1.bf16.xpose.msra.mxu0 0
        %1389 = vmatprep.subr.bf16.mxu0 0
        %1390 = vmatpush1.bf16.xpose.msra.mxu0 %v1373
        %1391 = vmatprep.subr.bf16.mxu0 0
        %1392 = vmatpush2.bf16.xpose.msra.mxu0 0
        %1393 = vmatprep.subr.bf16.mxu0 0
        %1394 = vmatpush2.bf16.xpose.msra.mxu0 0
        %1395 = vmatprep.subr.bf16.mxu0 0
        %1396 = vmatpush2.bf16.xpose.msra.mxu0 0
        %1397 = vmatprep.subr.bf16.mxu0 0
        %1398 = vmatpush2.bf16.xpose.msra.mxu0 0
        %1399 = vmatprep.subr.bf16.mxu0 0
        %1400 = vmatpush2.bf16.xpose.msra.mxu0 0
        %1401 = vmatprep.subr.bf16.mxu0 0
        %1402 = vmatpush2.bf16.xpose.msra.mxu0 0
        %1403 = vmatprep.subr.bf16.mxu0 0
        %1404 = vmatpush2.bf16.xpose.msra.mxu0 0
        %1405 = vmatprep.subr.bf16.mxu0 0
        %1406 = vmatpush2.bf16.xpose.msra.mxu0 0
        %1407 = vmatprep.mubr.bf16.mxu0 0
        %1408 = vmatmul.mubr.bf16.gmra.mxu0 %v1370
        %v1409 = vpop.f32.mrf.mxu0
        %v1410 = vadd.f32 0.0, %v1409
        %v1411 = vpop.f32.mrf.mxu0
        %v1412 = vpop.f32.mrf.mxu0
        %v1413 = vpop.f32.mrf.mxu0
        %1414 = vdwg.mxu0
        %v1415 = vsel %vm615, %v1360, -inf
        %1416 = vmax.xlane.f32.xlu0 %v1415
        %v1417 = vpop.xlane.xlu0 %1416
        %v1418 = vsel %vm615, %v1410, -inf
        %1419 = vmax.xlane.f32.xlu0 %v1418
        %v1420 = vpop.xlane.xlu0 %1419
        %v1421 = vsub.f32 %v1360, %v1417
        %v1422 = vsub.f32 %v1410, %v1420
        %v1423 = vmul.f32 %v1421, 1.442695
        %v1424 = vpow.pop %v1423
        %v1425 = vmul.f32 %v1422, 1.442695
        %v1426 = vpow.pop %v1425
        %v1427 = vsel %vm615, %v1424, 0.0
        %1428 = vadd.xlane.f32.xlu0 %v1427
        %v1429 = vpop.xlane.xlu0 %1428
        %v1430 = vsel %vm615, %v1426, 0.0
        %1431 = vadd.xlane.f32.xlu0 %v1430
        %v1432 = vpop.xlane.xlu0 %1431
        %v1433 = vrcp.pop %v1429
        %v1434 = vrcp.pop %v1432
        %v1435 = vmul.f32 %v1424, %v1433
        %v1436 = vmul.f32 %v1426, %v1434
        %v1437 = vpack.c.bf16 %v1435, %v1435
        %v1438 = vpack.c.bf16 %v1436, %v1436
        %1439 = vrot.lane.b32.xlu0 %v610, 40
        %v1440 = vpop.permute.xlu0 %1439
        %v1442 = vsel %vm615, %v1437, 0
        %v1445 = vsel %vm740, %v1440, 0
        %1447 = vmatprep.subr.bf16.mxu0 0
        %1448 = vmatpush1.bf16.msra.mxu0 0
        %1449 = vmatprep.subr.bf16.mxu0 0
        %1450 = vmatpush1.bf16.msra.mxu0 0
        %1451 = vmatprep.subr.bf16.mxu0 0
        %1452 = vmatpush1.bf16.msra.mxu0 0
        %1453 = vmatprep.subr.bf16.mxu0 0
        %1454 = vmatpush1.bf16.msra.mxu0 0
        %1455 = vmatprep.subr.bf16.mxu0 0
        %1456 = vmatpush1.bf16.msra.mxu0 0
        %1457 = vmatprep.subr.bf16.mxu0 0
        %1458 = vmatpush1.bf16.msra.mxu0 0
        %1459 = vmatprep.subr.bf16.mxu0 0
        %1460 = vmatpush1.bf16.msra.mxu0 0
        %1461 = vmatprep.subr.bf16.mxu0 0
        %1462 = vmatpush1.bf16.msra.mxu0 %v1445
        %1463 = vmatprep.subr.bf16.mxu0 0
        %1464 = vmatpush2.bf16.msra.mxu0 0
        %1465 = vmatprep.subr.bf16.mxu0 0
        %1466 = vmatpush2.bf16.msra.mxu0 0
        %1467 = vmatprep.subr.bf16.mxu0 0
        %1468 = vmatpush2.bf16.msra.mxu0 0
        %1469 = vmatprep.subr.bf16.mxu0 0
        %1470 = vmatpush2.bf16.msra.mxu0 0
        %1471 = vmatprep.subr.bf16.mxu0 0
        %1472 = vmatpush2.bf16.msra.mxu0 0
        %1473 = vmatprep.subr.bf16.mxu0 0
        %1474 = vmatpush2.bf16.msra.mxu0 0
        %1475 = vmatprep.subr.bf16.mxu0 0
        %1476 = vmatpush2.bf16.msra.mxu0 0
        %1477 = vmatprep.subr.bf16.mxu0 0
        %1478 = vmatpush2.bf16.msra.mxu0 0
        %1479 = vmatprep.mubr.bf16.mxu0 0
        %1480 = vmatmul.mubr.bf16.gmra.mxu0 %v1442
        %v1481 = vpop.f32.mrf.mxu0
        %v1482 = vadd.f32 0.0, %v1481
        %v1483 = vpop.f32.mrf.mxu0
        %v1484 = vpop.f32.mrf.mxu0
        %v1485 = vpop.f32.mrf.mxu0
        %1486 = vdwg.mxu0
        %1487 = vrot.lane.b32.xlu0 %v611, 40
        %v1488 = vpop.permute.xlu0 %1487
        %v1490 = vsel %vm615, %v1438, 0
        %v1493 = vsel %vm740, %v1488, 0
        %1495 = vmatprep.subr.bf16.mxu0 0
        %1496 = vmatpush1.bf16.msra.mxu0 0
        %1497 = vmatprep.subr.bf16.mxu0 0
        %1498 = vmatpush1.bf16.msra.mxu0 0
        %1499 = vmatprep.subr.bf16.mxu0 0
        %1500 = vmatpush1.bf16.msra.mxu0 0
        %1501 = vmatprep.subr.bf16.mxu0 0
        %1502 = vmatpush1.bf16.msra.mxu0 0
        %1503 = vmatprep.subr.bf16.mxu0 0
        %1504 = vmatpush1.bf16.msra.mxu0 0
        %1505 = vmatprep.subr.bf16.mxu0 0
        %1506 = vmatpush1.bf16.msra.mxu0 0
        %1507 = vmatprep.subr.bf16.mxu0 0
        %1508 = vmatpush1.bf16.msra.mxu0 0
        %1509 = vmatprep.subr.bf16.mxu0 0
        %1510 = vmatpush1.bf16.msra.mxu0 %v1493
        %1511 = vmatprep.subr.bf16.mxu0 0
        %1512 = vmatpush2.bf16.msra.mxu0 0
        %1513 = vmatprep.subr.bf16.mxu0 0
        %1514 = vmatpush2.bf16.msra.mxu0 0
        %1515 = vmatprep.subr.bf16.mxu0 0
        %1516 = vmatpush2.bf16.msra.mxu0 0
        %1517 = vmatprep.subr.bf16.mxu0 0
        %1518 = vmatpush2.bf16.msra.mxu0 0
        %1519 = vmatprep.subr.bf16.mxu0 0
        %1520 = vmatpush2.bf16.msra.mxu0 0
        %1521 = vmatprep.subr.bf16.mxu0 0
        %1522 = vmatpush2.bf16.msra.mxu0 0
        %1523 = vmatprep.subr.bf16.mxu0 0
        %1524 = vmatpush2.bf16.msra.mxu0 0
        %1525 = vmatprep.subr.bf16.mxu0 0
        %1526 = vmatpush2.bf16.msra.mxu0 0
        %1527 = vmatprep.mubr.bf16.mxu0 0
        %1528 = vmatmul.mubr.bf16.gmra.mxu0 %v1490
        %v1529 = vpop.f32.mrf.mxu0
        %v1530 = vadd.f32 0.0, %v1529
        %v1531 = vpop.f32.mrf.mxu0
        %v1532 = vpop.f32.mrf.mxu0
        %v1533 = vpop.f32.mrf.mxu0
        %1534 = vdwg.mxu0
        %v1535 = vpack.c.bf16 %v1530, %v1482
        %v1537 = vunpack.c.l.b16 %v1535
        %v1538 = vunpack.c.h.b16 %v1535
        %v1539 = vpack.c.b16 %v1537, %v1537
        %v1540 = vpack.c.b16 %v1538, %v1538
        %1541 = vrot.lane.b32.xlu0 %v1539, 24
        %v1542 = vpop.permute.xlu0 %1541
        %1543 = vrot.lane.b32.xlu0 %v1540, 24
        %v1544 = vpop.permute.xlu0 %1543
        %vm1547 = vcmask 257216
        %1548 = vst.msk [vmem:[#allocation2] sm:$0xf] %vm1547, %v1542
        %1549 = vst.msk [vmem:[#allocation2 + $0x4] sm:$0xf] %vm1547, %v1544
        %v1550 = vld [vmem:[#allocation2] sm:$0xf]
        %v1551 = vld [vmem:[#allocation2 + $0x4] sm:$0xf]
        %v1552 = vld [vmem:[#allocation6] sm:$0xf]
        %v1553 = vld [vmem:[#allocation6 + $0x4] sm:$0xf]
        %v1554 = vld [vmem:[#allocation6 + $0x8] sm:$0xf]
        %v1555 = vld [vmem:[#allocation6 + $0xc] sm:$0xf]
        %v1556 = vld [vmem:[#allocation8] sm:$0x1]
        %v1558 = vlaneseq
        %v1559 = vshrl.u32 %v1558, 7
        %v1560 = vsub.s32 0, %v1559
        %v1561 = vrot.slane %v1556, %v1560
        %v1565 = vunpack.c.l.b16 %v1550
        %v1566 = vunpack.c.l.b16 %v1551
        %v1567 = vpack.c.b16 %v1566, %v1565
        %v1572 = vunpack.c.l.b16 %v1552
        %v1573 = vunpack.c.l.b16 %v1553
        %v1574 = vunpack.c.l.b16 %v1554
        %v1575 = vunpack.c.l.b16 %v1555
        %v1576 = vpack.c.b16 %v1573, %v1572
        %v1577 = vpack.c.b16 %v1575, %v1574
        %v1581 = vsel %vm561, %v1567, 0
        %1583 = vmatprep.subr.bf16.mxu0 0
        %1584 = vmatpush1.bf16.msra.mxu0 0
        %1585 = vmatprep.subr.bf16.mxu0 0
        %1586 = vmatpush1.bf16.msra.mxu0 0
        %1587 = vmatprep.subr.bf16.mxu0 0
        %1588 = vmatpush1.bf16.msra.mxu0 0
        %1589 = vmatprep.subr.bf16.mxu0 0
        %1590 = vmatpush1.bf16.msra.mxu0 0
        %1591 = vmatprep.subr.bf16.mxu0 0
        %1592 = vmatpush1.bf16.msra.mxu0 0
        %1593 = vmatprep.subr.bf16.mxu0 0
        %1594 = vmatpush1.bf16.msra.mxu0 0
        %1595 = vmatprep.subr.bf16.mxu0 0
        %1596 = vmatpush1.bf16.msra.mxu0 %v1577
        %1597 = vmatprep.subr.bf16.mxu0 0
        %1598 = vmatpush1.bf16.msra.mxu0 %v1576
        %1599 = vmatprep.subr.bf16.mxu0 0
        %1600 = vmatpush2.bf16.msra.mxu0 0
        %1601 = vmatprep.subr.bf16.mxu0 0
        %1602 = vmatpush2.bf16.msra.mxu0 0
        %1603 = vmatprep.subr.bf16.mxu0 0
        %1604 = vmatpush2.bf16.msra.mxu0 0
        %1605 = vmatprep.subr.bf16.mxu0 0
        %1606 = vmatpush2.bf16.msra.mxu0 0
        %1607 = vmatprep.subr.bf16.mxu0 0
        %1608 = vmatpush2.bf16.msra.mxu0 0
        %1609 = vmatprep.subr.bf16.mxu0 0
        %1610 = vmatpush2.bf16.msra.mxu0 0
        %1611 = vmatprep.subr.bf16.mxu0 0
        %1612 = vmatpush2.bf16.msra.mxu0 0
        %1613 = vmatprep.subr.bf16.mxu0 0
        %1614 = vmatpush2.bf16.msra.mxu0 0
        %1615 = vmatprep.mubr.bf16.mxu0 0
        %1616 = vmatmul.mubr.bf16.gmra.mxu0 %v1581
        %v1617 = vpop.f32.mrf.mxu0
        %v1618 = vadd.f32 %v1561, %v1617
        %v1619 = vpop.f32.mrf.mxu0
        %v1620 = vpop.f32.mrf.mxu0
        %v1621 = vadd.f32 %v1561, %v1620
        %v1622 = vpop.f32.mrf.mxu0
        %1623 = vdwg.mxu0
        %v1624 = vadd.f32 %v535, %v1618
        %v1625 = vadd.f32 %v536, %v1621
        %v1626 = vsel %vm561, %v1624, 0.0
        %1627 = vadd.xlane.f32.xlu0 %v1626
        %v1628 = vpop.xlane.xlu0 %1627
        %v1629 = vsel %vm561, %v1625, 0.0
        %1630 = vadd.xlane.f32.xlu0 %v1629
        %v1631 = vpop.xlane.xlu0 %1630
        %v1632 = vrcp.pop 32.0
        %v1633 = vmul.f32 %v1628, %v1632
        %v1634 = vmul.f32 %v1631, %v1632
        %v1635 = vsub.f32 %v1624, %v1633
        %v1636 = vsub.f32 %v1625, %v1634
        %v1637 = vmul.f32 %v1635, %v1635
        %v1638 = vmul.f32 %v1636, %v1636
        %v1639 = vsel %vm561, %v1637, 0.0
        %1640 = vadd.xlane.f32.xlu0 %v1639
        %v1641 = vpop.xlane.xlu0 %1640
        %v1642 = vsel %vm561, %v1638, 0.0
        %1643 = vadd.xlane.f32.xlu0 %v1642
        %v1644 = vpop.xlane.xlu0 %1643
        %v1645 = vmul.f32 %v1641, %v1632
        %v1646 = vmul.f32 %v1644, %v1632
        %v1647 = vadd.f32 %v1645, 1e-05
        %v1648 = vadd.f32 %v1646, 1e-05
        %v1649 = vrsqrt.pop %v1647
        %v1650 = vrsqrt.pop %v1648
        %v1651 = vmul.f32 %v1635, %v1649
        %v1652 = vmul.f32 %v1636, %v1650
        %v1653 = vld [vmem:[#allocation9] sm:$0x1]
        %v1655 = vlaneseq
        %v1656 = vshrl.u32 %v1655, 7
        %v1657 = vsub.s32 0, %v1656
        %v1658 = vrot.slane %v1653, %v1657
        %v1660 = vmul.f32 %v1651, %v1658
        %v1661 = vmul.f32 %v1652, %v1658
        %v1662 = vld [vmem:[#allocation11] sm:$0x1]
        %v1664 = vlaneseq
        %v1665 = vshrl.u32 %v1664, 7
        %v1666 = vsub.s32 0, %v1665
        %v1667 = vrot.slane %v1662, %v1666
        %v1669 = vadd.f32 %v1660, %v1667
        %v1670 = vadd.f32 %v1661, %v1667
        %v1671 = vpack.c.bf16 %v1670, %v1669
        %v1672 = vld [vmem:[#allocation12] sm:$0xf]
        %v1673 = vld [vmem:[#allocation12 + $0x4] sm:$0xf]
        %v1674 = vld [vmem:[#allocation12 + $0x8] sm:$0xf]
        %v1675 = vld [vmem:[#allocation12 + $0xc] sm:$0xf]
        %v1676 = vld [vmem:[#allocation14] sm:$0x1]
        %v1678 = vlaneseq
        %v1679 = vshrl.u32 %v1678, 7
        %v1680 = vsub.s32 0, %v1679
        %v1681 = vrot.slane %v1676, %v1680
        %v1687 = vunpack.c.l.b16 %v1672
        %v1688 = vunpack.c.l.b16 %v1673
        %v1689 = vunpack.c.l.b16 %v1674
        %v1690 = vunpack.c.l.b16 %v1675
        %v1691 = vpack.c.b16 %v1688, %v1687
        %v1692 = vpack.c.b16 %v1690, %v1689
        %v1696 = vsel %vm561, %v1671, 0
        %1698 = vmatprep.subr.bf16.mxu0 0
        %1699 = vmatpush1.bf16.msra.mxu0 0
        %1700 = vmatprep.subr.bf16.mxu0 0
        %1701 = vmatpush1.bf16.msra.mxu0 0
        %1702 = vmatprep.subr.bf16.mxu0 0
        %1703 = vmatpush1.bf16.msra.mxu0 0
        %1704 = vmatprep.subr.bf16.mxu0 0
        %1705 = vmatpush1.bf16.msra.mxu0 0
        %1706 = vmatprep.subr.bf16.mxu0 0
        %1707 = vmatpush1.bf16.msra.mxu0 0
        %1708 = vmatprep.subr.bf16.mxu0 0
        %1709 = vmatpush1.bf16.msra.mxu0 0
        %1710 = vmatprep.subr.bf16.mxu0 0
        %1711 = vmatpush1.bf16.msra.mxu0 %v1692
        %1712 = vmatprep.subr.bf16.mxu0 0
        %1713 = vmatpush1.bf16.msra.mxu0 %v1691
        %1714 = vmatprep.subr.bf16.mxu0 0
        %1715 = vmatpush2.bf16.msra.mxu0 0
        %1716 = vmatprep.subr.bf16.mxu0 0
        %1717 = vmatpush2.bf16.msra.mxu0 0
        %1718 = vmatprep.subr.bf16.mxu0 0
        %1719 = vmatpush2.bf16.msra.mxu0 0
        %1720 = vmatprep.subr.bf16.mxu0 0
        %1721 = vmatpush2.bf16.msra.mxu0 0
        %1722 = vmatprep.subr.bf16.mxu0 0
        %1723 = vmatpush2.bf16.msra.mxu0 0
        %1724 = vmatprep.subr.bf16.mxu0 0
        %1725 = vmatpush2.bf16.msra.mxu0 0
        %1726 = vmatprep.subr.bf16.mxu0 0
        %1727 = vmatpush2.bf16.msra.mxu0 0
        %1728 = vmatprep.subr.bf16.mxu0 0
        %1729 = vmatpush2.bf16.msra.mxu0 0
        %1730 = vmatprep.mubr.bf16.mxu0 0
        %1731 = vmatmul.mubr.bf16.gmra.mxu0 %v1696
        %v1732 = vpop.f32.mrf.mxu0
        %v1733 = vadd.f32 %v1681, %v1732
        %v1734 = vpop.f32.mrf.mxu0
        %v1735 = vpop.f32.mrf.mxu0
        %v1736 = vadd.f32 %v1681, %v1735
        %v1737 = vpop.f32.mrf.mxu0
        %1738 = vdwg.mxu0
        %v1739 = vmax.f32 %v1733, 0.0
        %v1740 = vmax.f32 %v1736, 0.0
        %v1741 = vpack.c.bf16 %v1740, %v1739
        %v1742 = vld [vmem:[%s9] sm:$0xf]
        %v1743 = vld [vmem:[%s9 + $0x4] sm:$0xf]
        %v1744 = vld [vmem:[%s9 + $0x8] sm:$0xf]
        %v1745 = vld [vmem:[%s9 + $0xc] sm:$0xf]
        %v1746 = vld [vmem:[%s9 + $0x10] sm:$0xf]
        %v1747 = vld [vmem:[%s9 + $0x14] sm:$0xf]
        %v1748 = vld [vmem:[%s9 + $0x18] sm:$0xf]
        %v1749 = vld [vmem:[%s9 + $0x1c] sm:$0xf]
        %v1750 = vld [vmem:[%s10] sm:$0x1]
        %v1752 = vlaneseq
        %v1753 = vshrl.u32 %v1752, 7
        %v1754 = vsub.s32 0, %v1753
        %v1755 = vrot.slane %v1750, %v1754
        %v1765 = vunpack.c.l.b16 %v1742
        %v1766 = vunpack.c.l.b16 %v1743
        %v1767 = vunpack.c.l.b16 %v1744
        %v1768 = vunpack.c.l.b16 %v1745
        %v1769 = vunpack.c.l.b16 %v1746
        %v1770 = vunpack.c.l.b16 %v1747
        %v1771 = vunpack.c.l.b16 %v1748
        %v1772 = vunpack.c.l.b16 %v1749
        %v1773 = vpack.c.b16 %v1766, %v1765
        %v1774 = vpack.c.b16 %v1768, %v1767
        %v1775 = vpack.c.b16 %v1770, %v1769
        %v1776 = vpack.c.b16 %v1772, %v1771
        %vm1781 = vcmask 523264
        %v1783 = vsel %vm1781, %v1741, 0
        %1785 = vmatprep.subr.bf16.mxu0 0
        %1786 = vmatpush1.bf16.msra.mxu0 0
        %1787 = vmatprep.subr.bf16.mxu0 0
        %1788 = vmatpush1.bf16.msra.mxu0 0
        %1789 = vmatprep.subr.bf16.mxu0 0
        %1790 = vmatpush1.bf16.msra.mxu0 0
        %1791 = vmatprep.subr.bf16.mxu0 0
        %1792 = vmatpush1.bf16.msra.mxu0 0
        %1793 = vmatprep.subr.bf16.mxu0 0
        %1794 = vmatpush1.bf16.msra.mxu0 %v1776
        %1795 = vmatprep.subr.bf16.mxu0 0
        %1796 = vmatpush1.bf16.msra.mxu0 %v1775
        %1797 = vmatprep.subr.bf16.mxu0 0
        %1798 = vmatpush1.bf16.msra.mxu0 %v1774
        %1799 = vmatprep.subr.bf16.mxu0 0
        %1800 = vmatpush1.bf16.msra.mxu0 %v1773
        %1801 = vmatprep.subr.bf16.mxu0 0
        %1802 = vmatpush2.bf16.msra.mxu0 0
        %1803 = vmatprep.subr.bf16.mxu0 0
        %1804 = vmatpush2.bf16.msra.mxu0 0
        %1805 = vmatprep.subr.bf16.mxu0 0
        %1806 = vmatpush2.bf16.msra.mxu0 0
        %1807 = vmatprep.subr.bf16.mxu0 0
        %1808 = vmatpush2.bf16.msra.mxu0 0
        %1809 = vmatprep.subr.bf16.mxu0 0
        %1810 = vmatpush2.bf16.msra.mxu0 0
        %1811 = vmatprep.subr.bf16.mxu0 0
        %1812 = vmatpush2.bf16.msra.mxu0 0
        %1813 = vmatprep.subr.bf16.mxu0 0
        %1814 = vmatpush2.bf16.msra.mxu0 0
        %1815 = vmatprep.subr.bf16.mxu0 0
        %1816 = vmatpush2.bf16.msra.mxu0 0
        %1817 = vmatprep.mubr.bf16.mxu0 0
        %1818 = vmatmul.mubr.bf16.gmra.mxu0 %v1783
        %v1819 = vpop.f32.mrf.mxu0
        %v1820 = vadd.f32 %v1755, %v1819
        %v1821 = vpop.f32.mrf.mxu0
        %v1822 = vpop.f32.mrf.mxu0
        %v1823 = vadd.f32 %v1755, %v1822
        %v1824 = vpop.f32.mrf.mxu0
        %1825 = vdwg.mxu0
        %v1826 = vadd.f32 %v1669, %v1820
        %v1827 = vadd.f32 %v1670, %v1823
        %v1828 = vsel %vm561, %v1826, 0.0
        %1829 = vadd.xlane.f32.xlu0 %v1828
        %v1830 = vpop.xlane.xlu0 %1829
        %v1831 = vsel %vm561, %v1827, 0.0
        %1832 = vadd.xlane.f32.xlu0 %v1831
        %v1833 = vpop.xlane.xlu0 %1832
        %v1834 = vmul.f32 %v1830, %v1632
        %v1835 = vmul.f32 %v1833, %v1632
        %v1836 = vsub.f32 %v1826, %v1834
        %v1837 = vsub.f32 %v1827, %v1835
        %v1838 = vmul.f32 %v1836, %v1836
        %v1839 = vmul.f32 %v1837, %v1837
        %v1840 = vsel %vm561, %v1838, 0.0
        %1841 = vadd.xlane.f32.xlu0 %v1840
        %v1842 = vpop.xlane.xlu0 %1841
        %v1843 = vsel %vm561, %v1839, 0.0
        %1844 = vadd.xlane.f32.xlu0 %v1843
        %v1845 = vpop.xlane.xlu0 %1844
        %v1846 = vmul.f32 %v1842, %v1632
        %v1847 = vmul.f32 %v1845, %v1632
        %v1848 = vadd.f32 %v1846, 1e-05
        %v1849 = vadd.f32 %v1847, 1e-05
        %v1850 = vrsqrt.pop %v1848
        %v1851 = vrsqrt.pop %v1849
        %v1852 = vmul.f32 %v1836, %v1850
        %v1853 = vmul.f32 %v1837, %v1851
        %v1854 = vld [vmem:[%s11] sm:$0x1]
        %v1856 = vlaneseq
        %v1857 = vshrl.u32 %v1856, 7
        %v1858 = vsub.s32 0, %v1857
        %v1859 = vrot.slane %v1854, %v1858
        %v1861 = vmul.f32 %v1852, %v1859
        %v1862 = vmul.f32 %v1853, %v1859
        %v1863 = vld [vmem:[%s12] sm:$0x1]
        %v1865 = vlaneseq
        %v1866 = vshrl.u32 %v1865, 7
        %v1867 = vsub.s32 0, %v1866
        %v1868 = vrot.slane %v1863, %v1867
        %v1870 = vadd.f32 %v1861, %v1868
        %v1871 = vadd.f32 %v1862, %v1868
        %1872 = vst.msk [vmem:[%s526] sm:$0xff] %vm561, %v1870
        %1873 = vst.msk [vmem:[%s526 + $0x8] sm:$0xff] %vm561, %v1871
        %s1874 = sand.u32 %s317, 1
        %s1875 = scalar_lea.sflag [#allocation5], %s1874
        %s1876 = sand.u32 %s317, 1
        %s1877 = smul.addr %s1876, 16
        %s1878 = scalar_lea.vmem [#allocation15], %s1877
        // Predicated region
        $region101: #{tpu_custom_call.1} parent=71 // pred_check
          %p1879 = pneg %p327
        $region102: #{tpu_custom_call.1} parent=71 // pred_check_branch
          %1881 = sbr.rel (%p1879) target = $region104
        $region103: #{tpu_custom_call.1} parent=71 // pred_region
          %s1882 = smul.u32 2, %s31
          %s1884 = ssub.s32 256, 256
          %1885 = vsyncadd %s1875, %s1884
          %s1886 = smul.addr %s1882, 128
          %s1887 = scalar_lea.hbm %s13, %s1886
          %s1888 = sshll.u32 %s1878, 4
          %s1889 = int_to_ptr.vmem [resolvable:$true] %s1888
          %1894 = dma.vmem_to_hbm [thread:$0]  %s1889, 256, %s1887, %s1875, 128, 128, 8
        $region104: #{tpu_custom_call.1} parent=71 // pred_fallthru
          _
      $region72: #{tpu_custom_call.1} parent=5 // pred_fallthru
        _
      %p1895 = scmp.le.s32.totalorder 2, %s26
      // Predicated region
      $region105: #{tpu_custom_call.1} parent=5 // pred_check
        %p1896 = pneg %p1895
      $region106: #{tpu_custom_call.1} parent=5 // pred_check_branch
        %1898 = sbr.rel (%p1896) target = $region108
      $region107: #{tpu_custom_call.1} parent=5 // pred_region
        %s1899 = ssub.s32 %s26, 2
        // Predicated region
        $region109: #{tpu_custom_call.1} parent=107 // pred_check
          %p1900 = pneg %p333
        $region110: #{tpu_custom_call.1} parent=107 // pred_check_branch
          %1902 = sbr.rel (%p1900) target = $region112
        $region111: #{tpu_custom_call.1} parent=107 // pred_region
          %s1903 = sand.u32 %s318, 1
          %s1904 = scalar_lea.sflag [#allocation5], %s1903
          %s1905 = sand.u32 %s318, 1
          %s1906 = smul.addr %s1905, 16
          %s1907 = scalar_lea.vmem [#allocation15], %s1906
          %1908 = dma.done %s1904, 256
        $region112: #{tpu_custom_call.1} parent=107 // pred_fallthru
          _
      $region108: #{tpu_custom_call.1} parent=5 // pred_fallthru
        _
    $region6: #{tpu_custom_call.1} parent=1 // loop_footer
      %s30 = sadd.s32 1, %s26
    $region7: #{tpu_custom_call.1} parent=1 // loop_footer_branch
      %25 = sbr.rel target = $region3
    $region8: #{tpu_custom_call.1} parent=1 // loop_exit
      _
    %1909 = vsyncpa [#allocation4], 1
    %s1910 = scalar_lea.sflag [#allocation4], 1
    %1911 = vsyncpa %s1910, 1
    %1912 = vsyncpa [#allocation7], 1
    %1913 = vsyncpa [#allocation10], 1
    %1914 = vsyncpa [#allocation13], 1
    %1915 = vsyncpa [#allocation5], 1
    %s1916 = scalar_lea.sflag [#allocation5], 1
    %1917 = vsyncpa %s1916, 1

// kernel: tpu_custom_call.1
$region0: #{tpu_custom_call.1}
  #allocation0 [shape = 'u32[]', space=smem, size = 0x4, offset = 0x4, fixed_abs, tag = 'smem constant byte address 0x4 - core index']
  #allocation1 [shape = 'u32[144,128]{1,0:T(1,128)}', space=vmem, size = 0x12000, scoped, tag = 'internal scratch']
  #allocation2 [shape = 'bf16[16,32]{1,0:T(8,128)(2,1)}', space=vmem, size = 0x1000, scoped, tag = 'scratch operand']
  %s0 = inlined_call_operand.vmem [shape: f32[4,8,32], index: 0, kind: input, shape index: {}]
  %s1 = inlined_call_operand.vmem [shape: bf16[32,96], index: 1, kind: input, shape index: {}]
  %s2 = inlined_call_operand.hbm [shape: f32[1,96], index: 2, kind: input, shape index: {}]
  %s3 = inlined_call_operand.hbm [shape: bf16[32,32], index: 3, kind: input, shape index: {}]
  %s4 = inlined_call_operand.hbm [shape: f32[1,32], index: 4, kind: input, shape index: {}]
  %s5 = inlined_call_operand.hbm [shape: f32[1,32], index: 5, kind: input, shape index: {}]
  %s6 = inlined_call_operand.hbm [shape: f32[1,32], index: 6, kind: input, shape index: {}]
  %s7 = inlined_call_operand.hbm [shape: bf16[32,64], index: 7, kind: input, shape index: {}]
  %s8 = inlined_call_operand.hbm [shape: f32[1,64], index: 8, kind: input, shape index: {}]
  %s9 = inlined_call_operand.vmem [shape: bf16[64,32], index: 9, kind: input, shape index: {}]
  %s10 = inlined_call_operand.vmem [shape: f32[1,32], index: 10, kind: input, shape index: {}]
  %s11 = inlined_call_operand.vmem [shape: f32[1,32], index: 11, kind: input, shape index: {}]
  %s12 = inlined_call_operand.vmem [shape: f32[1,32], index: 12, kind: input, shape index: {}]
  %s13 = inlined_call_operand.hbm [shape: f32[4,8,32], index: 13, kind: output, shape index: {}]
  %s14 = sld [smem:[#allocation0]]
  $region113: #{tpu_custom_call.1} parent=0
    _
  %s16 = ssub.s32 1, %s14
  %s17 = scalar_select 0, %s16, %s14
  $region1: #{tpu_custom_call.1} parent=0
    #allocation3 [shape = 'u8[512]{0}', space=vmem, size = 0x400, scoped, tag = 'input window, operand 2, single buffered']
    #allocation4 [shape = 's32[2]{0}', space=sflag, size = 0x8, scoped, tag = 'scoped memory for tpu_custom_call.1']
    #allocation5 [shape = 's32[2]{0}', space=sflag, size = 0x8, scoped, tag = 'scoped memory for tpu_custom_call.1']
    #allocation6 [shape = 'u8[8192]{0}', space=vmem, size = 0x2000, scoped, tag = 'input window, operand 3, single buffered']
    #allocation7 [shape = 's32[1]{0}', space=sflag, size = 0x4, scoped, tag = 'scoped memory for tpu_custom_call.1']
    #allocation8 [shape = 'u8[512]{0}', space=vmem, size = 0x400, scoped, tag = 'input window, operand 4, single buffered']
    #allocation9 [shape = 'u8[512]{0}', space=vmem, size = 0x400, scoped, tag = 'input window, operand 5, single buffered']
    #allocation10 [shape = 's32[1]{0}', space=sflag, size = 0x4, scoped, tag = 'scoped memory for tpu_custom_call.1']
    #allocation11 [shape = 'u8[512]{0}', space=vmem, size = 0x400, scoped, tag = 'input window, operand 6, single buffered']
    #allocation12 [shape = 'u8[8192]{0}', space=vmem, size = 0x2000, scoped, tag = 'input window, operand 7, single buffered']
    #allocation13 [shape = 's32[1]{0}', space=sflag, size = 0x4, scoped, tag = 'scoped memory for tpu_custom_call.1']
    #allocation14 [shape = 'u8[512]{0}', space=vmem, size = 0x400, scoped, tag = 'input window, operand 8, single buffered']
    #allocation15 [shape = 'u8[16384]{0}', space=vmem, size = 0x4000, scoped, tag = 'output window, operand 0']
    %18 = vsyncpa [#allocation4], 0
    %19 = vsyncpa [#allocation7], 0
    %20 = vsyncpa [#allocation10], 0
    %21 = vsyncpa [#allocation13], 0
    %22 = vsyncpa [#allocation5], 0
    %s23 = scalar_lea.sflag [#allocation5], 1
    %24 = vsyncpa %s23, 0
    loop: start=0, step=1, limit=4
    $region2: #{tpu_custom_call.1} parent=1 // loop_pre_header
      _
    $region3: #{tpu_custom_call.1} parent=1 // loop_header
      %s26 = sphi 0, %s30
      %p27 = scmp.ge.s32.totalorder %s26, 4
      %s36 = sphi 0, %s38
      %s39 = sphi 0, %s36
      %s40 = sphi 0, %s39
      %s56 = sphi 0, %s40
      %s60 = sphi 0, %s60
      %s62 = sphi 0, %s60
      %s63 = sphi 0, %s62
      %s77 = sphi 0, %s63
      %s81 = sphi 0, %s81
      %s83 = sphi 0, %s81
      %s84 = sphi 0, %s83
      %s98 = sphi 0, %s84
      %s102 = sphi 0, %s102
      %s104 = sphi 0, %s102
      %s105 = sphi 0, %s104
      %s119 = sphi 0, %s105
      %s123 = sphi 0, %s123
      %s125 = sphi 0, %s123
      %s126 = sphi 0, %s125
      %s140 = sphi 0, %s126
      %s144 = sphi 0, %s144
      %s146 = sphi 0, %s144
      %s147 = sphi 0, %s146
      %s161 = sphi 0, %s147
      %s165 = sphi 0, %s165
      %s167 = sphi 0, %s165
      %s168 = sphi 0, %s167
      %s182 = sphi 0, %s168
      %s186 = sphi 0, %s186
      %s188 = sphi 0, %s186
      %s189 = sphi 0, %s188
      %s203 = sphi 0, %s189
      %s207 = sphi 0, %s207
      %s209 = sphi 0, %s207
      %s210 = sphi 0, %s209
      %s224 = sphi 0, %s210
      %s228 = sphi 0, %s228
      %s230 = sphi 0, %s228
      %s231 = sphi 0, %s230
      %s245 = sphi 0, %s231
      %s249 = sphi 0, %s249
      %s251 = sphi 0, %s249
      %s252 = sphi 0, %s251
      %s266 = sphi 0, %s252
      %s270 = sphi 0, %s270
      %s272 = sphi 0, %s270
      %s273 = sphi 0, %s272
      %s287 = sphi 0, %s273
      %s291 = sphi 0, %s291
      %s293 = sphi 0, %s291
      %s294 = sphi 0, %s293
      %s308 = sphi 0, %s294
      %s314 = sphi 0, %s316
      %s317 = sphi 0, %s314
      %s318 = sphi 0, %s317
      %s334 = sphi 0, %s318
    $region4: #{tpu_custom_call.1} parent=1 // loop_header_branch
      %29 = sbr.rel (%p27) target = $region8
    $region5: #{tpu_custom_call.1} parent=1 // loop_body
      %s31 = ssub.s32 %s26, 1
      %s32 = ssub.s32 %s26, 2
      %s33 = sadd.s32 %s26, 1
      %s34 = ssub.s32 %s26, %s33
      %p35 = scmp.eq.s32.totalorder %s34, 0
      %s37 = sadd.s32 %s36, 1
      %s38 = scalar_select %p35, %s36, %s37
      %p41 = pneg %p35
      %p42 = scmp.eq.s32.totalorder %s26, 1
      %p43 = por %p41, %p42
      %p44 = scmp.ne.s32.totalorder %s36, %s39
      %p45 = scmp.eq.s32.totalorder %s26, 0
      %p46 = por %p44, %p45
      %p47 = scmp.ne.s32.totalorder %s36, %s39
      %p48 = scmp.eq.s32.totalorder %s31, 1
      %p49 = por %p47, %p48
      %p50 = scmp.ne.s32.totalorder %s39, %s40
      %p51 = scmp.eq.s32.totalorder %s31, 0
      %p52 = por %p50, %p51
      %p53 = scmp.ne.s32.totalorder %s39, %s40
      %p54 = scmp.eq.s32.totalorder %s32, 1
      %p55 = por %p53, %p54
      %p57 = scmp.ne.s32.totalorder %s40, %s56
      %p58 = scmp.eq.s32.totalorder %s32, 0
      %p59 = por %p57, %p58
      %s61 = sadd.s32 %s60, 1
      %p64 = scmp.eq.s32.totalorder %s26, 1
      %p65 = scmp.ne.s32.totalorder %s60, %s62
      %p66 = scmp.eq.s32.totalorder %s26, 0
      %p67 = por %p65, %p66
      %p68 = scmp.ne.s32.totalorder %s60, %s62
      %p69 = scmp.eq.s32.totalorder %s31, 1
      %p70 = por %p68, %p69
      %p71 = scmp.ne.s32.totalorder %s62, %s63
      %p72 = scmp.eq.s32.totalorder %s31, 0
      %p73 = por %p71, %p72
      %p74 = scmp.ne.s32.totalorder %s62, %s63
      %p75 = scmp.eq.s32.totalorder %s32, 1
      %p76 = por %p74, %p75
      %p78 = scmp.ne.s32.totalorder %s63, %s77
      %p79 = scmp.eq.s32.totalorder %s32, 0
      %p80 = por %p78, %p79
      %s82 = sadd.s32 %s81, 1
      %p85 = scmp.eq.s32.totalorder %s26, 1
      %p86 = scmp.ne.s32.totalorder %s81, %s83
      %p87 = scmp.eq.s32.totalorder %s26, 0
      %p88 = por %p86, %p87
      %p89 = scmp.ne.s32.totalorder %s81, %s83
      %p90 = scmp.eq.s32.totalorder %s31, 1
      %p91 = por %p89, %p90
      %p92 = scmp.ne.s32.totalorder %s83, %s84
      %p93 = scmp.eq.s32.totalorder %s31, 0
      %p94 = por %p92, %p93
      %p95 = scmp.ne.s32.totalorder %s83, %s84
      %p96 = scmp.eq.s32.totalorder %s32, 1
      %p97 = por %p95, %p96
      %p99 = scmp.ne.s32.totalorder %s84, %s98
      %p100 = scmp.eq.s32.totalorder %s32, 0
      %p101 = por %p99, %p100
      %s103 = sadd.s32 %s102, 1
      %p106 = scmp.eq.s32.totalorder %s26, 1
      %p107 = scmp.ne.s32.totalorder %s102, %s104
      %p108 = scmp.eq.s32.totalorder %s26, 0
      %p109 = por %p107, %p108
      %p110 = scmp.ne.s32.totalorder %s102, %s104
      %p111 = scmp.eq.s32.totalorder %s31, 1
      %p112 = por %p110, %p111
      %p113 = scmp.ne.s32.totalorder %s104, %s105
      %p114 = scmp.eq.s32.totalorder %s31, 0
      %p115 = por %p113, %p114
      %p116 = scmp.ne.s32.totalorder %s104, %s105
      %p117 = scmp.eq.s32.totalorder %s32, 1
      %p118 = por %p116, %p117
      %p120 = scmp.ne.s32.totalorder %s105, %s119
      %p121 = scmp.eq.s32.totalorder %s32, 0
      %p122 = por %p120, %p121
      %s124 = sadd.s32 %s123, 1
      %p127 = scmp.eq.s32.totalorder %s26, 1
      %p128 = scmp.ne.s32.totalorder %s123, %s125
      %p129 = scmp.eq.s32.totalorder %s26, 0
      %p130 = por %p128, %p129
      %p131 = scmp.ne.s32.totalorder %s123, %s125
      %p132 = scmp.eq.s32.totalorder %s31, 1
      %p133 = por %p131, %p132
      %p134 = scmp.ne.s32.totalorder %s125, %s126
      %p135 = scmp.eq.s32.totalorder %s31, 0
      %p136 = por %p134, %p135
      %p137 = scmp.ne.s32.totalorder %s125, %s126
      %p138 = scmp.eq.s32.totalorder %s32, 1
      %p139 = por %p137, %p138
      %p141 = scmp.ne.s32.totalorder %s126, %s140
      %p142 = scmp.eq.s32.totalorder %s32, 0
      %p143 = por %p141, %p142
      %s145 = sadd.s32 %s144, 1
      %p148 = scmp.eq.s32.totalorder %s26, 1
      %p149 = scmp.ne.s32.totalorder %s144, %s146
      %p150 = scmp.eq.s32.totalorder %s26, 0
      %p151 = por %p149, %p150
      %p152 = scmp.ne.s32.totalorder %s144, %s146
      %p153 = scmp.eq.s32.totalorder %s31, 1
      %p154 = por %p152, %p153
      %p155 = scmp.ne.s32.totalorder %s146, %s147
      %p156 = scmp.eq.s32.totalorder %s31, 0
      %p157 = por %p155, %p156
      %p158 = scmp.ne.s32.totalorder %s146, %s147
      %p159 = scmp.eq.s32.totalorder %s32, 1
      %p160 = por %p158, %p159
      %p162 = scmp.ne.s32.totalorder %s147, %s161
      %p163 = scmp.eq.s32.totalorder %s32, 0
      %p164 = por %p162, %p163
      %s166 = sadd.s32 %s165, 1
      %p169 = scmp.eq.s32.totalorder %s26, 1
      %p170 = scmp.ne.s32.totalorder %s165, %s167
      %p171 = scmp.eq.s32.totalorder %s26, 0
      %p172 = por %p170, %p171
      %p173 = scmp.ne.s32.totalorder %s165, %s167
      %p174 = scmp.eq.s32.totalorder %s31, 1
      %p175 = por %p173, %p174
      %p176 = scmp.ne.s32.totalorder %s167, %s168
      %p177 = scmp.eq.s32.totalorder %s31, 0
      %p178 = por %p176, %p177
      %p179 = scmp.ne.s32.totalorder %s167, %s168
      %p180 = scmp.eq.s32.totalorder %s32, 1
      %p181 = por %p179, %p180
      %p183 = scmp.ne.s32.totalorder %s168, %s182
      %p184 = scmp.eq.s32.totalorder %s32, 0
      %p185 = por %p183, %p184
      %s187 = sadd.s32 %s186, 1
      %p190 = scmp.eq.s32.totalorder %s26, 1
      %p191 = scmp.ne.s32.totalorder %s186, %s188
      %p192 = scmp.eq.s32.totalorder %s26, 0
      %p193 = por %p191, %p192
      %p194 = scmp.ne.s32.totalorder %s186, %s188
      %p195 = scmp.eq.s32.totalorder %s31, 1
      %p196 = por %p194, %p195
      %p197 = scmp.ne.s32.totalorder %s188, %s189
      %p198 = scmp.eq.s32.totalorder %s31, 0
      %p199 = por %p197, %p198
      %p200 = scmp.ne.s32.totalorder %s188, %s189
      %p201 = scmp.eq.s32.totalorder %s32, 1
      %p202 = por %p200, %p201
      %p204 = scmp.ne.s32.totalorder %s189, %s203
      %p205 = scmp.eq.s32.totalorder %s32, 0
      %p206 = por %p204, %p205
      %s208 = sadd.s32 %s207, 1
      %p211 = scmp.eq.s32.totalorder %s26, 1
      %p212 = scmp.ne.s32.totalorder %s207, %s209
      %p213 = scmp.eq.s32.totalorder %s26, 0
      %p214 = por %p212, %p213
      %p215 = scmp.ne.s32.totalorder %s207, %s209
      %p216 = scmp.eq.s32.totalorder %s31, 1
      %p217 = por %p215, %p216
      %p218 = scmp.ne.s32.totalorder %s209, %s210
      %p219 = scmp.eq.s32.totalorder %s31, 0
      %p220 = por %p218, %p219
      %p221 = scmp.ne.s32.totalorder %s209, %s210
      %p222 = scmp.eq.s32.totalorder %s32, 1
      %p223 = por %p221, %p222
      %p225 = scmp.ne.s32.totalorder %s210, %s224
      %p226 = scmp.eq.s32.totalorder %s32, 0
      %p227 = por %p225, %p226
      %s229 = sadd.s32 %s228, 1
      %p232 = scmp.eq.s32.totalorder %s26, 1
      %p233 = scmp.ne.s32.totalorder %s228, %s230
      %p234 = scmp.eq.s32.totalorder %s26, 0
      %p235 = por %p233, %p234
      %p236 = scmp.ne.s32.totalorder %s228, %s230
      %p237 = scmp.eq.s32.totalorder %s31, 1
      %p238 = por %p236, %p237
      %p239 = scmp.ne.s32.totalorder %s230, %s231
      %p240 = scmp.eq.s32.totalorder %s31, 0
      %p241 = por %p239, %p240
      %p242 = scmp.ne.s32.totalorder %s230, %s231
      %p243 = scmp.eq.s32.totalorder %s32, 1
      %p244 = por %p242, %p243
      %p246 = scmp.ne.s32.totalorder %s231, %s245
      %p247 = scmp.eq.s32.totalorder %s32, 0
      %p248 = por %p246, %p247
      %s250 = sadd.s32 %s249, 1
      %p253 = scmp.eq.s32.totalorder %s26, 1
      %p254 = scmp.ne.s32.totalorder %s249, %s251
      %p255 = scmp.eq.s32.totalorder %s26, 0
      %p256 = por %p254, %p255
      %p257 = scmp.ne.s32.totalorder %s249, %s251
      %p258 = scmp.eq.s32.totalorder %s31, 1
      %p259 = por %p257, %p258
      %p260 = scmp.ne.s32.totalorder %s251, %s252
      %p261 = scmp.eq.s32.totalorder %s31, 0
      %p262 = por %p260, %p261
      %p263 = scmp.ne.s32.totalorder %s251, %s252
      %p264 = scmp.eq.s32.totalorder %s32, 1
      %p265 = por %p263, %p264
      %p267 = scmp.ne.s32.totalorder %s252, %s266
      %p268 = scmp.eq.s32.totalorder %s32, 0
      %p269 = por %p267, %p268
      %s271 = sadd.s32 %s270, 1
      %p274 = scmp.eq.s32.totalorder %s26, 1
      %p275 = scmp.ne.s32.totalorder %s270, %s272
      %p276 = scmp.eq.s32.totalorder %s26, 0
      %p277 = por %p275, %p276
      %p278 = scmp.ne.s32.totalorder %s270, %s272
      %p279 = scmp.eq.s32.totalorder %s31, 1
      %p280 = por %p278, %p279
      %p281 = scmp.ne.s32.totalorder %s272, %s273
      %p282 = scmp.eq.s32.totalorder %s31, 0
      %p283 = por %p281, %p282
      %p284 = scmp.ne.s32.totalorder %s272, %s273
      %p285 = scmp.eq.s32.totalorder %s32, 1
      %p286 = por %p284, %p285
      %p288 = scmp.ne.s32.totalorder %s273, %s287
      %p289 = scmp.eq.s32.totalorder %s32, 0
      %p290 = por %p288, %p289
      %s292 = sadd.s32 %s291, 1
      %p295 = scmp.eq.s32.totalorder %s26, 1
      %p296 = scmp.ne.s32.totalorder %s291, %s293
      %p297 = scmp.eq.s32.totalorder %s26, 0
      %p298 = por %p296, %p297
      %p299 = scmp.ne.s32.totalorder %s291, %s293
      %p300 = scmp.eq.s32.totalorder %s31, 1
      %p301 = por %p299, %p300
      %p302 = scmp.ne.s32.totalorder %s293, %s294
      %p303 = scmp.eq.s32.totalorder %s31, 0
      %p304 = por %p302, %p303
      %p305 = scmp.ne.s32.totalorder %s293, %s294
      %p306 = scmp.eq.s32.totalorder %s32, 1
      %p307 = por %p305, %p306
      %p309 = scmp.ne.s32.totalorder %s294, %s308
      %p310 = scmp.eq.s32.totalorder %s32, 0
      %p311 = por %p309, %p310
      %s312 = ssub.s32 %s26, %s33
      %p313 = scmp.eq.s32.totalorder %s312, 0
      %s315 = sadd.s32 %s314, 1
      %s316 = scalar_select %p313, %s314, %s315
      %p319 = pneg %p313
      %p320 = scmp.eq.s32.totalorder %s26, 1
      %p321 = por %p319, %p320
      %p322 = scmp.ne.s32.totalorder %s314, %s317
      %p323 = scmp.eq.s32.totalorder %s26, 0
      %p324 = por %p322, %p323
      %p325 = scmp.ne.s32.totalorder %s314, %s317
      %p326 = scmp.eq.s32.totalorder %s31, 1
      %p327 = por %p325, %p326
      %p328 = scmp.ne.s32.totalorder %s317, %s318
      %p329 = scmp.eq.s32.totalorder %s31, 0
      %p330 = por %p328, %p329
      %p331 = scmp.ne.s32.totalorder %s317, %s318
      %p332 = scmp.eq.s32.totalorder %s32, 1
      %p333 = por %p331, %p332
      %p335 = scmp.ne.s32.totalorder %s318, %s334
      %p336 = scmp.eq.s32.totalorder %s32, 0
      %p337 = por %p335, %p336
      %p338 = scmp.le.s32.totalorder 1, %s26
      %p339 = scmp.lt.s32.totalorder %s26, 3
      %p340 = pnand %p338, %p339
      %p341 = pneg %p340
      // Predicated region
      $region9: #{tpu_custom_call.1} parent=5 // pred_check
        _
      $region10: #{tpu_custom_call.1} parent=5 // pred_check_branch
        %343 = sbr.rel (%p340) target = $region12
      $region11: #{tpu_custom_call.1} parent=5 // pred_region
        %s344 = ssub.s32 %s26, 1
        // Predicated region
        $region13: #{tpu_custom_call.1} parent=11 // pred_check
          %p345 = pneg %p73
        $region14: #{tpu_custom_call.1} parent=11 // pred_check_branch
          %347 = sbr.rel (%p345) target = $region16
        $region15: #{tpu_custom_call.1} parent=11 // pred_region
          _
        $region16: #{tpu_custom_call.1} parent=11 // pred_fallthru
          _
        // Predicated region
        $region17: #{tpu_custom_call.1} parent=11 // pred_check
          %p348 = pneg %p94
        $region18: #{tpu_custom_call.1} parent=11 // pred_check_branch
          %350 = sbr.rel (%p348) target = $region20
        $region19: #{tpu_custom_call.1} parent=11 // pred_region
          %s352 = ssub.s32 16, 16
          %353 = vsyncadd [#allocation4], %s352
          %s355 = sshll.u32 [#allocation3], 4
          %s356 = int_to_ptr.vmem [resolvable:$true] %s355
          %358 = dma.hbm_to_vmem [thread:$0]  %s2, 16, %s356, [#allocation4]
        $region20: #{tpu_custom_call.1} parent=11 // pred_fallthru
          _
        // Predicated region
        $region21: #{tpu_custom_call.1} parent=11 // pred_check
          %p359 = pneg %p115
        $region22: #{tpu_custom_call.1} parent=11 // pred_check_branch
          %361 = sbr.rel (%p359) target = $region24
        $region23: #{tpu_custom_call.1} parent=11 // pred_region
          %s363 = ssub.s32 256, 256
          %364 = vsyncadd [#allocation7], %s363
          %s365 = sshll.u32 [#allocation6], 4
          %s366 = int_to_ptr.vmem [resolvable:$true] %s365
          %371 = dma.hbm_to_vmem [thread:$0]  %s3, 256, %s366, [#allocation7], 64, 64, 4
        $region24: #{tpu_custom_call.1} parent=11 // pred_fallthru
          _
        // Predicated region
        $region25: #{tpu_custom_call.1} parent=11 // pred_check
          %p372 = pneg %p136
        $region26: #{tpu_custom_call.1} parent=11 // pred_check_branch
          %374 = sbr.rel (%p372) target = $region28
        $region27: #{tpu_custom_call.1} parent=11 // pred_region
          %s376 = ssub.s32 16, 16
          %377 = vsyncadd [#allocation7], %s376
          %s379 = sshll.u32 [#allocation8], 4
          %s380 = int_to_ptr.vmem [resolvable:$true] %s379
          %382 = dma.hbm_to_vmem [thread:$0]  %s4, 16, %s380, [#allocation7]
        $region28: #{tpu_custom_call.1} parent=11 // pred_fallthru
          _
        // Predicated region
        $region29: #{tpu_custom_call.1} parent=11 // pred_check
          %p383 = pneg %p157
        $region30: #{tpu_custom_call.1} parent=11 // pred_check_branch
          %385 = sbr.rel (%p383) target = $region32
        $region31: #{tpu_custom_call.1} parent=11 // pred_region
          %s387 = ssub.s32 16, 16
          %388 = vsyncadd [#allocation10], %s387
          %s390 = sshll.u32 [#allocation9], 4
          %s391 = int_to_ptr.vmem [resolvable:$true] %s390
          %393 = dma.hbm_to_vmem [thread:$0]  %s5, 16, %s391, [#allocation10]
        $region32: #{tpu_custom_call.1} parent=11 // pred_fallthru
          _
        // Predicated region
        $region33: #{tpu_custom_call.1} parent=11 // pred_check
          %p394 = pneg %p178
        $region34: #{tpu_custom_call.1} parent=11 // pred_check_branch
          %396 = sbr.rel (%p394) target = $region36
        $region35: #{tpu_custom_call.1} parent=11 // pred_region
          %s398 = ssub.s32 16, 16
          %399 = vsyncadd [#allocation10], %s398
          %s401 = sshll.u32 [#allocation11], 4
          %s402 = int_to_ptr.vmem [resolvable:$true] %s401
          %404 = dma.hbm_to_vmem [thread:$0]  %s6, 16, %s402, [#allocation10]
        $region36: #{tpu_custom_call.1} parent=11 // pred_fallthru
          _
        // Predicated region
        $region37: #{tpu_custom_call.1} parent=11 // pred_check
          %p405 = pneg %p199
        $region38: #{tpu_custom_call.1} parent=11 // pred_check_branch
          %407 = sbr.rel (%p405) target = $region40
        $region39: #{tpu_custom_call.1} parent=11 // pred_region
          %s409 = ssub.s32 256, 256
          %410 = vsyncadd [#allocation13], %s409
          %s411 = sshll.u32 [#allocation12], 4
          %s412 = int_to_ptr.vmem [resolvable:$true] %s411
          %417 = dma.hbm_to_vmem [thread:$0]  %s7, 256, %s412, [#allocation13], 64, 64, 4
        $region40: #{tpu_custom_call.1} parent=11 // pred_fallthru
          _
        // Predicated region
        $region41: #{tpu_custom_call.1} parent=11 // pred_check
          %p418 = pneg %p220
        $region42: #{tpu_custom_call.1} parent=11 // pred_check_branch
          %420 = sbr.rel (%p418) target = $region44
        $region43: #{tpu_custom_call.1} parent=11 // pred_region
          %s422 = ssub.s32 16, 16
          %423 = vsyncadd [#allocation13], %s422
          %s425 = sshll.u32 [#allocation14], 4
          %s426 = int_to_ptr.vmem [resolvable:$true] %s425
          %428 = dma.hbm_to_vmem [thread:$0]  %s8, 16, %s426, [#allocation13]
        $region44: #{tpu_custom_call.1} parent=11 // pred_fallthru
          _
        // Predicated region
        $region45: #{tpu_custom_call.1} parent=11 // pred_check
          %p429 = pneg %p241
        $region46: #{tpu_custom_call.1} parent=11 // pred_check_branch
          %431 = sbr.rel (%p429) target = $region48
        $region47: #{tpu_custom_call.1} parent=11 // pred_region
          _
        $region48: #{tpu_custom_call.1} parent=11 // pred_fallthru
          _
        // Predicated region
        $region49: #{tpu_custom_call.1} parent=11 // pred_check
          %p432 = pneg %p262
        $region50: #{tpu_custom_call.1} parent=11 // pred_check_branch
          %434 = sbr.rel (%p432) target = $region52
        $region51: #{tpu_custom_call.1} parent=11 // pred_region
          _
        $region52: #{tpu_custom_call.1} parent=11 // pred_fallthru
          _
        // Predicated region
        $region53: #{tpu_custom_call.1} parent=11 // pred_check
          %p435 = pneg %p283
        $region54: #{tpu_custom_call.1} parent=11 // pred_check_branch
          %437 = sbr.rel (%p435) target = $region56
        $region55: #{tpu_custom_call.1} parent=11 // pred_region
          _
        $region56: #{tpu_custom_call.1} parent=11 // pred_fallthru
          _
        // Predicated region
        $region57: #{tpu_custom_call.1} parent=11 // pred_check
          %p438 = pneg %p304
        $region58: #{tpu_custom_call.1} parent=11 // pred_check_branch
          %440 = sbr.rel (%p438) target = $region60
        $region59: #{tpu_custom_call.1} parent=11 // pred_region
          _
        $region60: #{tpu_custom_call.1} parent=11 // pred_fallthru
          _
      $region12: #{tpu_custom_call.1} parent=5 // pred_fallthru
        _
      %p441 = scmp.lt.s32.totalorder %s26, 2
      // Predicated region
      $region61: #{tpu_custom_call.1} parent=5 // pred_check
        %p442 = pneg %p441
      $region62: #{tpu_custom_call.1} parent=5 // pred_check_branch
        %444 = sbr.rel (%p442) target = $region64
      $region63: #{tpu_custom_call.1} parent=5 // pred_region
        // Predicated region
        $region65: #{tpu_custom_call.1} parent=63 // pred_check
          %p445 = pneg %p46
        $region66: #{tpu_custom_call.1} parent=63 // pred_check_branch
          %447 = sbr.rel (%p445) target = $region68
        $region67: #{tpu_custom_call.1} parent=63 // pred_region
          %s448 = smul.u32 2, %s26
          %p449 = scmp.lt.s32.totalorder %s448, 3
          %s450 = scalar_select %p449, %s448, 3
          %s451 = smul.addr %s450, 8
          %s452 = scalar_lea.vmem %s0, %s451
          %s453 = smul.u32 2, %s26
        $region68: #{tpu_custom_call.1} parent=63 // pred_fallthru
          _
      $region64: #{tpu_custom_call.1} parent=5 // pred_fallthru
        _
      %p454 = scmp.le.s32.totalorder 1, %s26
      %p455 = scmp.lt.s32.totalorder %s26, 3
      %p456 = pnand %p454, %p455
      %p457 = pneg %p456
      // Predicated region
      $region69: #{tpu_custom_call.1} parent=5 // pred_check
        _
      $region70: #{tpu_custom_call.1} parent=5 // pred_check_branch
        %459 = sbr.rel (%p456) target = $region72
      $region71: #{tpu_custom_call.1} parent=5 // pred_region
        %s460 = ssub.s32 %s26, 1
        // Predicated region
        $region73: #{tpu_custom_call.1} parent=71 // pred_check
          %p461 = pneg %p94
        $region74: #{tpu_custom_call.1} parent=71 // pred_check_branch
          %463 = sbr.rel (%p461) target = $region76
        $region75: #{tpu_custom_call.1} parent=71 // pred_region
          %464 = dma.done [#allocation4], 16
        $region76: #{tpu_custom_call.1} parent=71 // pred_fallthru
          _
        // Predicated region
        $region77: #{tpu_custom_call.1} parent=71 // pred_check
          %p465 = pneg %p115
        $region78: #{tpu_custom_call.1} parent=71 // pred_check_branch
          %467 = sbr.rel (%p465) target = $region80
        $region79: #{tpu_custom_call.1} parent=71 // pred_region
          %468 = dma.done [#allocation7], 256
        $region80: #{tpu_custom_call.1} parent=71 // pred_fallthru
          _
        // Predicated region
        $region81: #{tpu_custom_call.1} parent=71 // pred_check
          %p469 = pneg %p136
        $region82: #{tpu_custom_call.1} parent=71 // pred_check_branch
          %471 = sbr.rel (%p469) target = $region84
        $region83: #{tpu_custom_call.1} parent=71 // pred_region
          %472 = dma.done [#allocation7], 16
        $region84: #{tpu_custom_call.1} parent=71 // pred_fallthru
          _
        // Predicated region
        $region85: #{tpu_custom_call.1} parent=71 // pred_check
          %p473 = pneg %p157
        $region86: #{tpu_custom_call.1} parent=71 // pred_check_branch
          %475 = sbr.rel (%p473) target = $region88
        $region87: #{tpu_custom_call.1} parent=71 // pred_region
          %476 = dma.done [#allocation10], 16
        $region88: #{tpu_custom_call.1} parent=71 // pred_fallthru
          _
        // Predicated region
        $region89: #{tpu_custom_call.1} parent=71 // pred_check
          %p477 = pneg %p178
        $region90: #{tpu_custom_call.1} parent=71 // pred_check_branch
          %479 = sbr.rel (%p477) target = $region92
        $region91: #{tpu_custom_call.1} parent=71 // pred_region
          %480 = dma.done [#allocation10], 16
        $region92: #{tpu_custom_call.1} parent=71 // pred_fallthru
          _
        // Predicated region
        $region93: #{tpu_custom_call.1} parent=71 // pred_check
          %p481 = pneg %p199
        $region94: #{tpu_custom_call.1} parent=71 // pred_check_branch
          %483 = sbr.rel (%p481) target = $region96
        $region95: #{tpu_custom_call.1} parent=71 // pred_region
          %484 = dma.done [#allocation13], 256
        $region96: #{tpu_custom_call.1} parent=71 // pred_fallthru
          _
        // Predicated region
        $region97: #{tpu_custom_call.1} parent=71 // pred_check
          %p485 = pneg %p220
        $region98: #{tpu_custom_call.1} parent=71 // pred_check_branch
          %487 = sbr.rel (%p485) target = $region100
        $region99: #{tpu_custom_call.1} parent=71 // pred_region
          %488 = dma.done [#allocation13], 16
        $region100: #{tpu_custom_call.1} parent=71 // pred_fallthru
          _
        %s489 = smul.u32 2, %s31
        %p490 = scmp.lt.s32.totalorder %s489, 3
        %s491 = scalar_select %p490, %s489, 3
        %s492 = smul.addr %s491, 8
        %s493 = scalar_lea.vmem %s0, %s492
        %p494 = pneg %p52
        %p495 = pneg %p49
        %p496 = pneg %p73
        %p497 = pneg %p70
        %p498 = pneg %p94
        %p499 = pneg %p91
        %p500 = pneg %p115
        %p501 = pneg %p112
        %p502 = pneg %p136
        %p503 = pneg %p133
        %p504 = pneg %p157
        %p505 = pneg %p154
        %p506 = pneg %p178
        %p507 = pneg %p175
        %p508 = pneg %p199
        %p509 = pneg %p196
        %p510 = pneg %p220
        %p511 = pneg %p217
        %p512 = pneg %p241
        %p513 = pneg %p238
        %p514 = pneg %p262
        %p515 = pneg %p259
        %p516 = pneg %p283
        %p517 = pneg %p280
        %p518 = pneg %p304
        %p519 = pneg %p301
        %p520 = pneg %p330
        %p521 = pneg %p327
        %s522 = sand.u32 %s317, 1
        %s523 = scalar_lea.sflag [#allocation5], %s522
        %s524 = sand.u32 %s317, 1
        %s525 = smul.addr %s524, 16
        %s526 = scalar_lea.vmem [#allocation15], %s525
        %s527 = smul.u32 2, %s31
        %p528 = scmp.lt.s32.totalorder %s527, 3
        %s529 = scalar_select %p528, %s527, 3
        %s530 = smul.addr %s529, 8
        %s531 = scalar_lea.vmem %s0, %s530
        %s532 = smul.u32 2, %s31
        %s533 = smul.u32 2, %s31
        %v535 = vld [vmem:[%s531] sm:$0xff]
        %v536 = vld [vmem:[%s531 + $0x8] sm:$0xff]
        %v537 = vpack.c.bf16 %v536, %v535
        %v538 = vld [vmem:[%s1] sm:$0xf]
        %v539 = vld [vmem:[%s1 + $0x4] sm:$0xf]
        %v540 = vld [vmem:[%s1 + $0x8] sm:$0xf]
        %v541 = vld [vmem:[%s1 + $0xc] sm:$0xf]
        %v542 = vld [vmem:[#allocation3] sm:$0x1]
        %v544 = vlaneseq
        %v545 = vshrl.u32 %v544, 7
        %v546 = vsub.s32 0, %v545
        %v547 = vrot.slane %v542, %v546
        %v553 = vunpack.c.l.b16 %v538
        %v554 = vunpack.c.l.b16 %v539
        %v555 = vunpack.c.l.b16 %v540
        %v556 = vunpack.c.l.b16 %v541
        %v557 = vpack.c.b16 %v554, %v553
        %v558 = vpack.c.b16 %v556, %v555
        %vm561 = vcmask 261120
        %v563 = vsel %vm561, %v537, 0
        %565 = vmatprep.subr.bf16.mxu0 0
        %566 = vmatpush1.bf16.msra.mxu0 0
        %567 = vmatprep.subr.bf16.mxu0 0
        %568 = vmatpush1.bf16.msra.mxu0 0
        %569 = vmatprep.subr.bf16.mxu0 0
        %570 = vmatpush1.bf16.msra.mxu0 0
        %571 = vmatprep.subr.bf16.mxu0 0
        %572 = vmatpush1.bf16.msra.mxu0 0
        %573 = vmatprep.subr.bf16.mxu0 0
        %574 = vmatpush1.bf16.msra.mxu0 0
        %575 = vmatprep.subr.bf16.mxu0 0
        %576 = vmatpush1.bf16.msra.mxu0 0
        %577 = vmatprep.subr.bf16.mxu0 0
        %578 = vmatpush1.bf16.msra.mxu0 %v558
        %579 = vmatprep.subr.bf16.mxu0 0
        %580 = vmatpush1.bf16.msra.mxu0 %v557
        %581 = vmatprep.subr.bf16.mxu0 0
        %582 = vmatpush2.bf16.msra.mxu0 0
        %583 = vmatprep.subr.bf16.mxu0 0
        %584 = vmatpush2.bf16.msra.mxu0 0
        %585 = vmatprep.subr.bf16.mxu0 0
        %586 = vmatpush2.bf16.msra.mxu0 0
        %587 = vmatprep.subr.bf16.mxu0 0
        %588 = vmatpush2.bf16.msra.mxu0 0
        %589 = vmatprep.subr.bf16.mxu0 0
        %590 = vmatpush2.bf16.msra.mxu0 0
        %591 = vmatprep.subr.bf16.mxu0 0
        %592 = vmatpush2.bf16.msra.mxu0 0
        %593 = vmatprep.subr.bf16.mxu0 0
        %594 = vmatpush2.bf16.msra.mxu0 0
        %595 = vmatprep.subr.bf16.mxu0 0
        %596 = vmatpush2.bf16.msra.mxu0 0
        %597 = vmatprep.mubr.bf16.mxu0 0
        %598 = vmatmul.mubr.bf16.gmra.mxu0 %v563
        %v599 = vpop.f32.mrf.mxu0
        %v600 = vadd.f32 %v547, %v599
        %v601 = vpop.f32.mrf.mxu0
        %v602 = vpop.f32.mrf.mxu0
        %v603 = vadd.f32 %v547, %v602
        %v604 = vpop.f32.mrf.mxu0
        %605 = vdwg.mxu0
        %v606 = vmul.f32 %v600, 0.35355338
        %v607 = vmul.f32 %v603, 0.35355338
        %v608 = vpack.c.bf16 %v606, %v606
        %v609 = vpack.c.bf16 %v607, %v607
        %v610 = vpack.c.bf16 %v600, %v600
        %v611 = vpack.c.bf16 %v603, %v603
        %613 = vrot.lane.b32.xlu0 %v610, 96
        %v614 = vpop.permute.xlu0 %613
        %vm615 = vcmask 64512
        %v617 = vsel %vm615, %v608, 0
        %v620 = vsel %vm615, %v614, 0
        %622 = vmatprep.subr.bf16.mxu0 0
        %623 = vmatpush1.bf16.xpose.msra.mxu0 0
        %624 = vmatprep.subr.bf16.mxu0 0
        %625 = vmatpush1.bf16.xpose.msra.mxu0 0
        %626 = vmatprep.subr.bf16.mxu0 0
        %627 = vmatpush1.bf16.xpose.msra.mxu0 0
        %628 = vmatprep.subr.bf16.mxu0 0
        %629 = vmatpush1.bf16.xpose.msra.mxu0 0
        %630 = vmatprep.subr.bf16.mxu0 0
        %631 = vmatpush1.bf16.xpose.msra.mxu0 0
        %632 = vmatprep.subr.bf16.mxu0 0
        %633 = vmatpush1.bf16.xpose.msra.mxu0 0
        %634 = vmatprep.subr.bf16.mxu0 0
        %635 = vmatpush1.bf16.xpose.msra.mxu0 0
        %636 = vmatprep.subr.bf16.mxu0 0
        %637 = vmatpush1.bf16.xpose.msra.mxu0 %v620
        %638 = vmatprep.subr.bf16.mxu0 0
        %639 = vmatpush2.bf16.xpose.msra.mxu0 0
        %640 = vmatprep.subr.bf16.mxu0 0
        %641 = vmatpush2.bf16.xpose.msra.mxu0 0
        %642 = vmatprep.subr.bf16.mxu0 0
        %643 = vmatpush2.bf16.xpose.msra.mxu0 0
        %644 = vmatprep.subr.bf16.mxu0 0
        %645 = vmatpush2.bf16.xpose.msra.mxu0 0
        %646 = vmatprep.subr.bf16.mxu0 0
        %647 = vmatpush2.bf16.xpose.msra.mxu0 0
        %648 = vmatprep.subr.bf16.mxu0 0
        %649 = vmatpush2.bf16.xpose.msra.mxu0 0
        %650 = vmatprep.subr.bf16.mxu0 0
        %651 = vmatpush2.bf16.xpose.msra.mxu0 0
        %652 = vmatprep.subr.bf16.mxu0 0
        %653 = vmatpush2.bf16.xpose.msra.mxu0 0
        %654 = vmatprep.mubr.bf16.mxu0 0
        %655 = vmatmul.mubr.bf16.gmra.mxu0 %v617
        %v656 = vpop.f32.mrf.mxu0
        %v657 = vadd.f32 0.0, %v656
        %v658 = vpop.f32.mrf.mxu0
        %v659 = vpop.f32.mrf.mxu0
        %v660 = vpop.f32.mrf.mxu0
        %661 = vdwg.mxu0
        %663 = vrot.lane.b32.xlu0 %v611, 96
        %v664 = vpop.permute.xlu0 %663
        %v666 = vsel %vm615, %v609, 0
        %v669 = vsel %vm615, %v664, 0
        %671 = vmatprep.subr.bf16.mxu0 0
        %672 = vmatpush1.bf16.xpose.msra.mxu0 0
        %673 = vmatprep.subr.bf16.mxu0 0
        %674 = vmatpush1.bf16.xpose.msra.mxu0 0
        %675 = vmatprep.subr.bf16.mxu0 0
        %676 = vmatpush1.bf16.xpose.msra.mxu0 0
        %677 = vmatprep.subr.bf16.mxu0 0
        %678 = vmatpush1.bf16.xpose.msra.mxu0 0
        %679 = vmatprep.subr.bf16.mxu0 0
        %680 = vmatpush1.bf16.xpose.msra.mxu0 0
        %681 = vmatprep.subr.bf16.mxu0 0
        %682 = vmatpush1.bf16.xpose.msra.mxu0 0
        %683 = vmatprep.subr.bf16.mxu0 0
        %684 = vmatpush1.bf16.xpose.msra.mxu0 0
        %685 = vmatprep.subr.bf16.mxu0 0
        %686 = vmatpush1.bf16.xpose.msra.mxu0 %v669
        %687 = vmatprep.subr.bf16.mxu0 0
        %688 = vmatpush2.bf16.xpose.msra.mxu0 0
        %689 = vmatprep.subr.bf16.mxu0 0
        %690 = vmatpush2.bf16.xpose.msra.mxu0 0
        %691 = vmatprep.subr.bf16.mxu0 0
        %692 = vmatpush2.bf16.xpose.msra.mxu0 0
        %693 = vmatprep.subr.bf16.mxu0 0
        %694 = vmatpush2.bf16.xpose.msra.mxu0 0
        %695 = vmatprep.subr.bf16.mxu0 0
        %696 = vmatpush2.bf16.xpose.msra.mxu0 0
        %697 = vmatprep.subr.bf16.mxu0 0
        %698 = vmatpush2.bf16.xpose.msra.mxu0 0
        %699 = vmatprep.subr.bf16.mxu0 0
        %700 = vmatpush2.bf16.xpose.msra.mxu0 0
        %701 = vmatprep.subr.bf16.mxu0 0
        %702 = vmatpush2.bf16.xpose.msra.mxu0 0
        %703 = vmatprep.mubr.bf16.mxu0 0
        %704 = vmatmul.mubr.bf16.gmra.mxu0 %v666
        %v705 = vpop.f32.mrf.mxu0
        %v706 = vadd.f32 0.0, %v705
        %v707 = vpop.f32.mrf.mxu0
        %v708 = vpop.f32.mrf.mxu0
        %v709 = vpop.f32.mrf.mxu0
        %710 = vdwg.mxu0
        %v711 = vsel %vm615, %v657, -inf
        %712 = vmax.xlane.f32.xlu0 %v711
        %v713 = vpop.xlane.xlu0 %712
        %v714 = vsel %vm615, %v706, -inf
        %715 = vmax.xlane.f32.xlu0 %v714
        %v716 = vpop.xlane.xlu0 %715
        %v717 = vsub.f32 %v657, %v713
        %v718 = vsub.f32 %v706, %v716
        %v719 = vmul.f32 %v717, 1.442695
        %v720 = vpow.pop %v719
        %v721 = vmul.f32 %v718, 1.442695
        %v722 = vpow.pop %v721
        %v723 = vsel %vm615, %v720, 0.0
        %724 = vadd.xlane.f32.xlu0 %v723
        %v725 = vpop.xlane.xlu0 %724
        %v726 = vsel %vm615, %v722, 0.0
        %727 = vadd.xlane.f32.xlu0 %v726
        %v728 = vpop.xlane.xlu0 %727
        %v729 = vrcp.pop %v725
        %v730 = vrcp.pop %v728
        %v731 = vmul.f32 %v720, %v729
        %v732 = vmul.f32 %v722, %v730
        %v733 = vpack.c.bf16 %v731, %v731
        %v734 = vpack.c.bf16 %v732, %v732
        %735 = vrot.lane.b32.xlu0 %v610, 64
        %v736 = vpop.permute.xlu0 %735
        %v738 = vsel %vm615, %v733, 0
        %vm740 = vcmask 1043456
        %v742 = vsel %vm740, %v736, 0
        %744 = vmatprep.subr.bf16.mxu0 0
        %745 = vmatpush1.bf16.msra.mxu0 0
        %746 = vmatprep.subr.bf16.mxu0 0
        %747 = vmatpush1.bf16.msra.mxu0 0
        %748 = vmatprep.subr.bf16.mxu0 0
        %749 = vmatpush1.bf16.msra.mxu0 0
        %750 = vmatprep.subr.bf16.mxu0 0
        %751 = vmatpush1.bf16.msra.mxu0 0
        %752 = vmatprep.subr.bf16.mxu0 0
        %753 = vmatpush1.bf16.msra.mxu0 0
        %754 = vmatprep.subr.bf16.mxu0 0
        %755 = vmatpush1.bf16.msra.mxu0 0
        %756 = vmatprep.subr.bf16.mxu0 0
        %757 = vmatpush1.bf16.msra.mxu0 0
        %758 = vmatprep.subr.bf16.mxu0 0
        %759 = vmatpush1.bf16.msra.mxu0 %v742
        %760 = vmatprep.subr.bf16.mxu0 0
        %761 = vmatpush2.bf16.msra.mxu0 0
        %762 = vmatprep.subr.bf16.mxu0 0
        %763 = vmatpush2.bf16.msra.mxu0 0
        %764 = vmatprep.subr.bf16.mxu0 0
        %765 = vmatpush2.bf16.msra.mxu0 0
        %766 = vmatprep.subr.bf16.mxu0 0
        %767 = vmatpush2.bf16.msra.mxu0 0
        %768 = vmatprep.subr.bf16.mxu0 0
        %769 = vmatpush2.bf16.msra.mxu0 0
        %770 = vmatprep.subr.bf16.mxu0 0
        %771 = vmatpush2.bf16.msra.mxu0 0
        %772 = vmatprep.subr.bf16.mxu0 0
        %773 = vmatpush2.bf16.msra.mxu0 0
        %774 = vmatprep.subr.bf16.mxu0 0
        %775 = vmatpush2.bf16.msra.mxu0 0
        %776 = vmatprep.mubr.bf16.mxu0 0
        %777 = vmatmul.mubr.bf16.gmra.mxu0 %v738
        %v778 = vpop.f32.mrf.mxu0
        %v779 = vadd.f32 0.0, %v778
        %v780 = vpop.f32.mrf.mxu0
        %v781 = vpop.f32.mrf.mxu0
        %v782 = vpop.f32.mrf.mxu0
        %783 = vdwg.mxu0
        %784 = vrot.lane.b32.xlu0 %v611, 64
        %v785 = vpop.permute.xlu0 %784
        %v787 = vsel %vm615, %v734, 0
        %v790 = vsel %vm740, %v785, 0
        %792 = vmatprep.subr.bf16.mxu0 0
        %793 = vmatpush1.bf16.msra.mxu0 0
        %794 = vmatprep.subr.bf16.mxu0 0
        %795 = vmatpush1.bf16.msra.mxu0 0
        %796 = vmatprep.subr.bf16.mxu0 0
        %797 = vmatpush1.bf16.msra.mxu0 0
        %798 = vmatprep.subr.bf16.mxu0 0
        %799 = vmatpush1.bf16.msra.mxu0 0
        %800 = vmatprep.subr.bf16.mxu0 0
        %801 = vmatpush1.bf16.msra.mxu0 0
        %802 = vmatprep.subr.bf16.mxu0 0
        %803 = vmatpush1.bf16.msra.mxu0 0
        %804 = vmatprep.subr.bf16.mxu0 0
        %805 = vmatpush1.bf16.msra.mxu0 0
        %806 = vmatprep.subr.bf16.mxu0 0
        %807 = vmatpush1.bf16.msra.mxu0 %v790
        %808 = vmatprep.subr.bf16.mxu0 0
        %809 = vmatpush2.bf16.msra.mxu0 0
        %810 = vmatprep.subr.bf16.mxu0 0
        %811 = vmatpush2.bf16.msra.mxu0 0
        %812 = vmatprep.subr.bf16.mxu0 0
        %813 = vmatpush2.bf16.msra.mxu0 0
        %814 = vmatprep.subr.bf16.mxu0 0
        %815 = vmatpush2.bf16.msra.mxu0 0
        %816 = vmatprep.subr.bf16.mxu0 0
        %817 = vmatpush2.bf16.msra.mxu0 0
        %818 = vmatprep.subr.bf16.mxu0 0
        %819 = vmatpush2.bf16.msra.mxu0 0
        %820 = vmatprep.subr.bf16.mxu0 0
        %821 = vmatpush2.bf16.msra.mxu0 0
        %822 = vmatprep.subr.bf16.mxu0 0
        %823 = vmatpush2.bf16.msra.mxu0 0
        %824 = vmatprep.mubr.bf16.mxu0 0
        %825 = vmatmul.mubr.bf16.gmra.mxu0 %v787
        %v826 = vpop.f32.mrf.mxu0
        %v827 = vadd.f32 0.0, %v826
        %v828 = vpop.f32.mrf.mxu0
        %v829 = vpop.f32.mrf.mxu0
        %v830 = vpop.f32.mrf.mxu0
        %831 = vdwg.mxu0
        %v832 = vpack.c.bf16 %v827, %v779
        %v834 = vunpack.c.l.b16 %v832
        %v835 = vunpack.c.h.b16 %v832
        %v836 = vpack.c.b16 %v834, %v834
        %v837 = vpack.c.b16 %v835, %v835
        %vm840 = vcmask 60416
        %841 = vst.msk [vmem:[#allocation2] sm:$0xf] %vm840, %v836
        %842 = vst.msk [vmem:[#allocation2 + $0x4] sm:$0xf] %vm840, %v837
        %844 = vrot.lane.b32.xlu0 %v608, 120
        %v845 = vpop.permute.xlu0 %844
        %846 = vrot.lane.b32.xlu0 %v610, 88
        %v847 = vpop.permute.xlu0 %846
        %v849 = vsel %vm615, %v845, 0
        %v852 = vsel %vm615, %v847, 0
        %854 = vmatprep.subr.bf16.mxu0 0
        %855 = vmatpush1.bf16.xpose.msra.mxu0 0
        %856 = vmatprep.subr.bf16.mxu0 0
        %857 = vmatpush1.bf16.xpose.msra.mxu0 0
        %858 = vmatprep.subr.bf16.mxu0 0
        %859 = vmatpush1.bf16.xpose.msra.mxu0 0
        %860 = vmatprep.subr.bf16.mxu0 0
        %861 = vmatpush1.bf16.xpose.msra.mxu0 0
        %862 = vmatprep.subr.bf16.mxu0 0
        %863 = vmatpush1.bf16.xpose.msra.mxu0 0
        %864 = vmatprep.subr.bf16.mxu0 0
        %865 = vmatpush1.bf16.xpose.msra.mxu0 0
        %866 = vmatprep.subr.bf16.mxu0 0
        %867 = vmatpush1.bf16.xpose.msra.mxu0 0
        %868 = vmatprep.subr.bf16.mxu0 0
        %869 = vmatpush1.bf16.xpose.msra.mxu0 %v852
        %870 = vmatprep.subr.bf16.mxu0 0
        %871 = vmatpush2.bf16.xpose.msra.mxu0 0
        %872 = vmatprep.subr.bf16.mxu0 0
        %873 = vmatpush2.bf16.xpose.msra.mxu0 0
        %874 = vmatprep.subr.bf16.mxu0 0
        %875 = vmatpush2.bf16.xpose.msra.mxu0 0
        %876 = vmatprep.subr.bf16.mxu0 0
        %877 = vmatpush2.bf16.xpose.msra.mxu0 0
        %878 = vmatprep.subr.bf16.mxu0 0
        %879 = vmatpush2.bf16.xpose.msra.mxu0 0
        %880 = vmatprep.subr.bf16.mxu0 0
        %881 = vmatpush2.bf16.xpose.msra.mxu0 0
        %882 = vmatprep.subr.bf16.mxu0 0
        %883 = vmatpush2.bf16.xpose.msra.mxu0 0
        %884 = vmatprep.subr.bf16.mxu0 0
        %885 = vmatpush2.bf16.xpose.msra.mxu0 0
        %886 = vmatprep.mubr.bf16.mxu0 0
        %887 = vmatmul.mubr.bf16.gmra.mxu0 %v849
        %v888 = vpop.f32.mrf.mxu0
        %v889 = vadd.f32 0.0, %v888
        %v890 = vpop.f32.mrf.mxu0
        %v891 = vpop.f32.mrf.mxu0
        %v892 = vpop.f32.mrf.mxu0
        %893 = vdwg.mxu0
        %895 = vrot.lane.b32.xlu0 %v609, 120
        %v896 = vpop.permute.xlu0 %895
        %897 = vrot.lane.b32.xlu0 %v611, 88
        %v898 = vpop.permute.xlu0 %897
        %v900 = vsel %vm615, %v896, 0
        %v903 = vsel %vm615, %v898, 0
        %905 = vmatprep.subr.bf16.mxu0 0
        %906 = vmatpush1.bf16.xpose.msra.mxu0 0
        %907 = vmatprep.subr.bf16.mxu0 0
        %908 = vmatpush1.bf16.xpose.msra.mxu0 0
        %909 = vmatprep.subr.bf16.mxu0 0
        %910 = vmatpush1.bf16.xpose.msra.mxu0 0
        %911 = vmatprep.subr.bf16.mxu0 0
        %912 = vmatpush1.bf16.xpose.msra.mxu0 0
        %913 = vmatprep.subr.bf16.mxu0 0
        %914 = vmatpush1.bf16.xpose.msra.mxu0 0
        %915 = vmatprep.subr.bf16.mxu0 0
        %916 = vmatpush1.bf16.xpose.msra.mxu0 0
        %917 = vmatprep.subr.bf16.mxu0 0
        %918 = vmatpush1.bf16.xpose.msra.mxu0 0
        %919 = vmatprep.subr.bf16.mxu0 0
        %920 = vmatpush1.bf16.xpose.msra.mxu0 %v903
        %921 = vmatprep.subr.bf16.mxu0 0
        %922 = vmatpush2.bf16.xpose.msra.mxu0 0
        %923 = vmatprep.subr.bf16.mxu0 0
        %924 = vmatpush2.bf16.xpose.msra.mxu0 0
        %925 = vmatprep.subr.bf16.mxu0 0
        %926 = vmatpush2.bf16.xpose.msra.mxu0 0
        %927 = vmatprep.subr.bf16.mxu0 0
        %928 = vmatpush2.bf16.xpose.msra.mxu0 0
        %929 = vmatprep.subr.bf16.mxu0 0
        %930 = vmatpush2.bf16.xpose.msra.mxu0 0
        %931 = vmatprep.subr.bf16.mxu0 0
        %932 = vmatpush2.bf16.xpose.msra.mxu0 0
        %933 = vmatprep.subr.bf16.mxu0 0
        %934 = vmatpush2.bf16.xpose.msra.mxu0 0
        %935 = vmatprep.subr.bf16.mxu0 0
        %936 = vmatpush2.bf16.xpose.msra.mxu0 0
        %937 = vmatprep.mubr.bf16.mxu0 0
        %938 = vmatmul.mubr.bf16.gmra.mxu0 %v900
        %v939 = vpop.f32.mrf.mxu0
        %v940 = vadd.f32 0.0, %v939
        %v941 = vpop.f32.mrf.mxu0
        %v942 = vpop.f32.mrf.mxu0
        %v943 = vpop.f32.mrf.mxu0
        %944 = vdwg.mxu0
        %v945 = vsel %vm615, %v889, -inf
        %946 = vmax.xlane.f32.xlu0 %v945
        %v947 = vpop.xlane.xlu0 %946
        %v948 = vsel %vm615, %v940, -inf
        %949 = vmax.xlane.f32.xlu0 %v948
        %v950 = vpop.xlane.xlu0 %949
        %v951 = vsub.f32 %v889, %v947
        %v952 = vsub.f32 %v940, %v950
        %v953 = vmul.f32 %v951, 1.442695
        %v954 = vpow.pop %v953
        %v955 = vmul.f32 %v952, 1.442695
        %v956 = vpow.pop %v955
        %v957 = vsel %vm615, %v954, 0.0
        %958 = vadd.xlane.f32.xlu0 %v957
        %v959 = vpop.xlane.xlu0 %958
        %v960 = vsel %vm615, %v956, 0.0
        %961 = vadd.xlane.f32.xlu0 %v960
        %v962 = vpop.xlane.xlu0 %961
        %v963 = vrcp.pop %v959
        %v964 = vrcp.pop %v962
        %v965 = vmul.f32 %v954, %v963
        %v966 = vmul.f32 %v956, %v964
        %v967 = vpack.c.bf16 %v965, %v965
        %v968 = vpack.c.bf16 %v966, %v966
        %969 = vrot.lane.b32.xlu0 %v610, 56
        %v970 = vpop.permute.xlu0 %969
        %v972 = vsel %vm615, %v967, 0
        %v975 = vsel %vm740, %v970, 0
        %977 = vmatprep.subr.bf16.mxu0 0
        %978 = vmatpush1.bf16.msra.mxu0 0
        %979 = vmatprep.subr.bf16.mxu0 0
        %980 = vmatpush1.bf16.msra.mxu0 0
        %981 = vmatprep.subr.bf16.mxu0 0
        %982 = vmatpush1.bf16.msra.mxu0 0
        %983 = vmatprep.subr.bf16.mxu0 0
        %984 = vmatpush1.bf16.msra.mxu0 0
        %985 = vmatprep.subr.bf16.mxu0 0
        %986 = vmatpush1.bf16.msra.mxu0 0
        %987 = vmatprep.subr.bf16.mxu0 0
        %988 = vmatpush1.bf16.msra.mxu0 0
        %989 = vmatprep.subr.bf16.mxu0 0
        %990 = vmatpush1.bf16.msra.mxu0 0
        %991 = vmatprep.subr.bf16.mxu0 0
        %992 = vmatpush1.bf16.msra.mxu0 %v975
        %993 = vmatprep.subr.bf16.mxu0 0
        %994 = vmatpush2.bf16.msra.mxu0 0
        %995 = vmatprep.subr.bf16.mxu0 0
        %996 = vmatpush2.bf16.msra.mxu0 0
        %997 = vmatprep.subr.bf16.mxu0 0
        %998 = vmatpush2.bf16.msra.mxu0 0
        %999 = vmatprep.subr.bf16.mxu0 0
        %1000 = vmatpush2.bf16.msra.mxu0 0
        %1001 = vmatprep.subr.bf16.mxu0 0
        %1002 = vmatpush2.bf16.msra.mxu0 0
        %1003 = vmatprep.subr.bf16.mxu0 0
        %1004 = vmatpush2.bf16.msra.mxu0 0
        %1005 = vmatprep.subr.bf16.mxu0 0
        %1006 = vmatpush2.bf16.msra.mxu0 0
        %1007 = vmatprep.subr.bf16.mxu0 0
        %1008 = vmatpush2.bf16.msra.mxu0 0
        %1009 = vmatprep.mubr.bf16.mxu0 0
        %1010 = vmatmul.mubr.bf16.gmra.mxu0 %v972
        %v1011 = vpop.f32.mrf.mxu0
        %v1012 = vadd.f32 0.0, %v1011
        %v1013 = vpop.f32.mrf.mxu0
        %v1014 = vpop.f32.mrf.mxu0
        %v1015 = vpop.f32.mrf.mxu0
        %1016 = vdwg.mxu0
        %1017 = vrot.lane.b32.xlu0 %v611, 56
        %v1018 = vpop.permute.xlu0 %1017
        %v1020 = vsel %vm615, %v968, 0
        %v1023 = vsel %vm740, %v1018, 0
        %1025 = vmatprep.subr.bf16.mxu0 0
        %1026 = vmatpush1.bf16.msra.mxu0 0
        %1027 = vmatprep.subr.bf16.mxu0 0
        %1028 = vmatpush1.bf16.msra.mxu0 0
        %1029 = vmatprep.subr.bf16.mxu0 0
        %1030 = vmatpush1.bf16.msra.mxu0 0
        %1031 = vmatprep.subr.bf16.mxu0 0
        %1032 = vmatpush1.bf16.msra.mxu0 0
        %1033 = vmatprep.subr.bf16.mxu0 0
        %1034 = vmatpush1.bf16.msra.mxu0 0
        %1035 = vmatprep.subr.bf16.mxu0 0
        %1036 = vmatpush1.bf16.msra.mxu0 0
        %1037 = vmatprep.subr.bf16.mxu0 0
        %1038 = vmatpush1.bf16.msra.mxu0 0
        %1039 = vmatprep.subr.bf16.mxu0 0
        %1040 = vmatpush1.bf16.msra.mxu0 %v1023
        %1041 = vmatprep.subr.bf16.mxu0 0
        %1042 = vmatpush2.bf16.msra.mxu0 0
        %1043 = vmatprep.subr.bf16.mxu0 0
        %1044 = vmatpush2.bf16.msra.mxu0 0
        %1045 = vmatprep.subr.bf16.mxu0 0
        %1046 = vmatpush2.bf16.msra.mxu0 0
        %1047 = vmatprep.subr.bf16.mxu0 0
        %1048 = vmatpush2.bf16.msra.mxu0 0
        %1049 = vmatprep.subr.bf16.mxu0 0
        %1050 = vmatpush2.bf16.msra.mxu0 0
        %1051 = vmatprep.subr.bf16.mxu0 0
        %1052 = vmatpush2.bf16.msra.mxu0 0
        %1053 = vmatprep.subr.bf16.mxu0 0
        %1054 = vmatpush2.bf16.msra.mxu0 0
        %1055 = vmatprep.subr.bf16.mxu0 0
        %1056 = vmatpush2.bf16.msra.mxu0 0
        %1057 = vmatprep.mubr.bf16.mxu0 0
        %1058 = vmatmul.mubr.bf16.gmra.mxu0 %v1020
        %v1059 = vpop.f32.mrf.mxu0
        %v1060 = vadd.f32 0.0, %v1059
        %v1061 = vpop.f32.mrf.mxu0
        %v1062 = vpop.f32.mrf.mxu0
        %v1063 = vpop.f32.mrf.mxu0
        %1064 = vdwg.mxu0
        %v1065 = vpack.c.bf16 %v1060, %v1012
        %v1067 = vunpack.c.l.b16 %v1065
        %v1068 = vunpack.c.h.b16 %v1065
        %v1069 = vpack.c.b16 %v1067, %v1067
        %v1070 = vpack.c.b16 %v1068, %v1068
        %1071 = vrot.lane.b32.xlu0 %v1069, 8
        %v1072 = vpop.permute.xlu0 %1071
        %1073 = vrot.lane.b32.xlu0 %v1070, 8
        %v1074 = vpop.permute.xlu0 %1073
        %vm1077 = vcmask 126016
        %1078 = vst.msk [vmem:[#allocation2] sm:$0xf] %vm1077, %v1072
        %1079 = vst.msk [vmem:[#allocation2 + $0x4] sm:$0xf] %vm1077, %v1074
        %1080 = vrot.lane.b32.xlu0 %v608, 112
        %v1081 = vpop.permute.xlu0 %1080
        %1082 = vrot.lane.b32.xlu0 %v610, 80
        %v1083 = vpop.permute.xlu0 %1082
        %v1085 = vsel %vm615, %v1081, 0
        %v1088 = vsel %vm615, %v1083, 0
        %1090 = vmatprep.subr.bf16.mxu0 0
        %1091 = vmatpush1.bf16.xpose.msra.mxu0 0
        %1092 = vmatprep.subr.bf16.mxu0 0
        %1093 = vmatpush1.bf16.xpose.msra.mxu0 0
        %1094 = vmatprep.subr.bf16.mxu0 0
        %1095 = vmatpush1.bf16.xpose.msra.mxu0 0
        %1096 = vmatprep.subr.bf16.mxu0 0
        %1097 = vmatpush1.bf16.xpose.msra.mxu0 0
        %1098 = vmatprep.subr.bf16.mxu0 0
        %1099 = vmatpush1.bf16.xpose.msra.mxu0 0
        %1100 = vmatprep.subr.bf16.mxu0 0
        %1101 = vmatpush1.bf16.xpose.msra.mxu0 0
        %1102 = vmatprep.subr.bf16.mxu0 0
        %1103 = vmatpush1.bf16.xpose.msra.mxu0 0
        %1104 = vmatprep.subr.bf16.mxu0 0
        %1105 = vmatpush1.bf16.xpose.msra.mxu0 %v1088
        %1106 = vmatprep.subr.bf16.mxu0 0
        %1107 = vmatpush2.bf16.xpose.msra.mxu0 0
        %1108 = vmatprep.subr.bf16.mxu0 0
        %1109 = vmatpush2.bf16.xpose.msra.mxu0 0
        %1110 = vmatprep.subr.bf16.mxu0 0
        %1111 = vmatpush2.bf16.xpose.msra.mxu0 0
        %1112 = vmatprep.subr.bf16.mxu0 0
        %1113 = vmatpush2.bf16.xpose.msra.mxu0 0
        %1114 = vmatprep.subr.bf16.mxu0 0
        %1115 = vmatpush2.bf16.xpose.msra.mxu0 0
        %1116 = vmatprep.subr.bf16.mxu0 0
        %1117 = vmatpush2.bf16.xpose.msra.mxu0 0
        %1118 = vmatprep.subr.bf16.mxu0 0
        %1119 = vmatpush2.bf16.xpose.msra.mxu0 0
        %1120 = vmatprep.subr.bf16.mxu0 0
        %1121 = vmatpush2.bf16.xpose.msra.mxu0 0
        %1122 = vmatprep.mubr.bf16.mxu0 0
        %1123 = vmatmul.mubr.bf16.gmra.mxu0 %v1085
        %v1124 = vpop.f32.mrf.mxu0
        %v1125 = vadd.f32 0.0, %v1124
        %v1126 = vpop.f32.mrf.mxu0
        %v1127 = vpop.f32.mrf.mxu0
        %v1128 = vpop.f32.mrf.mxu0
        %1129 = vdwg.mxu0
        %1130 = vrot.lane.b32.xlu0 %v609, 112
        %v1131 = vpop.permute.xlu0 %1130
        %1132 = vrot.lane.b32.xlu0 %v611, 80
        %v1133 = vpop.permute.xlu0 %1132
        %v1135 = vsel %vm615, %v1131, 0
        %v1138 = vsel %vm615, %v1133, 0
        %1140 = vmatprep.subr.bf16.mxu0 0
        %1141 = vmatpush1.bf16.xpose.msra.mxu0 0
        %1142 = vmatprep.subr.bf16.mxu0 0
        %1143 = vmatpush1.bf16.xpose.msra.mxu0 0
        %1144 = vmatprep.subr.bf16.mxu0 0
        %1145 = vmatpush1.bf16.xpose.msra.mxu0 0
        %1146 = vmatprep.subr.bf16.mxu0 0
        %1147 = vmatpush1.bf16.xpose.msra.mxu0 0
        %1148 = vmatprep.subr.bf16.mxu0 0
        %1149 = vmatpush1.bf16.xpose.msra.mxu0 0
        %1150 = vmatprep.subr.bf16.mxu0 0
        %1151 = vmatpush1.bf16.xpose.msra.mxu0 0
        %1152 = vmatprep.subr.bf16.mxu0 0
        %1153 = vmatpush1.bf16.xpose.msra.mxu0 0
        %1154 = vmatprep.subr.bf16.mxu0 0
        %1155 = vmatpush1.bf16.xpose.msra.mxu0 %v1138
        %1156 = vmatprep.subr.bf16.mxu0 0
        %1157 = vmatpush2.bf16.xpose.msra.mxu0 0
        %1158 = vmatprep.subr.bf16.mxu0 0
        %1159 = vmatpush2.bf16.xpose.msra.mxu0 0
        %1160 = vmatprep.subr.bf16.mxu0 0
        %1161 = vmatpush2.bf16.xpose.msra.mxu0 0
        %1162 = vmatprep.subr.bf16.mxu0 0
        %1163 = vmatpush2.bf16.xpose.msra.mxu0 0
        %1164 = vmatprep.subr.bf16.mxu0 0
        %1165 = vmatpush2.bf16.xpose.msra.mxu0 0
        %1166 = vmatprep.subr.bf16.mxu0 0
        %1167 = vmatpush2.bf16.xpose.msra.mxu0 0
        %1168 = vmatprep.subr.bf16.mxu0 0
        %1169 = vmatpush2.bf16.xpose.msra.mxu0 0
        %1170 = vmatprep.subr.bf16.mxu0 0
        %1171 = vmatpush2.bf16.xpose.msra.mxu0 0
        %1172 = vmatprep.mubr.bf16.mxu0 0
        %1173 = vmatmul.mubr.bf16.gmra.mxu0 %v1135
        %v1174 = vpop.f32.mrf.mxu0
        %v1175 = vadd.f32 0.0, %v1174
        %v1176 = vpop.f32.mrf.mxu0
        %v1177 = vpop.f32.mrf.mxu0
        %v1178 = vpop.f32.mrf.mxu0
        %1179 = vdwg.mxu0
        %v1180 = vsel %vm615, %v1125, -inf
        %1181 = vmax.xlane.f32.xlu0 %v1180
        %v1182 = vpop.xlane.xlu0 %1181
        %v1183 = vsel %vm615, %v1175, -inf
        %1184 = vmax.xlane.f32.xlu0 %v1183
        %v1185 = vpop.xlane.xlu0 %1184
        %v1186 = vsub.f32 %v1125, %v1182
        %v1187 = vsub.f32 %v1175, %v1185
        %v1188 = vmul.f32 %v1186, 1.442695
        %v1189 = vpow.pop %v1188
        %v1190 = vmul.f32 %v1187, 1.442695
        %v1191 = vpow.pop %v1190
        %v1192 = vsel %vm615, %v1189, 0.0
        %1193 = vadd.xlane.f32.xlu0 %v1192
        %v1194 = vpop.xlane.xlu0 %1193
        %v1195 = vsel %vm615, %v1191, 0.0
        %1196 = vadd.xlane.f32.xlu0 %v1195
        %v1197 = vpop.xlane.xlu0 %1196
        %v1198 = vrcp.pop %v1194
        %v1199 = vrcp.pop %v1197
        %v1200 = vmul.f32 %v1189, %v1198
        %v1201 = vmul.f32 %v1191, %v1199
        %v1202 = vpack.c.bf16 %v1200, %v1200
        %v1203 = vpack.c.bf16 %v1201, %v1201
        %1204 = vrot.lane.b32.xlu0 %v610, 48
        %v1205 = vpop.permute.xlu0 %1204
        %v1207 = vsel %vm615, %v1202, 0
        %v1210 = vsel %vm740, %v1205, 0
        %1212 = vmatprep.subr.bf16.mxu0 0
        %1213 = vmatpush1.bf16.msra.mxu0 0
        %1214 = vmatprep.subr.bf16.mxu0 0
        %1215 = vmatpush1.bf16.msra.mxu0 0
        %1216 = vmatprep.subr.bf16.mxu0 0
        %1217 = vmatpush1.bf16.msra.mxu0 0
        %1218 = vmatprep.subr.bf16.mxu0 0
        %1219 = vmatpush1.bf16.msra.mxu0 0
        %1220 = vmatprep.subr.bf16.mxu0 0
        %1221 = vmatpush1.bf16.msra.mxu0 0
        %1222 = vmatprep.subr.bf16.mxu0 0
        %1223 = vmatpush1.bf16.msra.mxu0 0
        %1224 = vmatprep.subr.bf16.mxu0 0
        %1225 = vmatpush1.bf16.msra.mxu0 0
        %1226 = vmatprep.subr.bf16.mxu0 0
        %1227 = vmatpush1.bf16.msra.mxu0 %v1210
        %1228 = vmatprep.subr.bf16.mxu0 0
        %1229 = vmatpush2.bf16.msra.mxu0 0
        %1230 = vmatprep.subr.bf16.mxu0 0
        %1231 = vmatpush2.bf16.msra.mxu0 0
        %1232 = vmatprep.subr.bf16.mxu0 0
        %1233 = vmatpush2.bf16.msra.mxu0 0
        %1234 = vmatprep.subr.bf16.mxu0 0
        %1235 = vmatpush2.bf16.msra.mxu0 0
        %1236 = vmatprep.subr.bf16.mxu0 0
        %1237 = vmatpush2.bf16.msra.mxu0 0
        %1238 = vmatprep.subr.bf16.mxu0 0
        %1239 = vmatpush2.bf16.msra.mxu0 0
        %1240 = vmatprep.subr.bf16.mxu0 0
        %1241 = vmatpush2.bf16.msra.mxu0 0
        %1242 = vmatprep.subr.bf16.mxu0 0
        %1243 = vmatpush2.bf16.msra.mxu0 0
        %1244 = vmatprep.mubr.bf16.mxu0 0
        %1245 = vmatmul.mubr.bf16.gmra.mxu0 %v1207
        %v1246 = vpop.f32.mrf.mxu0
        %v1247 = vadd.f32 0.0, %v1246
        %v1248 = vpop.f32.mrf.mxu0
        %v1249 = vpop.f32.mrf.mxu0
        %v1250 = vpop.f32.mrf.mxu0
        %1251 = vdwg.mxu0
        %1252 = vrot.lane.b32.xlu0 %v611, 48
        %v1253 = vpop.permute.xlu0 %1252
        %v1255 = vsel %vm615, %v1203, 0
        %v1258 = vsel %vm740, %v1253, 0
        %1260 = vmatprep.subr.bf16.mxu0 0
        %1261 = vmatpush1.bf16.msra.mxu0 0
        %1262 = vmatprep.subr.bf16.mxu0 0
        %1263 = vmatpush1.bf16.msra.mxu0 0
        %1264 = vmatprep.subr.bf16.mxu0 0
        %1265 = vmatpush1.bf16.msra.mxu0 0
        %1266 = vmatprep.subr.bf16.mxu0 0
        %1267 = vmatpush1.bf16.msra.mxu0 0
        %1268 = vmatprep.subr.bf16.mxu0 0
        %1269 = vmatpush1.bf16.msra.mxu0 0
        %1270 = vmatprep.subr.bf16.mxu0 0
        %1271 = vmatpush1.bf16.msra.mxu0 0
        %1272 = vmatprep.subr.bf16.mxu0 0
        %1273 = vmatpush1.bf16.msra.mxu0 0
        %1274 = vmatprep.subr.bf16.mxu0 0
        %1275 = vmatpush1.bf16.msra.mxu0 %v1258
        %1276 = vmatprep.subr.bf16.mxu0 0
        %1277 = vmatpush2.bf16.msra.mxu0 0
        %1278 = vmatprep.subr.bf16.mxu0 0
        %1279 = vmatpush2.bf16.msra.mxu0 0
        %1280 = vmatprep.subr.bf16.mxu0 0
        %1281 = vmatpush2.bf16.msra.mxu0 0
        %1282 = vmatprep.subr.bf16.mxu0 0
        %1283 = vmatpush2.bf16.msra.mxu0 0
        %1284 = vmatprep.subr.bf16.mxu0 0
        %1285 = vmatpush2.bf16.msra.mxu0 0
        %1286 = vmatprep.subr.bf16.mxu0 0
        %1287 = vmatpush2.bf16.msra.mxu0 0
        %1288 = vmatprep.subr.bf16.mxu0 0
        %1289 = vmatpush2.bf16.msra.mxu0 0
        %1290 = vmatprep.subr.bf16.mxu0 0
        %1291 = vmatpush2.bf16.msra.mxu0 0
        %1292 = vmatprep.mubr.bf16.mxu0 0
        %1293 = vmatmul.mubr.bf16.gmra.mxu0 %v1255
        %v1294 = vpop.f32.mrf.mxu0
        %v1295 = vadd.f32 0.0, %v1294
        %v1296 = vpop.f32.mrf.mxu0
        %v1297 = vpop.f32.mrf.mxu0
        %v1298 = vpop.f32.mrf.mxu0
        %1299 = vdwg.mxu0
        %v1300 = vpack.c.bf16 %v1295, %v1247
        %v1302 = vunpack.c.l.b16 %v1300
        %v1303 = vunpack.c.h.b16 %v1300
        %v1304 = vpack.c.b16 %v1302, %v1302
        %v1305 = vpack.c.b16 %v1303, %v1303
        %1306 = vrot.lane.b32.xlu0 %v1304, 16
        %v1307 = vpop.permute.xlu0 %1306
        %1308 = vrot.lane.b32.xlu0 %v1305, 16
        %v1309 = vpop.permute.xlu0 %1308
        %vm1312 = vcmask 191616
        %1313 = vst.msk [vmem:[#allocation2] sm:$0xf] %vm1312, %v1307
        %1314 = vst.msk [vmem:[#allocation2 + $0x4] sm:$0xf] %vm1312, %v1309
        %1315 = vrot.lane.b32.xlu0 %v608, 104
        %v1316 = vpop.permute.xlu0 %1315
        %1317 = vrot.lane.b32.xlu0 %v610, 72
        %v1318 = vpop.permute.xlu0 %1317
        %v1320 = vsel %vm615, %v1316, 0
        %v1323 = vsel %vm615, %v1318, 0
        %1325 = vmatprep.subr.bf16.mxu0 0
        %1326 = vmatpush1.bf16.xpose.msra.mxu0 0
        %1327 = vmatprep.subr.bf16.mxu0 0
        %1328 = vmatpush1.bf16.xpose.msra.mxu0 0
        %1329 = vmatprep.subr.bf16.mxu0 0
        %1330 = vmatpush1.bf16.xpose.msra.mxu0 0
        %1331 = vmatprep.subr.bf16.mxu0 0
        %1332 = vmatpush1.bf16.xpose.msra.mxu0 0
        %1333 = vmatprep.subr.bf16.mxu0 0
        %1334 = vmatpush1.bf16.xpose.msra.mxu0 0
        %1335 = vmatprep.subr.bf16.mxu0 0
        %1336 = vmatpush1.bf16.xpose.msra.mxu0 0
        %1337 = vmatprep.subr.bf16.mxu0 0
        %1338 = vmatpush1.bf16.xpose.msra.mxu0 0
        %1339 = vmatprep.subr.bf16.mxu0 0
        %1340 = vmatpush1.bf16.xpose.msra.mxu0 %v1323
        %1341 = vmatprep.subr.bf16.mxu0 0
        %1342 = vmatpush2.bf16.xpose.msra.mxu0 0
        %1343 = vmatprep.subr.bf16.mxu0 0
        %1344 = vmatpush2.bf16.xpose.msra.mxu0 0
        %1345 = vmatprep.subr.bf16.mxu0 0
        %1346 = vmatpush2.bf16.xpose.msra.mxu0 0
        %1347 = vmatprep.subr.bf16.mxu0 0
        %1348 = vmatpush2.bf16.xpose.msra.mxu0 0
        %1349 = vmatprep.subr.bf16.mxu0 0
        %1350 = vmatpush2.bf16.xpose.msra.mxu0 0
        %1351 = vmatprep.subr.bf16.mxu0 0
        %1352 = vmatpush2.bf16.xpose.msra.mxu0 0
        %1353 = vmatprep.subr.bf16.mxu0 0
        %1354 = vmatpush2.bf16.xpose.msra.mxu0 0
        %1355 = vmatprep.subr.bf16.mxu0 0
        %1356 = vmatpush2.bf16.xpose.msra.mxu0 0
        %1357 = vmatprep.mubr.bf16.mxu0 0
        %1358 = vmatmul.mubr.bf16.gmra.mxu0 %v1320
        %v1359 = vpop.f32.mrf.mxu0
        %v1360 = vadd.f32 0.0, %v1359
        %v1361 = vpop.f32.mrf.mxu0
        %v1362 = vpop.f32.mrf.mxu0
        %v1363 = vpop.f32.mrf.mxu0
        %1364 = vdwg.mxu0
        %1365 = vrot.lane.b32.xlu0 %v609, 104
        %v1366 = vpop.permute.xlu0 %1365
        %1367 = vrot.lane.b32.xlu0 %v611, 72
        %v1368 = vpop.permute.xlu0 %1367
        %v1370 = vsel %vm615, %v1366, 0
        %v1373 = vsel %vm615, %v1368, 0
        %1375 = vmatprep.subr.bf16.mxu0 0
        %1376 = vmatpush1.bf16.xpose.msra.mxu0 0
        %1377 = vmatprep.subr.bf16.mxu0 0
        %1378 = vmatpush1.bf16.xpose.msra.mxu0 0
        %1379 = vmatprep.subr.bf16.mxu0 0
        %1380 = vmatpush1.bf16.xpose.msra.mxu0 0
        %1381 = vmatprep.subr.bf16.mxu0 0
        %1382 = vmatpush1.bf16.xpose.msra.mxu0 0
        %1383 = vmatprep.subr.bf16.mxu0 0
        %1384 = vmatpush1.bf16.xpose.msra.mxu0 0
        %1385 = vmatprep.subr.bf16.mxu0 0
        %1386 = vmatpush1.bf16.xpose.msra.mxu0 0
        %1387 = vmatprep.subr.bf16.mxu0 0
        %1388 = vmatpush1.bf16.xpose.msra.mxu0 0
        %1389 = vmatprep.subr.bf16.mxu0 0
        %1390 = vmatpush1.bf16.xpose.msra.mxu0 %v1373
        %1391 = vmatprep.subr.bf16.mxu0 0
        %1392 = vmatpush2.bf16.xpose.msra.mxu0 0
        %1393 = vmatprep.subr.bf16.mxu0 0
        %1394 = vmatpush2.bf16.xpose.msra.mxu0 0
        %1395 = vmatprep.subr.bf16.mxu0 0
        %1396 = vmatpush2.bf16.xpose.msra.mxu0 0
        %1397 = vmatprep.subr.bf16.mxu0 0
        %1398 = vmatpush2.bf16.xpose.msra.mxu0 0
        %1399 = vmatprep.subr.bf16.mxu0 0
        %1400 = vmatpush2.bf16.xpose.msra.mxu0 0
        %1401 = vmatprep.subr.bf16.mxu0 0
        %1402 = vmatpush2.bf16.xpose.msra.mxu0 0
        %1403 = vmatprep.subr.bf16.mxu0 0
        %1404 = vmatpush2.bf16.xpose.msra.mxu0 0
        %1405 = vmatprep.subr.bf16.mxu0 0
        %1406 = vmatpush2.bf16.xpose.msra.mxu0 0
        %1407 = vmatprep.mubr.bf16.mxu0 0
        %1408 = vmatmul.mubr.bf16.gmra.mxu0 %v1370
        %v1409 = vpop.f32.mrf.mxu0
        %v1410 = vadd.f32 0.0, %v1409
        %v1411 = vpop.f32.mrf.mxu0
        %v1412 = vpop.f32.mrf.mxu0
        %v1413 = vpop.f32.mrf.mxu0
        %1414 = vdwg.mxu0
        %v1415 = vsel %vm615, %v1360, -inf
        %1416 = vmax.xlane.f32.xlu0 %v1415
        %v1417 = vpop.xlane.xlu0 %1416
        %v1418 = vsel %vm615, %v1410, -inf
        %1419 = vmax.xlane.f32.xlu0 %v1418
        %v1420 = vpop.xlane.xlu0 %1419
        %v1421 = vsub.f32 %v1360, %v1417
        %v1422 = vsub.f32 %v1410, %v1420
        %v1423 = vmul.f32 %v1421, 1.442695
        %v1424 = vpow.pop %v1423
        %v1425 = vmul.f32 %v1422, 1.442695
        %v1426 = vpow.pop %v1425
        %v1427 = vsel %vm615, %v1424, 0.0
        %1428 = vadd.xlane.f32.xlu0 %v1427
        %v1429 = vpop.xlane.xlu0 %1428
        %v1430 = vsel %vm615, %v1426, 0.0
        %1431 = vadd.xlane.f32.xlu0 %v1430
        %v1432 = vpop.xlane.xlu0 %1431
        %v1433 = vrcp.pop %v1429
        %v1434 = vrcp.pop %v1432
        %v1435 = vmul.f32 %v1424, %v1433
        %v1436 = vmul.f32 %v1426, %v1434
        %v1437 = vpack.c.bf16 %v1435, %v1435
        %v1438 = vpack.c.bf16 %v1436, %v1436
        %1439 = vrot.lane.b32.xlu0 %v610, 40
        %v1440 = vpop.permute.xlu0 %1439
        %v1442 = vsel %vm615, %v1437, 0
        %v1445 = vsel %vm740, %v1440, 0
        %1447 = vmatprep.subr.bf16.mxu0 0
        %1448 = vmatpush1.bf16.msra.mxu0 0
        %1449 = vmatprep.subr.bf16.mxu0 0
        %1450 = vmatpush1.bf16.msra.mxu0 0
        %1451 = vmatprep.subr.bf16.mxu0 0
        %1452 = vmatpush1.bf16.msra.mxu0 0
        %1453 = vmatprep.subr.bf16.mxu0 0
        %1454 = vmatpush1.bf16.msra.mxu0 0
        %1455 = vmatprep.subr.bf16.mxu0 0
        %1456 = vmatpush1.bf16.msra.mxu0 0
        %1457 = vmatprep.subr.bf16.mxu0 0
        %1458 = vmatpush1.bf16.msra.mxu0 0
        %1459 = vmatprep.subr.bf16.mxu0 0
        %1460 = vmatpush1.bf16.msra.mxu0 0
        %1461 = vmatprep.subr.bf16.mxu0 0
        %1462 = vmatpush1.bf16.msra.mxu0 %v1445
        %1463 = vmatprep.subr.bf16.mxu0 0
        %1464 = vmatpush2.bf16.msra.mxu0 0
        %1465 = vmatprep.subr.bf16.mxu0 0
        %1466 = vmatpush2.bf16.msra.mxu0 0
        %1467 = vmatprep.subr.bf16.mxu0 0
        %1468 = vmatpush2.bf16.msra.mxu0 0
        %1469 = vmatprep.subr.bf16.mxu0 0
        %1470 = vmatpush2.bf16.msra.mxu0 0
        %1471 = vmatprep.subr.bf16.mxu0 0
        %1472 = vmatpush2.bf16.msra.mxu0 0
        %1473 = vmatprep.subr.bf16.mxu0 0
        %1474 = vmatpush2.bf16.msra.mxu0 0
        %1475 = vmatprep.subr.bf16.mxu0 0
        %1476 = vmatpush2.bf16.msra.mxu0 0
        %1477 = vmatprep.subr.bf16.mxu0 0
        %1478 = vmatpush2.bf16.msra.mxu0 0
        %1479 = vmatprep.mubr.bf16.mxu0 0
        %1480 = vmatmul.mubr.bf16.gmra.mxu0 %v1442
        %v1481 = vpop.f32.mrf.mxu0
        %v1482 = vadd.f32 0.0, %v1481
        %v1483 = vpop.f32.mrf.mxu0
        %v1484 = vpop.f32.mrf.mxu0
        %v1485 = vpop.f32.mrf.mxu0
        %1486 = vdwg.mxu0
        %1487 = vrot.lane.b32.xlu0 %v611, 40
        %v1488 = vpop.permute.xlu0 %1487
        %v1490 = vsel %vm615, %v1438, 0
        %v1493 = vsel %vm740, %v1488, 0
        %1495 = vmatprep.subr.bf16.mxu0 0
        %1496 = vmatpush1.bf16.msra.mxu0 0
        %1497 = vmatprep.subr.bf16.mxu0 0
        %1498 = vmatpush1.bf16.msra.mxu0 0
        %1499 = vmatprep.subr.bf16.mxu0 0
        %1500 = vmatpush1.bf16.msra.mxu0 0
        %1501 = vmatprep.subr.bf16.mxu0 0
        %1502 = vmatpush1.bf16.msra.mxu0 0
        %1503 = vmatprep.subr.bf16.mxu0 0
        %1504 = vmatpush1.bf16.msra.mxu0 0
        %1505 = vmatprep.subr.bf16.mxu0 0
        %1506 = vmatpush1.bf16.msra.mxu0 0
        %1507 = vmatprep.subr.bf16.mxu0 0
        %1508 = vmatpush1.bf16.msra.mxu0 0
        %1509 = vmatprep.subr.bf16.mxu0 0
        %1510 = vmatpush1.bf16.msra.mxu0 %v1493
        %1511 = vmatprep.subr.bf16.mxu0 0
        %1512 = vmatpush2.bf16.msra.mxu0 0
        %1513 = vmatprep.subr.bf16.mxu0 0
        %1514 = vmatpush2.bf16.msra.mxu0 0
        %1515 = vmatprep.subr.bf16.mxu0 0
        %1516 = vmatpush2.bf16.msra.mxu0 0
        %1517 = vmatprep.subr.bf16.mxu0 0
        %1518 = vmatpush2.bf16.msra.mxu0 0
        %1519 = vmatprep.subr.bf16.mxu0 0
        %1520 = vmatpush2.bf16.msra.mxu0 0
        %1521 = vmatprep.subr.bf16.mxu0 0
        %1522 = vmatpush2.bf16.msra.mxu0 0
        %1523 = vmatprep.subr.bf16.mxu0 0
        %1524 = vmatpush2.bf16.msra.mxu0 0
        %1525 = vmatprep.subr.bf16.mxu0 0
        %1526 = vmatpush2.bf16.msra.mxu0 0
        %1527 = vmatprep.mubr.bf16.mxu0 0
        %1528 = vmatmul.mubr.bf16.gmra.mxu0 %v1490
        %v1529 = vpop.f32.mrf.mxu0
        %v1530 = vadd.f32 0.0, %v1529
        %v1531 = vpop.f32.mrf.mxu0
        %v1532 = vpop.f32.mrf.mxu0
        %v1533 = vpop.f32.mrf.mxu0
        %1534 = vdwg.mxu0
        %v1535 = vpack.c.bf16 %v1530, %v1482
        %v1537 = vunpack.c.l.b16 %v1535
        %v1538 = vunpack.c.h.b16 %v1535
        %v1539 = vpack.c.b16 %v1537, %v1537
        %v1540 = vpack.c.b16 %v1538, %v1538
        %1541 = vrot.lane.b32.xlu0 %v1539, 24
        %v1542 = vpop.permute.xlu0 %1541
        %1543 = vrot.lane.b32.xlu0 %v1540, 24
        %v1544 = vpop.permute.xlu0 %1543
        %vm1547 = vcmask 257216
        %1548 = vst.msk [vmem:[#allocation2] sm:$0xf] %vm1547, %v1542
        %1549 = vst.msk [vmem:[#allocation2 + $0x4] sm:$0xf] %vm1547, %v1544
        %v1550 = vld [vmem:[#allocation2] sm:$0xf]
        %v1551 = vld [vmem:[#allocation2 + $0x4] sm:$0xf]
        %v1552 = vld [vmem:[#allocation6] sm:$0xf]
        %v1553 = vld [vmem:[#allocation6 + $0x4] sm:$0xf]
        %v1554 = vld [vmem:[#allocation6 + $0x8] sm:$0xf]
        %v1555 = vld [vmem:[#allocation6 + $0xc] sm:$0xf]
        %v1556 = vld [vmem:[#allocation8] sm:$0x1]
        %v1558 = vlaneseq
        %v1559 = vshrl.u32 %v1558, 7
        %v1560 = vsub.s32 0, %v1559
        %v1561 = vrot.slane %v1556, %v1560
        %v1565 = vunpack.c.l.b16 %v1550
        %v1566 = vunpack.c.l.b16 %v1551
        %v1567 = vpack.c.b16 %v1566, %v1565
        %v1572 = vunpack.c.l.b16 %v1552
        %v1573 = vunpack.c.l.b16 %v1553
        %v1574 = vunpack.c.l.b16 %v1554
        %v1575 = vunpack.c.l.b16 %v1555
        %v1576 = vpack.c.b16 %v1573, %v1572
        %v1577 = vpack.c.b16 %v1575, %v1574
        %v1581 = vsel %vm561, %v1567, 0
        %1583 = vmatprep.subr.bf16.mxu0 0
        %1584 = vmatpush1.bf16.msra.mxu0 0
        %1585 = vmatprep.subr.bf16.mxu0 0
        %1586 = vmatpush1.bf16.msra.mxu0 0
        %1587 = vmatprep.subr.bf16.mxu0 0
        %1588 = vmatpush1.bf16.msra.mxu0 0
        %1589 = vmatprep.subr.bf16.mxu0 0
        %1590 = vmatpush1.bf16.msra.mxu0 0
        %1591 = vmatprep.subr.bf16.mxu0 0
        %1592 = vmatpush1.bf16.msra.mxu0 0
        %1593 = vmatprep.subr.bf16.mxu0 0
        %1594 = vmatpush1.bf16.msra.mxu0 0
        %1595 = vmatprep.subr.bf16.mxu0 0
        %1596 = vmatpush1.bf16.msra.mxu0 %v1577
        %1597 = vmatprep.subr.bf16.mxu0 0
        %1598 = vmatpush1.bf16.msra.mxu0 %v1576
        %1599 = vmatprep.subr.bf16.mxu0 0
        %1600 = vmatpush2.bf16.msra.mxu0 0
        %1601 = vmatprep.subr.bf16.mxu0 0
        %1602 = vmatpush2.bf16.msra.mxu0 0
        %1603 = vmatprep.subr.bf16.mxu0 0
        %1604 = vmatpush2.bf16.msra.mxu0 0
        %1605 = vmatprep.subr.bf16.mxu0 0
        %1606 = vmatpush2.bf16.msra.mxu0 0
        %1607 = vmatprep.subr.bf16.mxu0 0
        %1608 = vmatpush2.bf16.msra.mxu0 0
        %1609 = vmatprep.subr.bf16.mxu0 0
        %1610 = vmatpush2.bf16.msra.mxu0 0
        %1611 = vmatprep.subr.bf16.mxu0 0
        %1612 = vmatpush2.bf16.msra.mxu0 0
        %1613 = vmatprep.subr.bf16.mxu0 0
        %1614 = vmatpush2.bf16.msra.mxu0 0
        %1615 = vmatprep.mubr.bf16.mxu0 0
        %1616 = vmatmul.mubr.bf16.gmra.mxu0 %v1581
        %v1617 = vpop.f32.mrf.mxu0
        %v1618 = vadd.f32 %v1561, %v1617
        %v1619 = vpop.f32.mrf.mxu0
        %v1620 = vpop.f32.mrf.mxu0
        %v1621 = vadd.f32 %v1561, %v1620
        %v1622 = vpop.f32.mrf.mxu0
        %1623 = vdwg.mxu0
        %v1624 = vadd.f32 %v535, %v1618
        %v1625 = vadd.f32 %v536, %v1621
        %v1626 = vsel %vm561, %v1624, 0.0
        %1627 = vadd.xlane.f32.xlu0 %v1626
        %v1628 = vpop.xlane.xlu0 %1627
        %v1629 = vsel %vm561, %v1625, 0.0
        %1630 = vadd.xlane.f32.xlu0 %v1629
        %v1631 = vpop.xlane.xlu0 %1630
        %v1632 = vrcp.pop 32.0
        %v1633 = vmul.f32 %v1628, %v1632
        %v1634 = vmul.f32 %v1631, %v1632
        %v1635 = vsub.f32 %v1624, %v1633
        %v1636 = vsub.f32 %v1625, %v1634
        %v1637 = vmul.f32 %v1635, %v1635
        %v1638 = vmul.f32 %v1636, %v1636
        %v1639 = vsel %vm561, %v1637, 0.0
        %1640 = vadd.xlane.f32.xlu0 %v1639
        %v1641 = vpop.xlane.xlu0 %1640
        %v1642 = vsel %vm561, %v1638, 0.0
        %1643 = vadd.xlane.f32.xlu0 %v1642
        %v1644 = vpop.xlane.xlu0 %1643
        %v1645 = vmul.f32 %v1641, %v1632
        %v1646 = vmul.f32 %v1644, %v1632
        %v1647 = vadd.f32 %v1645, 1e-05
        %v1648 = vadd.f32 %v1646, 1e-05
        %v1649 = vrsqrt.pop %v1647
        %v1650 = vrsqrt.pop %v1648
        %v1651 = vmul.f32 %v1635, %v1649
        %v1652 = vmul.f32 %v1636, %v1650
        %v1653 = vld [vmem:[#allocation9] sm:$0x1]
        %v1655 = vlaneseq
        %v1656 = vshrl.u32 %v1655, 7
        %v1657 = vsub.s32 0, %v1656
        %v1658 = vrot.slane %v1653, %v1657
        %v1660 = vmul.f32 %v1651, %v1658
        %v1661 = vmul.f32 %v1652, %v1658
        %v1662 = vld [vmem:[#allocation11] sm:$0x1]
        %v1664 = vlaneseq
        %v1665 = vshrl.u32 %v1664, 7
        %v1666 = vsub.s32 0, %v1665
        %v1667 = vrot.slane %v1662, %v1666
        %v1669 = vadd.f32 %v1660, %v1667
        %v1670 = vadd.f32 %v1661, %v1667
        %v1671 = vpack.c.bf16 %v1670, %v1669
        %v1672 = vld [vmem:[#allocation12] sm:$0xf]
        %v1673 = vld [vmem:[#allocation12 + $0x4] sm:$0xf]
        %v1674 = vld [vmem:[#allocation12 + $0x8] sm:$0xf]
        %v1675 = vld [vmem:[#allocation12 + $0xc] sm:$0xf]
        %v1676 = vld [vmem:[#allocation14] sm:$0x1]
        %v1678 = vlaneseq
        %v1679 = vshrl.u32 %v1678, 7
        %v1680 = vsub.s32 0, %v1679
        %v1681 = vrot.slane %v1676, %v1680
        %v1687 = vunpack.c.l.b16 %v1672
        %v1688 = vunpack.c.l.b16 %v1673
        %v1689 = vunpack.c.l.b16 %v1674
        %v1690 = vunpack.c.l.b16 %v1675
        %v1691 = vpack.c.b16 %v1688, %v1687
        %v1692 = vpack.c.b16 %v1690, %v1689
        %v1696 = vsel %vm561, %v1671, 0
        %1698 = vmatprep.subr.bf16.mxu0 0
        %1699 = vmatpush1.bf16.msra.mxu0 0
        %1700 = vmatprep.subr.bf16.mxu0 0
        %1701 = vmatpush1.bf16.msra.mxu0 0
        %1702 = vmatprep.subr.bf16.mxu0 0
        %1703 = vmatpush1.bf16.msra.mxu0 0
        %1704 = vmatprep.subr.bf16.mxu0 0
        %1705 = vmatpush1.bf16.msra.mxu0 0
        %1706 = vmatprep.subr.bf16.mxu0 0
        %1707 = vmatpush1.bf16.msra.mxu0 0
        %1708 = vmatprep.subr.bf16.mxu0 0
        %1709 = vmatpush1.bf16.msra.mxu0 0
        %1710 = vmatprep.subr.bf16.mxu0 0
        %1711 = vmatpush1.bf16.msra.mxu0 %v1692
        %1712 = vmatprep.subr.bf16.mxu0 0
        %1713 = vmatpush1.bf16.msra.mxu0 %v1691
        %1714 = vmatprep.subr.bf16.mxu0 0
        %1715 = vmatpush2.bf16.msra.mxu0 0
        %1716 = vmatprep.subr.bf16.mxu0 0
        %1717 = vmatpush2.bf16.msra.mxu0 0
        %1718 = vmatprep.subr.bf16.mxu0 0
        %1719 = vmatpush2.bf16.msra.mxu0 0
        %1720 = vmatprep.subr.bf16.mxu0 0
        %1721 = vmatpush2.bf16.msra.mxu0 0
        %1722 = vmatprep.subr.bf16.mxu0 0
        %1723 = vmatpush2.bf16.msra.mxu0 0
        %1724 = vmatprep.subr.bf16.mxu0 0
        %1725 = vmatpush2.bf16.msra.mxu0 0
        %1726 = vmatprep.subr.bf16.mxu0 0
        %1727 = vmatpush2.bf16.msra.mxu0 0
        %1728 = vmatprep.subr.bf16.mxu0 0
        %1729 = vmatpush2.bf16.msra.mxu0 0
        %1730 = vmatprep.mubr.bf16.mxu0 0
        %1731 = vmatmul.mubr.bf16.gmra.mxu0 %v1696
        %v1732 = vpop.f32.mrf.mxu0
        %v1733 = vadd.f32 %v1681, %v1732
        %v1734 = vpop.f32.mrf.mxu0
        %v1735 = vpop.f32.mrf.mxu0
        %v1736 = vadd.f32 %v1681, %v1735
        %v1737 = vpop.f32.mrf.mxu0
        %1738 = vdwg.mxu0
        %v1739 = vmax.f32 %v1733, 0.0
        %v1740 = vmax.f32 %v1736, 0.0
        %v1741 = vpack.c.bf16 %v1740, %v1739
        %v1742 = vld [vmem:[%s9] sm:$0xf]
        %v1743 = vld [vmem:[%s9 + $0x4] sm:$0xf]
        %v1744 = vld [vmem:[%s9 + $0x8] sm:$0xf]
        %v1745 = vld [vmem:[%s9 + $0xc] sm:$0xf]
        %v1746 = vld [vmem:[%s9 + $0x10] sm:$0xf]
        %v1747 = vld [vmem:[%s9 + $0x14] sm:$0xf]
        %v1748 = vld [vmem:[%s9 + $0x18] sm:$0xf]
        %v1749 = vld [vmem:[%s9 + $0x1c] sm:$0xf]
        %v1750 = vld [vmem:[%s10] sm:$0x1]
        %v1752 = vlaneseq
        %v1753 = vshrl.u32 %v1752, 7
        %v1754 = vsub.s32 0, %v1753
        %v1755 = vrot.slane %v1750, %v1754
        %v1765 = vunpack.c.l.b16 %v1742
        %v1766 = vunpack.c.l.b16 %v1743
        %v1767 = vunpack.c.l.b16 %v1744
        %v1768 = vunpack.c.l.b16 %v1745
        %v1769 = vunpack.c.l.b16 %v1746
        %v1770 = vunpack.c.l.b16 %v1747
        %v1771 = vunpack.c.l.b16 %v1748
        %v1772 = vunpack.c.l.b16 %v1749
        %v1773 = vpack.c.b16 %v1766, %v1765
        %v1774 = vpack.c.b16 %v1768, %v1767
        %v1775 = vpack.c.b16 %v1770, %v1769
        %v1776 = vpack.c.b16 %v1772, %v1771
        %vm1781 = vcmask 523264
        %v1783 = vsel %vm1781, %v1741, 0
        %1785 = vmatprep.subr.bf16.mxu0 0
        %1786 = vmatpush1.bf16.msra.mxu0 0
        %1787 = vmatprep.subr.bf16.mxu0 0
        %1788 = vmatpush1.bf16.msra.mxu0 0
        %1789 = vmatprep.subr.bf16.mxu0 0
        %1790 = vmatpush1.bf16.msra.mxu0 0
        %1791 = vmatprep.subr.bf16.mxu0 0
        %1792 = vmatpush1.bf16.msra.mxu0 0
        %1793 = vmatprep.subr.bf16.mxu0 0
        %1794 = vmatpush1.bf16.msra.mxu0 %v1776
        %1795 = vmatprep.subr.bf16.mxu0 0
        %1796 = vmatpush1.bf16.msra.mxu0 %v1775
        %1797 = vmatprep.subr.bf16.mxu0 0
        %1798 = vmatpush1.bf16.msra.mxu0 %v1774
        %1799 = vmatprep.subr.bf16.mxu0 0
        %1800 = vmatpush1.bf16.msra.mxu0 %v1773
        %1801 = vmatprep.subr.bf16.mxu0 0
        %1802 = vmatpush2.bf16.msra.mxu0 0
        %1803 = vmatprep.subr.bf16.mxu0 0
        %1804 = vmatpush2.bf16.msra.mxu0 0
        %1805 = vmatprep.subr.bf16.mxu0 0
        %1806 = vmatpush2.bf16.msra.mxu0 0
        %1807 = vmatprep.subr.bf16.mxu0 0
        %1808 = vmatpush2.bf16.msra.mxu0 0
        %1809 = vmatprep.subr.bf16.mxu0 0
        %1810 = vmatpush2.bf16.msra.mxu0 0
        %1811 = vmatprep.subr.bf16.mxu0 0
        %1812 = vmatpush2.bf16.msra.mxu0 0
        %1813 = vmatprep.subr.bf16.mxu0 0
        %1814 = vmatpush2.bf16.msra.mxu0 0
        %1815 = vmatprep.subr.bf16.mxu0 0
        %1816 = vmatpush2.bf16.msra.mxu0 0
        %1817 = vmatprep.mubr.bf16.mxu0 0
        %1818 = vmatmul.mubr.bf16.gmra.mxu0 %v1783
        %v1819 = vpop.f32.mrf.mxu0
        %v1820 = vadd.f32 %v1755, %v1819
        %v1821 = vpop.f32.mrf.mxu0
        %v1822 = vpop.f32.mrf.mxu0
        %v1823 = vadd.f32 %v1755, %v1822
        %v1824 = vpop.f32.mrf.mxu0
        %1825 = vdwg.mxu0
        %v1826 = vadd.f32 %v1669, %v1820
        %v1827 = vadd.f32 %v1670, %v1823
        %v1828 = vsel %vm561, %v1826, 0.0
        %1829 = vadd.xlane.f32.xlu0 %v1828
        %v1830 = vpop.xlane.xlu0 %1829
        %v1831 = vsel %vm561, %v1827, 0.0
        %1832 = vadd.xlane.f32.xlu0 %v1831
        %v1833 = vpop.xlane.xlu0 %1832
        %v1834 = vmul.f32 %v1830, %v1632
        %v1835 = vmul.f32 %v1833, %v1632
        %v1836 = vsub.f32 %v1826, %v1834
        %v1837 = vsub.f32 %v1827, %v1835
        %v1838 = vmul.f32 %v1836, %v1836
        %v1839 = vmul.f32 %v1837, %v1837
        %v1840 = vsel %vm561, %v1838, 0.0
        %1841 = vadd.xlane.f32.xlu0 %v1840
        %v1842 = vpop.xlane.xlu0 %1841
        %v1843 = vsel %vm561, %v1839, 0.0
        %1844 = vadd.xlane.f32.xlu0 %v1843
        %v1845 = vpop.xlane.xlu0 %1844
        %v1846 = vmul.f32 %v1842, %v1632
        %v1847 = vmul.f32 %v1845, %v1632
        %v1848 = vadd.f32 %v1846, 1e-05
        %v1849 = vadd.f32 %v1847, 1e-05
        %v1850 = vrsqrt.pop %v1848
        %v1851 = vrsqrt.pop %v1849
        %v1852 = vmul.f32 %v1836, %v1850
        %v1853 = vmul.f32 %v1837, %v1851
        %v1854 = vld [vmem:[%s11] sm:$0x1]
        %v1856 = vlaneseq
        %v1857 = vshrl.u32 %v1856, 7
        %v1858 = vsub.s32 0, %v1857
        %v1859 = vrot.slane %v1854, %v1858
        %v1861 = vmul.f32 %v1852, %v1859
        %v1862 = vmul.f32 %v1853, %v1859
        %v1863 = vld [vmem:[%s12] sm:$0x1]
        %v1865 = vlaneseq
        %v1866 = vshrl.u32 %v1865, 7
        %v1867 = vsub.s32 0, %v1866
        %v1868 = vrot.slane %v1863, %v1867
        %v1870 = vadd.f32 %v1861, %v1868
        %v1871 = vadd.f32 %v1862, %v1868
        %1872 = vst.msk [vmem:[%s526] sm:$0xff] %vm561, %v1870
        %1873 = vst.msk [vmem:[%s526 + $0x8] sm:$0xff] %vm561, %v1871
        %s1874 = sand.u32 %s317, 1
        %s1875 = scalar_lea.sflag [#allocation5], %s1874
        %s1876 = sand.u32 %s317, 1
        %s1877 = smul.addr %s1876, 16
        %s1878 = scalar_lea.vmem [#allocation15], %s1877
        // Predicated region
        $region101: #{tpu_custom_call.1} parent=71 // pred_check
          %p1879 = pneg %p327
        $region102: #{tpu_custom_call.1} parent=71 // pred_check_branch
          %1881 = sbr.rel (%p1879) target = $region104
        $region103: #{tpu_custom_call.1} parent=71 // pred_region
          %s1882 = smul.u32 2, %s31
          %s1884 = ssub.s32 256, 256
          %1885 = vsyncadd %s1875, %s1884
          %s1886 = smul.addr %s1882, 128
          %s1887 = scalar_lea.hbm %s13, %s1886
          %s1888 = sshll.u32 %s1878, 4
          %s1889 = int_to_ptr.vmem [resolvable:$true] %s1888
          %1894 = dma.vmem_to_hbm [thread:$0]  %s1889, 256, %s1887, %s1875, 128, 128, 8
        $region104: #{tpu_custom_call.1} parent=71 // pred_fallthru
          _
      $region72: #{tpu_custom_call.1} parent=5 // pred_fallthru
        _
      %p1895 = scmp.le.s32.totalorder 2, %s26
      // Predicated region
      $region105: #{tpu_custom_call.1} parent=5 // pred_check
        %p1896 = pneg %p1895
      $region106: #{tpu_custom_call.1} parent=5 // pred_check_branch
        %1898 = sbr.rel (%p1896) target = $region108
      $region107: #{tpu_custom_call.1} parent=5 // pred_region
        %s1899 = ssub.s32 %s26, 2
        // Predicated region
        $region109: #{tpu_custom_call.1} parent=107 // pred_check
          %p1900 = pneg %p333
        $region110: #{tpu_custom_call.1} parent=107 // pred_check_branch
          %1902 = sbr.rel (%p1900) target = $region112
        $region111: #{tpu_custom_call.1} parent=107 // pred_region
          %s1903 = sand.u32 %s318, 1
          %s1904 = scalar_lea.sflag [#allocation5], %s1903
          %s1905 = sand.u32 %s318, 1
          %s1906 = smul.addr %s1905, 16
          %s1907 = scalar_lea.vmem [#allocation15], %s1906
          %1908 = dma.done %s1904, 256
        $region112: #{tpu_custom_call.1} parent=107 // pred_fallthru
          _
      $region108: #{tpu_custom_call.1} parent=5 // pred_fallthru
        _
    $region6: #{tpu_custom_call.1} parent=1 // loop_footer
      %s30 = sadd.s32 1, %s26
    $region7: #{tpu_custom_call.1} parent=1 // loop_footer_branch
      %25 = sbr.rel target = $region3
    $region8: #{tpu_custom_call.1} parent=1 // loop_exit
      _
    %1909 = vsyncpa [#allocation4], 1
    %s1910 = scalar_lea.sflag [#allocation4], 1
    %1911 = vsyncpa %s1910, 1
    %1912 = vsyncpa [#allocation7], 1
    %1913 = vsyncpa [#allocation10], 1
    %1914 = vsyncpa [#allocation13], 1
    %1915 = vsyncpa [#allocation5], 1
    %s1916 = scalar_lea.sflag [#allocation5], 1
    %1917 = vsyncpa %s1916, 1

</llo_original>
